<compile_context>
chip_gen: v6e
topology: v6e:2x2x1
jax: 0.10.0
libtpu: 0.0.40
codegen_flags: <defaults>
</compile_context>

<pallas_src>
import functools
import math

import jax
import jax.numpy as jnp
from jax import lax
from jax.experimental import pallas as pl
from jax.experimental.pallas import tpu as pltpu


# --------------------------------------------------------------------------- #
# In-kernel helpers
# --------------------------------------------------------------------------- #
def _layernorm_f32(x, g_ref, b_ref, eps=1e-12):
    """LayerNorm over the last axis; fused single-pass stats; f32 math."""
    d = x.shape[-1]
    s1 = jnp.sum(x, axis=-1, keepdims=True)
    s2 = jnp.sum(x * x, axis=-1, keepdims=True)
    mean = s1 * (1.0 / d)
    var = jnp.maximum(s2 * (1.0 / d) - mean * mean, 0.0)
    xn = (x - mean) * lax.rsqrt(var + eps)
    return xn * g_ref[...].astype(jnp.float32) + b_ref[...].astype(jnp.float32)


def _gelu_exact(x):
    # 0.5 * x * (1 + erf(x / sqrt(2)))  -- exact (erf) variant used by the model.
    return 0.5 * x * (1.0 + lax.erf(x * (1.0 / math.sqrt(2.0))))


# --------------------------------------------------------------------------- #
# Kernels
# --------------------------------------------------------------------------- #
def _attn_aoa_kernel(x_ref, mask_ref, g_ref, b_ref, wqkv_ref, bqkv_ref,
                     wa_att_ref, wa_q_ref, baoa_ref, o_ref, att_sc, *, num_heads):
    """Fused: pre-LN -> packed QKV -> masked MHA -> AoA GLU -> residual (one batch el.).

    Per grid step: x_ref (S, D), mask_ref (1, S), wqkv_ref (D, 3D),
    wa_att_ref / wa_q_ref (D, 2D) (the two halves of Waoa), att_sc (S, D) f32 scratch.
    """
    x = x_ref[...].astype(jnp.float32)                  # residual input (S, D)
    S, D = x.shape
    n = _layernorm_f32(x, g_ref, b_ref)                 # SublayerConnection pre-norm

    cdt = wqkv_ref.dtype                                # MXU input dtype (f32 or bf16)
    qkv = jnp.dot(n.astype(cdt), wqkv_ref[...], preferred_element_type=jnp.float32)
    qkv = qkv + bqkv_ref[...].astype(jnp.float32)       # (S, 3D)

    dk = D // num_heads
    q = qkv[:, :D] * (1.0 / math.sqrt(dk))              # pre-scale q once (hoisted)
    k = qkv[:, D:2 * D]
    v = qkv[:, 2 * D:]

    # Additive key-mask bias computed once; broadcasts over queries. Finite (-1e30)
    # instead of -inf: identical result whenever a row has >=1 valid key (exp underflows
    # to exactly 0), and NaN-free for fully-masked rows.
    mbias = jnp.where(mask_ref[...] != 0.0, 0.0, -1e30)    # (1, S)

    for h in range(num_heads):                          # static unroll over heads
        lo = h * dk
        qh = q[:, lo:lo + dk].astype(cdt)
        kh = k[:, lo:lo + dk].astype(cdt)
        vh = v[:, lo:lo + dk].astype(cdt)
        sc = lax.dot_general(qh, kh, (((1,), (1,)), ((), ())),
                             preferred_element_type=jnp.float32) + mbias    # (S, S)
        sc = sc - jnp.max(sc, axis=-1, keepdims=True)
        p = jnp.exp(sc)                                 # un-normalized probabilities
        denom = jnp.sum(p, axis=-1, keepdims=True)      # (S, 1), >= 1
        oh = jnp.dot(p.astype(cdt), vh, preferred_element_type=jnp.float32)
        # Deferred softmax normalization on the (S, dk) output, not the (S, S) matrix;
        # head output lands directly in the shared scratch (no all-heads-live concat).
        att_sc[:, lo:lo + dk] = oh * (1.0 / denom)

    att = att_sc[...]                                   # (S, D) f32

    # Attention-on-attention: GLU(Linear(cat([att, n], -1))) as two K=D matmuls.
    aoa = jnp.dot(att.astype(wa_att_ref.dtype), wa_att_ref[...],
                  preferred_element_type=jnp.float32)
    aoa = aoa + jnp.dot(n.astype(wa_q_ref.dtype), wa_q_ref[...],
                        preferred_element_type=jnp.float32)
    aoa = aoa + baoa_ref[...].astype(jnp.float32)       # (S, 2D)
    glu = aoa[:, :D] * jax.nn.sigmoid(aoa[:, D:])

    o_ref[...] = (x + glu).astype(o_ref.dtype)


def _ffn_res(x_ref, g_ref, b_ref, w1_ref, b1_ref, w2_ref, b2_ref):
    """pre-LN -> Linear -> exact GELU -> Linear -> residual (row tile), f32 result."""
    x = x_ref[...].astype(jnp.float32)                  # (TR, D)
    n = _layernorm_f32(x, g_ref, b_ref)
    h = jnp.dot(n.astype(w1_ref.dtype), w1_ref[...], preferred_element_type=jnp.float32)
    h = _gelu_exact(h + b1_ref[...].astype(jnp.float32))
    y = jnp.dot(h.astype(w2_ref.dtype), w2_ref[...], preferred_element_type=jnp.float32)
    return x + y + b2_ref[...].astype(jnp.float32)


def _ffn_kernel(x_ref, g_ref, b_ref, w1_ref, b1_ref, w2_ref, b2_ref, o_ref):
    o_ref[...] = _ffn_res(x_ref, g_ref, b_ref, w1_ref, b1_ref,
                          w2_ref, b2_ref).astype(o_ref.dtype)


def _ffn_final_ln_kernel(x_ref, g_ref, b_ref, w1_ref, b1_ref, w2_ref, b2_ref,
                         gf_ref, bf_ref, o_ref):
    """Last layer: FFN + residual fused with the model's final LayerNorm."""
    y = _ffn_res(x_ref, g_ref, b_ref, w1_ref, b1_ref, w2_ref, b2_ref)
    o_ref[...] = _layernorm_f32(y, gf_ref, bf_ref).astype(o_ref.dtype)


# --------------------------------------------------------------------------- #
# Wrappers
# --------------------------------------------------------------------------- #
def _nbytes(shape, dtype):
    return math.prod(shape) * jnp.dtype(dtype).itemsize


@functools.lru_cache(maxsize=1)
def _physical_vmem_bytes():
    try:
        return int(pltpu.get_tpu_info().vmem_capacity_bytes)
    except Exception:
        return 64 << 20        # conservative: smallest per-TC VMEM across v5e/v6e/v7x


def _vmem_limit(est_bytes):
    # Cap at 75% of physical VMEM (leaves compiler-scratch headroom on v7x, while
    # allowing ~96 MiB on v5e/v6e); never request less than 32 MiB (or the cap).
    cap = (_physical_vmem_bytes() * 3) // 4
    lo = min(32 << 20, cap)
    return int(min(max(int(est_bytes), lo), cap))


def _round_up(n, m):
    return ((n + m - 1) // m) * m


def _const_spec(shape):
    """Grid-invariant (resident) block: constant index map + single-buffered."""
    idx = lambda *_: (0,) * len(shape)
    try:
        return pl.BlockSpec(shape, idx, pipeline_mode=pl.Buffered(1))
    except TypeError:  # older BlockSpec without pipeline_mode
        return pl.BlockSpec(shape, idx)


def _half_spec(shape, block_row):
    """Resident block addressing row-block `block_row` of a larger weight (Waoa halves)."""
    idx = lambda *_: (block_row, 0)
    try:
        return pl.BlockSpec(shape, idx, pipeline_mode=pl.Buffered(1))
    except TypeError:
        return pl.BlockSpec(shape, idx)


def _attention_sublayer(x, mask3, p, *, num_heads):
    B, S, D = x.shape
    w_dt = p["wqkv"].dtype
    est = (
        4 * _nbytes((S, D), x.dtype)                     # x / out tiles (double-buffered)
        + 2 * _nbytes((1, S), jnp.float32)               # mask row
        + 2 * _nbytes((1, D), p["ln0_g"].dtype)          # LN gamma/beta (single-buffered)
        + _nbytes((D, 3 * D), w_dt) + _nbytes((1, 3 * D), p["bqkv"].dtype)
        + _nbytes((2 * D, 2 * D), w_dt) + _nbytes((1, 2 * D), p["baoa"].dtype)
        + (10 * S * D + 2 * S * S) * 4                   # f32 intermediates + per-head scores
        + _nbytes((S, D), jnp.float32)                   # att scratch
        + (4 << 20)                                      # slack
    )
    kernel = functools.partial(_attn_aoa_kernel, num_heads=num_heads)
    return pl.pallas_call(
        kernel,
        out_shape=jax.ShapeDtypeStruct((B, S, D), x.dtype),
        grid_spec=pltpu.PrefetchScalarGridSpec(
            num_scalar_prefetch=0,
            grid=(B,),
            in_specs=[
                pl.BlockSpec((None, S, D), lambda b: (b, 0, 0)),   # x (per-batch tile)
                pl.BlockSpec((None, 1, S), lambda b: (b, 0, 0)),   # mask row
                _const_spec((1, D)),                               # LN gamma (resident)
                _const_spec((1, D)),                               # LN beta
                _const_spec((D, 3 * D)),                           # packed Wq|Wk|Wv
                _const_spec((1, 3 * D)),
                _half_spec((D, 2 * D), 0),                         # Waoa[:D]  (att half)
                _half_spec((D, 2 * D), 1),                         # Waoa[D:]  (query half)
                _const_spec((1, 2 * D)),
            ],
            out_specs=pl.BlockSpec((None, S, D), lambda b: (b, 0, 0)),
            scratch_shapes=[pltpu.VMEM((S, D), jnp.float32)],
        ),
        compiler_params=pltpu.CompilerParams(
            dimension_semantics=("parallel",),
            vmem_limit_bytes=_vmem_limit(est),
        ),
    )(x, mask3, p["ln0_g"], p["ln0_b"], p["wqkv"], p["bqkv"],
      p["waoa"], p["waoa"], p["baoa"])


def _ffn_sublayer(x2, p, *, tile_rows, final_ln=None):
    N, D = x2.shape
    Hf = p["w1"].shape[1]
    w_dt = p["w1"].dtype
    est = (
        4 * _nbytes((tile_rows, D), x2.dtype)            # x / out tiles (double-buffered)
        + 2 * _nbytes((1, D), p["ln1_g"].dtype)
        + _nbytes((D, Hf), w_dt) + _nbytes((1, Hf), p["b1"].dtype)
        + _nbytes((Hf, D), w_dt) + _nbytes((1, D), p["b2"].dtype)
        + (2 * tile_rows * D + 2 * tile_rows * Hf) * 4   # f32 intermediates (n, h, y)
        + (4 << 20)
    )
    in_specs = [
        pl.BlockSpec((tile_rows, D), lambda i: (i, 0)),  # row tile of x
        _const_spec((1, D)), _const_spec((1, D)),        # LN gamma/beta
        _const_spec((D, Hf)), _const_spec((1, Hf)),      # W1, b1 (resident)
        _const_spec((Hf, D)), _const_spec((1, D)),       # W2, b2 (resident)
    ]
    args = [x2, p["ln1_g"], p["ln1_b"], p["w1"], p["b1"], p["w2"], p["b2"]]
    kernel = _ffn_kernel
    if final_ln is not None:                             # fuse the model's final LayerNorm
        gf, bf = final_ln
        in_specs += [_const_spec((1, D)), _const_spec((1, D))]
        args += [gf, bf]
        kernel = _ffn_final_ln_kernel
    return pl.pallas_call(
        kernel,
        out_shape=jax.ShapeDtypeStruct((N, D), x2.dtype),
        grid_spec=pltpu.PrefetchScalarGridSpec(
            num_scalar_prefetch=0,
            grid=(pl.cdiv(N, tile_rows),),
            in_specs=in_specs,
            out_specs=pl.BlockSpec((tile_rows, D), lambda i: (i, 0)),
        ),
        compiler_params=pltpu.CompilerParams(
            dimension_semantics=("parallel",),
            vmem_limit_bytes=_vmem_limit(est),
        ),
    )(*args)


def aoa_refiner_core(x, mask, params, *, num_heads, row_tile_target=512):
    """AoA_Refiner_Core forward. x: (B, S, D); mask: (B, S), nonzero = attend."""
    B, S, D = x.shape
    assert D % num_heads == 0
    assert mask.shape == (B, S)
    layers = params["layers"]
    assert layers, "need at least one refiner layer"
    mask3 = mask.astype(jnp.float32).reshape(B, 1, S)

    N = B * S
    tile = min(_round_up(row_tile_target, 8), _round_up(N, 8))

    for li, p in enumerate(layers):
        x = _attention_sublayer(x, mask3, p, num_heads=num_heads)
        final_ln = (params["lnf_g"], params["lnf_b"]) if li == len(layers) - 1 else None
        x = _ffn_sublayer(x.reshape(N, D), p, tile_rows=tile,
                          final_ln=final_ln).reshape(B, S, D)
    return x


# --------------------------------------------------------------------------- #
# Pure-JAX reference (mirrors the PyTorch module in eval mode)
# --------------------------------------------------------------------------- #
def _reference(x, mask, params, num_heads):
    def ln(v, g, b):
        mu = jnp.mean(v, axis=-1, keepdims=True)
        var = jnp.mean((v - mu) ** 2, axis=-1, keepdims=True)
        return (v - mu) / jnp.sqrt(var + 1e-12) * g + b

    B, S, D = x.shape
    dk = D // num_heads
    for p in params["layers"]:
        n = ln(x, p["ln0_g"], p["ln0_b"])
        qkv = n @ p["wqkv"] + p["bqkv"]
        q, k, v = qkv[..., :D], qkv[..., D:2 * D], qkv[..., 2 * D:]
        split = lambda t: t.reshape(B, S, num_heads, dk).transpose(0, 2, 1, 3)
        qh, kh, vh = split(q), split(k), split(v)
        sc = jnp.einsum("bhqd,bhkd->bhqk", qh, kh) / math.sqrt(dk)
        sc = jnp.where(mask[:, None, None, :] != 0, sc, -jnp.inf)
        att = jnp.einsum("bhqk,bhkd->bhqd", jax.nn.softmax(sc, axis=-1), vh)
        att = att.transpose(0, 2, 1, 3).reshape(B, S, D)
        aoa = jnp.concatenate([att, n], axis=-1) @ p["waoa"] + p["baoa"]
        x = x + aoa[..., :D] * jax.nn.sigmoid(aoa[..., D:])
        n2 = ln(x, p["ln1_g"], p["ln1_b"])
        h = n2 @ p["w1"] + p["b1"]
        h = 0.5 * h * (1.0 + lax.erf(h / math.sqrt(2.0)))
        x = x + h @ p["w2"] + p["b2"]
    return ln(x, params["lnf_g"], params["lnf_b"])


# --------------------------------------------------------------------------- #
# Parameter construction / test
# --------------------------------------------------------------------------- #
def _init_params(key, dim, hidden_dim, n_layers):
    def nrm(k, shape, scale=1.0):
        return scale * jax.random.normal(k, shape, dtype=jnp.float32)

    layers = []
    for _ in range(n_layers):
        key, *ks = jax.random.split(key, 13)
        layers.append({
            "ln0_g": 1.0 + 0.01 * nrm(ks[0], (1, dim)),
            "ln0_b": 0.01 * nrm(ks[1], (1, dim)),
            "wqkv": nrm(ks[2], (dim, 3 * dim), 1.0 / math.sqrt(dim)),
            "bqkv": 0.02 * nrm(ks[3], (1, 3 * dim)),
            "waoa": nrm(ks[4], (2 * dim, 2 * dim), 1.0 / math.sqrt(2 * dim)),
            "baoa": 0.02 * nrm(ks[5], (1, 2 * dim)),
            "ln1_g": 1.0 + 0.01 * nrm(ks[6], (1, dim)),
            "ln1_b": 0.01 * nrm(ks[7], (1, dim)),
            "w1": nrm(ks[8], (dim, hidden_dim), 1.0 / math.sqrt(dim)),
            "b1": 0.02 * nrm(ks[9], (1, hidden_dim)),
            "w2": nrm(ks[10], (hidden_dim, dim), 1.0 / math.sqrt(hidden_dim)),
            "b2": 0.02 * nrm(ks[11], (1, dim)),
        })
    key, kg, kb = jax.random.split(key, 3)
    return {
        "layers": layers,
        "lnf_g": 1.0 + 0.01 * nrm(kg, (1, dim)),
        "lnf_b": 0.01 * nrm(kb, (1, dim)),
    }


def _cast_matmul_weights(params, dtype):
    def cast_layer(p):
        q = dict(p)
        for name in ("wqkv", "waoa", "w1", "w2"):
            q[name] = p[name].astype(dtype)
        return q
    return {"layers": [cast_layer(p) for p in params["layers"]],
            "lnf_g": params["lnf_g"], "lnf_b": params["lnf_b"]}


if __name__ == "__main__":
    num_heads, dim, hidden_dim, n_layers = 4, 32, 64, 3
    B, S = 2, 8

    key = jax.random.PRNGKey(0)
    key, kx = jax.random.split(key)
    params = _init_params(key, dim, hidden_dim, n_layers)
    x = jax.random.normal(kx, (B, S, dim), dtype=jnp.float32)
    mask = jnp.ones((B, S), dtype=jnp.float32).at[1, S - 2:].set(0.0)

    fwd = jax.jit(functools.partial(aoa_refiner_core, num_heads=num_heads))

    # Exact-parity path (f32 weights, f32 MXU accumulation).
    out = jax.block_until_ready(fwd(x, mask, params))
    ref = _reference(x, mask, params, num_heads)
    assert out.shape == (B, S, dim)
    err = float(jnp.max(jnp.abs(out - ref)))
    assert err < 5e-4, err

    # Optimized MXU path (bf16 weights, f32 accumulation).
    params_bf16 = _cast_matmul_weights(params, jnp.bfloat16)
    out_b = jax.block_until_ready(fwd(x, mask, params_bf16))
    assert out_b.shape == (B, S, dim)
    assert bool(jnp.all(jnp.isfinite(out_b)))
    assert float(jnp.max(jnp.abs(out_b - ref))) < 0.5

    print("KERNEL_OK")
</pallas_src>

<mosaic_0001>
module attributes {stable_mosaic.version = 11 : i64} {
  func.func @_ffn_kernel(%arg0: i32, %arg1: memref<16x32xf32, #tpu.memory_space<vmem>>, %arg2: memref<1x32xf32, #tpu.memory_space<vmem>>, %arg3: memref<1x32xf32, #tpu.memory_space<vmem>>, %arg4: memref<32x64xf32, #tpu.memory_space<vmem>>, %arg5: memref<1x64xf32, #tpu.memory_space<vmem>>, %arg6: memref<64x32xf32, #tpu.memory_space<vmem>>, %arg7: memref<1x32xf32, #tpu.memory_space<vmem>>, %arg8: memref<16x32xf32, #tpu.memory_space<vmem>>) attributes {dimension_semantics = [#tpu.dimension_semantics<parallel>], iteration_bounds = array<i64: 1>, scalar_prefetch = 0 : i64, scratch_operands = 0 : i64, tpu.core_type = #tpu.core_type<tc>, window_params = [{transform_indices = @transform_0, window_bounds = array<i64: 16, 32>}, {pipeline_mode = #tpu.pipeline_mode<synchronous>, transform_indices = @transform_1, window_bounds = array<i64: 1, 32>}, {pipeline_mode = #tpu.pipeline_mode<synchronous>, transform_indices = @transform_2, window_bounds = array<i64: 1, 32>}, {pipeline_mode = #tpu.pipeline_mode<synchronous>, transform_indices = @transform_3, window_bounds = array<i64: 32, 64>}, {pipeline_mode = #tpu.pipeline_mode<synchronous>, transform_indices = @transform_4, window_bounds = array<i64: 1, 64>}, {pipeline_mode = #tpu.pipeline_mode<synchronous>, transform_indices = @transform_5, window_bounds = array<i64: 64, 32>}, {pipeline_mode = #tpu.pipeline_mode<synchronous>, transform_indices = @transform_6, window_bounds = array<i64: 1, 32>}, {transform_indices = @transform_7, window_bounds = array<i64: 16, 32>}]} {
    %c0 = arith.constant 0 : index
    %c0_0 = arith.constant 0 : index
    %0 = vector.load %arg1[%c0, %c0_0] : memref<16x32xf32, #tpu.memory_space<vmem>>, vector<16x32xf32>
    %cst = arith.constant dense<0.000000e+00> : vector<16xf32>
    %1 = vector.multi_reduction <add>, %0, %cst [1] : vector<16x32xf32> to vector<16xf32>
    %2 = vector.shape_cast %1 : vector<16xf32> to vector<16x1xf32>
    %3 = arith.mulf %0, %0 : vector<16x32xf32>
    %cst_1 = arith.constant dense<0.000000e+00> : vector<16xf32>
    %4 = vector.multi_reduction <add>, %3, %cst_1 [1] : vector<16x32xf32> to vector<16xf32>
    %5 = vector.shape_cast %4 : vector<16xf32> to vector<16x1xf32>
    %cst_2 = arith.constant 3.125000e-02 : f32
    %6 = vector.broadcast %cst_2 : f32 to vector<16x1xf32>
    %7 = arith.mulf %2, %6 : vector<16x1xf32>
    %cst_3 = arith.constant 3.125000e-02 : f32
    %8 = vector.broadcast %cst_3 : f32 to vector<16x1xf32>
    %9 = arith.mulf %5, %8 : vector<16x1xf32>
    %10 = arith.mulf %7, %7 : vector<16x1xf32>
    %11 = arith.subf %9, %10 : vector<16x1xf32>
    %cst_4 = arith.constant 0.000000e+00 : f32
    %12 = vector.broadcast %cst_4 : f32 to vector<16x1xf32>
    %13 = arith.maximumf %11, %12 : vector<16x1xf32>
    %14 = vector.broadcast %7 : vector<16x1xf32> to vector<16x32xf32>
    %15 = arith.subf %0, %14 : vector<16x32xf32>
    %cst_5 = arith.constant 9.99999996E-13 : f32
    %16 = vector.broadcast %cst_5 : f32 to vector<16x1xf32>
    %17 = arith.addf %13, %16 : vector<16x1xf32>
    %18 = math.rsqrt %17 : vector<16x1xf32>
    %19 = vector.broadcast %18 : vector<16x1xf32> to vector<16x32xf32>
    %20 = arith.mulf %15, %19 : vector<16x32xf32>
    %c0_6 = arith.constant 0 : index
    %c0_7 = arith.constant 0 : index
    %21 = vector.load %arg2[%c0_6, %c0_7] : memref<1x32xf32, #tpu.memory_space<vmem>>, vector<1x32xf32>
    %22 = vector.broadcast %21 : vector<1x32xf32> to vector<16x32xf32>
    %23 = arith.mulf %20, %22 : vector<16x32xf32>
    %c0_8 = arith.constant 0 : index
    %c0_9 = arith.constant 0 : index
    %24 = vector.load %arg3[%c0_8, %c0_9] : memref<1x32xf32, #tpu.memory_space<vmem>>, vector<1x32xf32>
    %25 = vector.broadcast %24 : vector<1x32xf32> to vector<16x32xf32>
    %26 = arith.addf %23, %25 : vector<16x32xf32>
    %c0_10 = arith.constant 0 : index
    %c0_11 = arith.constant 0 : index
    %27 = vector.load %arg4[%c0_10, %c0_11] : memref<32x64xf32, #tpu.memory_space<vmem>>, vector<32x64xf32>
    %cst_12 = arith.constant dense<0.000000e+00> : vector<16x64xf32>
    %28 = tpu.matmul %26, %27, %cst_12 {dimension_numbers = #tpu.dot_dimension_numbers<[1], [0], [0], [1], [0, 0, 1, 1], [], []>} : vector<16x32xf32>, vector<32x64xf32>, vector<16x64xf32> -> vector<16x64xf32>
    %c0_13 = arith.constant 0 : index
    %c0_14 = arith.constant 0 : index
    %29 = vector.load %arg5[%c0_13, %c0_14] : memref<1x64xf32, #tpu.memory_space<vmem>>, vector<1x64xf32>
    %30 = vector.broadcast %29 : vector<1x64xf32> to vector<16x64xf32>
    %31 = arith.addf %28, %30 : vector<16x64xf32>
    %cst_15 = arith.constant 5.000000e-01 : f32
    %32 = vector.broadcast %cst_15 : f32 to vector<16x64xf32>
    %33 = arith.mulf %32, %31 : vector<16x64xf32>
    %cst_16 = arith.constant 0.707106769 : f32
    %34 = vector.broadcast %cst_16 : f32 to vector<16x64xf32>
    %35 = arith.mulf %31, %34 : vector<16x64xf32>
    %36 = math.erf %35 : vector<16x64xf32>
    %cst_17 = arith.constant 1.000000e+00 : f32
    %37 = vector.broadcast %cst_17 : f32 to vector<16x64xf32>
    %38 = arith.addf %37, %36 : vector<16x64xf32>
    %39 = arith.mulf %33, %38 : vector<16x64xf32>
    %c0_18 = arith.constant 0 : index
    %c0_19 = arith.constant 0 : index
    %40 = vector.load %arg6[%c0_18, %c0_19] : memref<64x32xf32, #tpu.memory_space<vmem>>, vector<64x32xf32>
    %cst_20 = arith.constant dense<0.000000e+00> : vector<16x32xf32>
    %41 = tpu.matmul %39, %40, %cst_20 {dimension_numbers = #tpu.dot_dimension_numbers<[1], [0], [0], [1], [0, 0, 1, 1], [], []>} : vector<16x64xf32>, vector<64x32xf32>, vector<16x32xf32> -> vector<16x32xf32>
    %42 = arith.addf %0, %41 : vector<16x32xf32>
    %c0_21 = arith.constant 0 : index
    %c0_22 = arith.constant 0 : index
    %43 = vector.load %arg7[%c0_21, %c0_22] : memref<1x32xf32, #tpu.memory_space<vmem>>, vector<1x32xf32>
    %44 = vector.broadcast %43 : vector<1x32xf32> to vector<16x32xf32>
    %45 = arith.addf %42, %44 : vector<16x32xf32>
    %c0_23 = arith.constant 0 : index
    %c0_24 = arith.constant 0 : index
    %46 = vector.load %arg8[%c0_23, %c0_24] : memref<16x32xf32, #tpu.memory_space<vmem>>, vector<16x32xf32>
    tpu.vector_store %arg8[%c0_23, %c0_24], %45 {strides = array<i32>} : memref<16x32xf32, #tpu.memory_space<vmem>>, vector<16x32xf32>,
    return
  }
  func.func @transform_0(%arg0: i32) -> (i32, i32) {
    %c0_i32 = arith.constant 0 : i32
    %c0_i32_0 = arith.constant 0 : i32
    return %arg0, %c0_i32 : i32, i32
  }
  func.func @transform_1(%arg0: i32) -> (i32, i32) {
    %c0_i32 = arith.constant 0 : i32
    %c0_i32_0 = arith.constant 0 : i32
    %c0_i32_1 = arith.constant 0 : i32
    return %c0_i32, %c0_i32_0 : i32, i32
  }
  func.func @transform_2(%arg0: i32) -> (i32, i32) {
    %c0_i32 = arith.constant 0 : i32
    %c0_i32_0 = arith.constant 0 : i32
    %c0_i32_1 = arith.constant 0 : i32
    return %c0_i32, %c0_i32_0 : i32, i32
  }
  func.func @transform_3(%arg0: i32) -> (i32, i32) {
    %c0_i32 = arith.constant 0 : i32
    %c0_i32_0 = arith.constant 0 : i32
    %c0_i32_1 = arith.constant 0 : i32
    return %c0_i32, %c0_i32_0 : i32, i32
  }
  func.func @transform_4(%arg0: i32) -> (i32, i32) {
    %c0_i32 = arith.constant 0 : i32
    %c0_i32_0 = arith.constant 0 : i32
    %c0_i32_1 = arith.constant 0 : i32
    return %c0_i32, %c0_i32_0 : i32, i32
  }
  func.func @transform_5(%arg0: i32) -> (i32, i32) {
    %c0_i32 = arith.constant 0 : i32
    %c0_i32_0 = arith.constant 0 : i32
    %c0_i32_1 = arith.constant 0 : i32
    return %c0_i32, %c0_i32_0 : i32, i32
  }
  func.func @transform_6(%arg0: i32) -> (i32, i32) {
    %c0_i32 = arith.constant 0 : i32
    %c0_i32_0 = arith.constant 0 : i32
    %c0_i32_1 = arith.constant 0 : i32
    return %c0_i32, %c0_i32_0 : i32, i32
  }
  func.func @transform_7(%arg0: i32) -> (i32, i32) {
    %c0_i32 = arith.constant 0 : i32
    %c0_i32_0 = arith.constant 0 : i32
    return %arg0, %c0_i32 : i32, i32
  }
}

module attributes {stable_mosaic.version = 11 : i64} {
  func.func @_attn_aoa_kernel(%arg0: i32, %arg1: memref<1x8x32xf32, #tpu.memory_space<vmem>>, %arg2: memref<1x1x8xf32, #tpu.memory_space<vmem>>, %arg3: memref<1x32xf32, #tpu.memory_space<vmem>>, %arg4: memref<1x32xf32, #tpu.memory_space<vmem>>, %arg5: memref<32x96xf32, #tpu.memory_space<vmem>>, %arg6: memref<1x96xf32, #tpu.memory_space<vmem>>, %arg7: memref<32x64xf32, #tpu.memory_space<vmem>>, %arg8: memref<32x64xf32, #tpu.memory_space<vmem>>, %arg9: memref<1x64xf32, #tpu.memory_space<vmem>>, %arg10: memref<1x8x32xf32, #tpu.memory_space<vmem>>, %arg11: memref<8x32xf32, #tpu.memory_space<vmem>>) attributes {dimension_semantics = [#tpu.dimension_semantics<parallel>], iteration_bounds = array<i64: 2>, scalar_prefetch = 0 : i64, scratch_operands = 1 : i64, tpu.core_type = #tpu.core_type<tc>, window_params = [{transform_indices = @transform_0, window_bounds = array<i64: 1, 8, 32>}, {transform_indices = @transform_1, window_bounds = array<i64: 1, 1, 8>}, {pipeline_mode = #tpu.pipeline_mode<synchronous>, transform_indices = @transform_2, window_bounds = array<i64: 1, 32>}, {pipeline_mode = #tpu.pipeline_mode<synchronous>, transform_indices = @transform_3, window_bounds = array<i64: 1, 32>}, {pipeline_mode = #tpu.pipeline_mode<synchronous>, transform_indices = @transform_4, window_bounds = array<i64: 32, 96>}, {pipeline_mode = #tpu.pipeline_mode<synchronous>, transform_indices = @transform_5, window_bounds = array<i64: 1, 96>}, {pipeline_mode = #tpu.pipeline_mode<synchronous>, transform_indices = @transform_6, window_bounds = array<i64: 32, 64>}, {pipeline_mode = #tpu.pipeline_mode<synchronous>, transform_indices = @transform_7, window_bounds = array<i64: 32, 64>}, {pipeline_mode = #tpu.pipeline_mode<synchronous>, transform_indices = @transform_8, window_bounds = array<i64: 1, 64>}, {transform_indices = @transform_9, window_bounds = array<i64: 1, 8, 32>}]} {
    %c0 = arith.constant 0 : index
    %c0_0 = arith.constant 0 : index
    %c0_1 = arith.constant 0 : index
    %0 = vector.load %arg1[%c0, %c0_0, %c0_1] : memref<1x8x32xf32, #tpu.memory_space<vmem>>, vector<1x8x32xf32>
    %1 = vector.shape_cast %0 : vector<1x8x32xf32> to vector<8x32xf32>
    %cst = arith.constant dense<0.000000e+00> : vector<8xf32>
    %2 = vector.multi_reduction <add>, %1, %cst [1] : vector<8x32xf32> to vector<8xf32>
    %3 = vector.shape_cast %2 : vector<8xf32> to vector<8x1xf32>
    %4 = arith.mulf %1, %1 : vector<8x32xf32>
    %cst_2 = arith.constant dense<0.000000e+00> : vector<8xf32>
    %5 = vector.multi_reduction <add>, %4, %cst_2 [1] : vector<8x32xf32> to vector<8xf32>
    %6 = vector.shape_cast %5 : vector<8xf32> to vector<8x1xf32>
    %cst_3 = arith.constant 3.125000e-02 : f32
    %7 = vector.broadcast %cst_3 : f32 to vector<8x1xf32>
    %8 = arith.mulf %3, %7 : vector<8x1xf32>
    %cst_4 = arith.constant 3.125000e-02 : f32
    %9 = vector.broadcast %cst_4 : f32 to vector<8x1xf32>
    %10 = arith.mulf %6, %9 : vector<8x1xf32>
    %11 = arith.mulf %8, %8 : vector<8x1xf32>
    %12 = arith.subf %10, %11 : vector<8x1xf32>
    %cst_5 = arith.constant 0.000000e+00 : f32
    %13 = vector.broadcast %cst_5 : f32 to vector<8x1xf32>
    %14 = arith.maximumf %12, %13 : vector<8x1xf32>
    %15 = vector.broadcast %8 : vector<8x1xf32> to vector<8x32xf32>
    %16 = arith.subf %1, %15 : vector<8x32xf32>
    %cst_6 = arith.constant 9.99999996E-13 : f32
    %17 = vector.broadcast %cst_6 : f32 to vector<8x1xf32>
    %18 = arith.addf %14, %17 : vector<8x1xf32>
    %19 = math.rsqrt %18 : vector<8x1xf32>
    %20 = vector.broadcast %19 : vector<8x1xf32> to vector<8x32xf32>
    %21 = arith.mulf %16, %20 : vector<8x32xf32>
    %c0_7 = arith.constant 0 : index
    %c0_8 = arith.constant 0 : index
    %22 = vector.load %arg3[%c0_7, %c0_8] : memref<1x32xf32, #tpu.memory_space<vmem>>, vector<1x32xf32>
    %23 = vector.broadcast %22 : vector<1x32xf32> to vector<8x32xf32>
    %24 = arith.mulf %21, %23 : vector<8x32xf32>
    %c0_9 = arith.constant 0 : index
    %c0_10 = arith.constant 0 : index
    %25 = vector.load %arg4[%c0_9, %c0_10] : memref<1x32xf32, #tpu.memory_space<vmem>>, vector<1x32xf32>
    %26 = vector.broadcast %25 : vector<1x32xf32> to vector<8x32xf32>
    %27 = arith.addf %24, %26 : vector<8x32xf32>
    %c0_11 = arith.constant 0 : index
    %c0_12 = arith.constant 0 : index
    %28 = vector.load %arg5[%c0_11, %c0_12] : memref<32x96xf32, #tpu.memory_space<vmem>>, vector<32x96xf32>
    %cst_13 = arith.constant dense<0.000000e+00> : vector<8x96xf32>
    %29 = tpu.matmul %27, %28, %cst_13 {dimension_numbers = #tpu.dot_dimension_numbers<[1], [0], [0], [1], [0, 0, 1, 1], [], []>} : vector<8x32xf32>, vector<32x96xf32>, vector<8x96xf32> -> vector<8x96xf32>
    %c0_14 = arith.constant 0 : index
    %c0_15 = arith.constant 0 : index
    %30 = vector.load %arg6[%c0_14, %c0_15] : memref<1x96xf32, #tpu.memory_space<vmem>>, vector<1x96xf32>
    %31 = vector.broadcast %30 : vector<1x96xf32> to vector<8x96xf32>
    %32 = arith.addf %29, %31 : vector<8x96xf32>
    %33 = vector.extract_strided_slice %32 {offsets = [0, 0], sizes = [8, 32], strides = [1, 1]} : vector<8x96xf32> to vector<8x32xf32>
    %cst_16 = arith.constant 0.353553385 : f32
    %34 = vector.broadcast %cst_16 : f32 to vector<8x32xf32>
    %35 = arith.mulf %33, %34 : vector<8x32xf32>
    %36 = vector.extract_strided_slice %32 {offsets = [0, 32], sizes = [8, 32], strides = [1, 1]} : vector<8x96xf32> to vector<8x32xf32>
    %37 = vector.extract_strided_slice %32 {offsets = [0, 64], sizes = [8, 32], strides = [1, 1]} : vector<8x96xf32> to vector<8x32xf32>
    %c0_17 = arith.constant 0 : index
    %c0_18 = arith.constant 0 : index
    %c0_19 = arith.constant 0 : index
    %38 = vector.load %arg2[%c0_17, %c0_18, %c0_19] : memref<1x1x8xf32, #tpu.memory_space<vmem>>, vector<1x1x8xf32>
    %39 = vector.shape_cast %38 : vector<1x1x8xf32> to vector<1x8xf32>
    %cst_20 = arith.constant 0.000000e+00 : f32
    %40 = vector.broadcast %cst_20 : f32 to vector<1x8xf32>
    %41 = arith.cmpf one, %39, %40 : vector<1x8xf32>
    %cst_21 = arith.constant 0.000000e+00 : f32
    %cst_22 = arith.constant -1.000000e+30 : f32
    %42 = vector.broadcast %cst_21 : f32 to vector<1x8xf32>
    %43 = vector.broadcast %cst_22 : f32 to vector<1x8xf32>
    %44 = arith.select %41, %42, %43 : vector<1x8xi1>, vector<1x8xf32>
    %45 = vector.extract_strided_slice %35 {offsets = [0, 0], sizes = [8, 8], strides = [1, 1]} : vector<8x32xf32> to vector<8x8xf32>
    %46 = vector.extract_strided_slice %36 {offsets = [0, 0], sizes = [8, 8], strides = [1, 1]} : vector<8x32xf32> to vector<8x8xf32>
    %47 = vector.extract_strided_slice %37 {offsets = [0, 0], sizes = [8, 8], strides = [1, 1]} : vector<8x32xf32> to vector<8x8xf32>
    %cst_23 = arith.constant dense<0.000000e+00> : vector<8x8xf32>
    %48 = tpu.matmul %45, %46, %cst_23 {dimension_numbers = #tpu.dot_dimension_numbers<[1], [1], [0], [0], [0, 0, 1, 0], [], []>} : vector<8x8xf32>, vector<8x8xf32>, vector<8x8xf32> -> vector<8x8xf32>
    %49 = vector.broadcast %44 : vector<1x8xf32> to vector<8x8xf32>
    %50 = arith.addf %48, %49 : vector<8x8xf32>
    %cst_24 = arith.constant dense<0xFF800000> : vector<8xf32>
    %51 = vector.multi_reduction <maximumf>, %50, %cst_24 [1] : vector<8x8xf32> to vector<8xf32>
    %52 = vector.shape_cast %51 : vector<8xf32> to vector<8x1xf32>
    %53 = vector.broadcast %52 : vector<8x1xf32> to vector<8x8xf32>
    %54 = arith.subf %50, %53 : vector<8x8xf32>
    %55 = math.exp %54 : vector<8x8xf32>
    %cst_25 = arith.constant dense<0.000000e+00> : vector<8xf32>
    %56 = vector.multi_reduction <add>, %55, %cst_25 [1] : vector<8x8xf32> to vector<8xf32>
    %57 = vector.shape_cast %56 : vector<8xf32> to vector<8x1xf32>
    %cst_26 = arith.constant dense<0.000000e+00> : vector<8x8xf32>
    %58 = tpu.matmul %55, %47, %cst_26 {dimension_numbers = #tpu.dot_dimension_numbers<[1], [0], [0], [1], [0, 0, 1, 1], [], []>} : vector<8x8xf32>, vector<8x8xf32>, vector<8x8xf32> -> vector<8x8xf32>
    %cst_27 = arith.constant 1.000000e+00 : f32
    %59 = vector.broadcast %cst_27 : f32 to vector<8x1xf32>
    %60 = arith.divf %59, %57 : vector<8x1xf32>
    %61 = vector.broadcast %60 : vector<8x1xf32> to vector<8x8xf32>
    %62 = arith.mulf %58, %61 : vector<8x8xf32>
    %c0_28 = arith.constant 0 : index
    %c0_29 = arith.constant 0 : index
    %63 = vector.load %arg11[%c0_28, %c0_29] : memref<8x32xf32, #tpu.memory_space<vmem>>, vector<8x8xf32>
    tpu.vector_store %arg11[%c0_28, %c0_29], %62 {strides = array<i32>} : memref<8x32xf32, #tpu.memory_space<vmem>>, vector<8x8xf32>,
    %64 = vector.extract_strided_slice %35 {offsets = [0, 8], sizes = [8, 8], strides = [1, 1]} : vector<8x32xf32> to vector<8x8xf32>
    %65 = vector.extract_strided_slice %36 {offsets = [0, 8], sizes = [8, 8], strides = [1, 1]} : vector<8x32xf32> to vector<8x8xf32>
    %66 = vector.extract_strided_slice %37 {offsets = [0, 8], sizes = [8, 8], strides = [1, 1]} : vector<8x32xf32> to vector<8x8xf32>
    %cst_30 = arith.constant dense<0.000000e+00> : vector<8x8xf32>
    %67 = tpu.matmul %64, %65, %cst_30 {dimension_numbers = #tpu.dot_dimension_numbers<[1], [1], [0], [0], [0, 0, 1, 0], [], []>} : vector<8x8xf32>, vector<8x8xf32>, vector<8x8xf32> -> vector<8x8xf32>
    %68 = vector.broadcast %44 : vector<1x8xf32> to vector<8x8xf32>
    %69 = arith.addf %67, %68 : vector<8x8xf32>
    %cst_31 = arith.constant dense<0xFF800000> : vector<8xf32>
    %70 = vector.multi_reduction <maximumf>, %69, %cst_31 [1] : vector<8x8xf32> to vector<8xf32>
    %71 = vector.shape_cast %70 : vector<8xf32> to vector<8x1xf32>
    %72 = vector.broadcast %71 : vector<8x1xf32> to vector<8x8xf32>
    %73 = arith.subf %69, %72 : vector<8x8xf32>
    %74 = math.exp %73 : vector<8x8xf32>
    %cst_32 = arith.constant dense<0.000000e+00> : vector<8xf32>
    %75 = vector.multi_reduction <add>, %74, %cst_32 [1] : vector<8x8xf32> to vector<8xf32>
    %76 = vector.shape_cast %75 : vector<8xf32> to vector<8x1xf32>
    %cst_33 = arith.constant dense<0.000000e+00> : vector<8x8xf32>
    %77 = tpu.matmul %74, %66, %cst_33 {dimension_numbers = #tpu.dot_dimension_numbers<[1], [0], [0], [1], [0, 0, 1, 1], [], []>} : vector<8x8xf32>, vector<8x8xf32>, vector<8x8xf32> -> vector<8x8xf32>
    %cst_34 = arith.constant 1.000000e+00 : f32
    %78 = vector.broadcast %cst_34 : f32 to vector<8x1xf32>
    %79 = arith.divf %78, %76 : vector<8x1xf32>
    %80 = vector.broadcast %79 : vector<8x1xf32> to vector<8x8xf32>
    %81 = arith.mulf %77, %80 : vector<8x8xf32>
    %c0_35 = arith.constant 0 : index
    %c8 = arith.constant 8 : index
    %82 = vector.load %arg11[%c0_35, %c8] : memref<8x32xf32, #tpu.memory_space<vmem>>, vector<8x8xf32>
    tpu.vector_store %arg11[%c0_35, %c8], %81 {strides = array<i32>} : memref<8x32xf32, #tpu.memory_space<vmem>>, vector<8x8xf32>,
    %83 = vector.extract_strided_slice %35 {offsets = [0, 16], sizes = [8, 8], strides = [1, 1]} : vector<8x32xf32> to vector<8x8xf32>
    %84 = vector.extract_strided_slice %36 {offsets = [0, 16], sizes = [8, 8], strides = [1, 1]} : vector<8x32xf32> to vector<8x8xf32>
    %85 = vector.extract_strided_slice %37 {offsets = [0, 16], sizes = [8, 8], strides = [1, 1]} : vector<8x32xf32> to vector<8x8xf32>
    %cst_36 = arith.constant dense<0.000000e+00> : vector<8x8xf32>
    %86 = tpu.matmul %83, %84, %cst_36 {dimension_numbers = #tpu.dot_dimension_numbers<[1], [1], [0], [0], [0, 0, 1, 0], [], []>} : vector<8x8xf32>, vector<8x8xf32>, vector<8x8xf32> -> vector<8x8xf32>
    %87 = vector.broadcast %44 : vector<1x8xf32> to vector<8x8xf32>
    %88 = arith.addf %86, %87 : vector<8x8xf32>
    %cst_37 = arith.constant dense<0xFF800000> : vector<8xf32>
    %89 = vector.multi_reduction <maximumf>, %88, %cst_37 [1] : vector<8x8xf32> to vector<8xf32>
    %90 = vector.shape_cast %89 : vector<8xf32> to vector<8x1xf32>
    %91 = vector.broadcast %90 : vector<8x1xf32> to vector<8x8xf32>
    %92 = arith.subf %88, %91 : vector<8x8xf32>
    %93 = math.exp %92 : vector<8x8xf32>
    %cst_38 = arith.constant dense<0.000000e+00> : vector<8xf32>
    %94 = vector.multi_reduction <add>, %93, %cst_38 [1] : vector<8x8xf32> to vector<8xf32>
    %95 = vector.shape_cast %94 : vector<8xf32> to vector<8x1xf32>
    %cst_39 = arith.constant dense<0.000000e+00> : vector<8x8xf32>
    %96 = tpu.matmul %93, %85, %cst_39 {dimension_numbers = #tpu.dot_dimension_numbers<[1], [0], [0], [1], [0, 0, 1, 1], [], []>} : vector<8x8xf32>, vector<8x8xf32>, vector<8x8xf32> -> vector<8x8xf32>
    %cst_40 = arith.constant 1.000000e+00 : f32
    %97 = vector.broadcast %cst_40 : f32 to vector<8x1xf32>
    %98 = arith.divf %97, %95 : vector<8x1xf32>
    %99 = vector.broadcast %98 : vector<8x1xf32> to vector<8x8xf32>
    %100 = arith.mulf %96, %99 : vector<8x8xf32>
    %c0_41 = arith.constant 0 : index
    %c16 = arith.constant 16 : index
    %101 = vector.load %arg11[%c0_41, %c16] : memref<8x32xf32, #tpu.memory_space<vmem>>, vector<8x8xf32>
    tpu.vector_store %arg11[%c0_41, %c16], %100 {strides = array<i32>} : memref<8x32xf32, #tpu.memory_space<vmem>>, vector<8x8xf32>,
    %102 = vector.extract_strided_slice %35 {offsets = [0, 24], sizes = [8, 8], strides = [1, 1]} : vector<8x32xf32> to vector<8x8xf32>
    %103 = vector.extract_strided_slice %36 {offsets = [0, 24], sizes = [8, 8], strides = [1, 1]} : vector<8x32xf32> to vector<8x8xf32>
    %104 = vector.extract_strided_slice %37 {offsets = [0, 24], sizes = [8, 8], strides = [1, 1]} : vector<8x32xf32> to vector<8x8xf32>
    %cst_42 = arith.constant dense<0.000000e+00> : vector<8x8xf32>
    %105 = tpu.matmul %102, %103, %cst_42 {dimension_numbers = #tpu.dot_dimension_numbers<[1], [1], [0], [0], [0, 0, 1, 0], [], []>} : vector<8x8xf32>, vector<8x8xf32>, vector<8x8xf32> -> vector<8x8xf32>
    %106 = vector.broadcast %44 : vector<1x8xf32> to vector<8x8xf32>
    %107 = arith.addf %105, %106 : vector<8x8xf32>
    %cst_43 = arith.constant dense<0xFF800000> : vector<8xf32>
    %108 = vector.multi_reduction <maximumf>, %107, %cst_43 [1] : vector<8x8xf32> to vector<8xf32>
    %109 = vector.shape_cast %108 : vector<8xf32> to vector<8x1xf32>
    %110 = vector.broadcast %109 : vector<8x1xf32> to vector<8x8xf32>
    %111 = arith.subf %107, %110 : vector<8x8xf32>
    %112 = math.exp %111 : vector<8x8xf32>
    %cst_44 = arith.constant dense<0.000000e+00> : vector<8xf32>
    %113 = vector.multi_reduction <add>, %112, %cst_44 [1] : vector<8x8xf32> to vector<8xf32>
    %114 = vector.shape_cast %113 : vector<8xf32> to vector<8x1xf32>
    %cst_45 = arith.constant dense<0.000000e+00> : vector<8x8xf32>
    %115 = tpu.matmul %112, %104, %cst_45 {dimension_numbers = #tpu.dot_dimension_numbers<[1], [0], [0], [1], [0, 0, 1, 1], [], []>} : vector<8x8xf32>, vector<8x8xf32>, vector<8x8xf32> -> vector<8x8xf32>
    %cst_46 = arith.constant 1.000000e+00 : f32
    %116 = vector.broadcast %cst_46 : f32 to vector<8x1xf32>
    %117 = arith.divf %116, %114 : vector<8x1xf32>
    %118 = vector.broadcast %117 : vector<8x1xf32> to vector<8x8xf32>
    %119 = arith.mulf %115, %118 : vector<8x8xf32>
    %c0_47 = arith.constant 0 : index
    %c24 = arith.constant 24 : index
    %120 = vector.load %arg11[%c0_47, %c24] : memref<8x32xf32, #tpu.memory_space<vmem>>, vector<8x8xf32>
    tpu.vector_store %arg11[%c0_47, %c24], %119 {strides = array<i32>} : memref<8x32xf32, #tpu.memory_space<vmem>>, vector<8x8xf32>,
    %c0_48 = arith.constant 0 : index
    %c0_49 = arith.constant 0 : index
    %121 = vector.load %arg11[%c0_48, %c0_49] : memref<8x32xf32, #tpu.memory_space<vmem>>, vector<8x32xf32>
    %c0_50 = arith.constant 0 : index
    %c0_51 = arith.constant 0 : index
    %122 = vector.load %arg7[%c0_50, %c0_51] : memref<32x64xf32, #tpu.memory_space<vmem>>, vector<32x64xf32>
    %cst_52 = arith.constant dense<0.000000e+00> : vector<8x64xf32>
    %123 = tpu.matmul %121, %122, %cst_52 {dimension_numbers = #tpu.dot_dimension_numbers<[1], [0], [0], [1], [0, 0, 1, 1], [], []>} : vector<8x32xf32>, vector<32x64xf32>, vector<8x64xf32> -> vector<8x64xf32>
    %c0_53 = arith.constant 0 : index
    %c0_54 = arith.constant 0 : index
    %124 = vector.load %arg8[%c0_53, %c0_54] : memref<32x64xf32, #tpu.memory_space<vmem>>, vector<32x64xf32>
    %cst_55 = arith.constant dense<0.000000e+00> : vector<8x64xf32>
    %125 = tpu.matmul %27, %124, %cst_55 {dimension_numbers = #tpu.dot_dimension_numbers<[1], [0], [0], [1], [0, 0, 1, 1], [], []>} : vector<8x32xf32>, vector<32x64xf32>, vector<8x64xf32> -> vector<8x64xf32>
    %126 = arith.addf %123, %125 : vector<8x64xf32>
    %c0_56 = arith.constant 0 : index
    %c0_57 = arith.constant 0 : index
    %127 = vector.load %arg9[%c0_56, %c0_57] : memref<1x64xf32, #tpu.memory_space<vmem>>, vector<1x64xf32>
    %128 = vector.broadcast %127 : vector<1x64xf32> to vector<8x64xf32>
    %129 = arith.addf %126, %128 : vector<8x64xf32>
    %130 = vector.extract_strided_slice %129 {offsets = [0, 0], sizes = [8, 32], strides = [1, 1]} : vector<8x64xf32> to vector<8x32xf32>
    %131 = vector.extract_strided_slice %129 {offsets = [0, 32], sizes = [8, 32], strides = [1, 1]} : vector<8x64xf32> to vector<8x32xf32>
    %132 = arith.negf %131 : vector<8x32xf32>
    %133 = math.exp %132 : vector<8x32xf32>
    %cst_58 = arith.constant 1.000000e+00 : f32
    %134 = vector.broadcast %cst_58 : f32 to vector<8x32xf32>
    %135 = arith.addf %134, %133 : vector<8x32xf32>
    %136 = arith.divf %134, %135 : vector<8x32xf32>
    %137 = arith.mulf %130, %136 : vector<8x32xf32>
    %138 = arith.addf %1, %137 : vector<8x32xf32>
    %c0_59 = arith.constant 0 : index
    %c0_60 = arith.constant 0 : index
    %c0_61 = arith.constant 0 : index
    %139 = vector.load %arg10[%c0_59, %c0_60, %c0_61] : memref<1x8x32xf32, #tpu.memory_space<vmem>>, vector<1x8x32xf32>
    %140 = vector.shape_cast %139 : vector<1x8x32xf32> to vector<8x32xf32>
    %141 = vector.shape_cast %138 : vector<8x32xf32> to vector<1x8x32xf32>
    tpu.vector_store %arg10[%c0_59, %c0_60, %c0_61], %141 {strides = array<i32>} : memref<1x8x32xf32, #tpu.memory_space<vmem>>, vector<1x8x32xf32>,
    return
  }
  func.func @transform_0(%arg0: i32) -> (i32, i32, i32) {
    %c0_i32 = arith.constant 0 : i32
    %c0_i32_0 = arith.constant 0 : i32
    %c0_i32_1 = arith.constant 0 : i32
    return %arg0, %c0_i32, %c0_i32_0 : i32, i32, i32
  }
  func.func @transform_1(%arg0: i32) -> (i32, i32, i32) {
    %c0_i32 = arith.constant 0 : i32
    %c0_i32_0 = arith.constant 0 : i32
    %c0_i32_1 = arith.constant 0 : i32
    return %arg0, %c0_i32, %c0_i32_0 : i32, i32, i32
  }
  func.func @transform_2(%arg0: i32) -> (i32, i32) {
    %c0_i32 = arith.constant 0 : i32
    %c0_i32_0 = arith.constant 0 : i32
    %c0_i32_1 = arith.constant 0 : i32
    return %c0_i32, %c0_i32_0 : i32, i32
  }
  func.func @transform_3(%arg0: i32) -> (i32, i32) {
    %c0_i32 = arith.constant 0 : i32
    %c0_i32_0 = arith.constant 0 : i32
    %c0_i32_1 = arith.constant 0 : i32
    return %c0_i32, %c0_i32_0 : i32, i32
  }
  func.func @transform_4(%arg0: i32) -> (i32, i32) {
    %c0_i32 = arith.constant 0 : i32
    %c0_i32_0 = arith.constant 0 : i32
    %c0_i32_1 = arith.constant 0 : i32
    return %c0_i32, %c0_i32_0 : i32, i32
  }
  func.func @transform_5(%arg0: i32) -> (i32, i32) {
    %c0_i32 = arith.constant 0 : i32
    %c0_i32_0 = arith.constant 0 : i32
    %c0_i32_1 = arith.constant 0 : i32
    return %c0_i32, %c0_i32_0 : i32, i32
  }
  func.func @transform_6(%arg0: i32) -> (i32, i32) {
    %c0_i32 = arith.constant 0 : i32
    %c0_i32_0 = arith.constant 0 : i32
    %c0_i32_1 = arith.constant 0 : i32
    return %c0_i32, %c0_i32_0 : i32, i32
  }
  func.func @transform_7(%arg0: i32) -> (i32, i32) {
    %c1_i32 = arith.constant 1 : i32
    %c0_i32 = arith.constant 0 : i32
    %c0_i32_0 = arith.constant 0 : i32
    return %c1_i32, %c0_i32 : i32, i32
  }
  func.func @transform_8(%arg0: i32) -> (i32, i32) {
    %c0_i32 = arith.constant 0 : i32
    %c0_i32_0 = arith.constant 0 : i32
    %c0_i32_1 = arith.constant 0 : i32
    return %c0_i32, %c0_i32_0 : i32, i32
  }
  func.func @transform_9(%arg0: i32) -> (i32, i32, i32) {
    %c0_i32 = arith.constant 0 : i32
    %c0_i32_0 = arith.constant 0 : i32
    %c0_i32_1 = arith.constant 0 : i32
    return %arg0, %c0_i32, %c0_i32_0 : i32, i32, i32
  }
}

module attributes {stable_mosaic.version = 11 : i64} {
  func.func @_attn_aoa_kernel(%arg0: i32, %arg1: memref<1x8x32xf32, #tpu.memory_space<vmem>>, %arg2: memref<1x1x8xf32, #tpu.memory_space<vmem>>, %arg3: memref<1x32xf32, #tpu.memory_space<vmem>>, %arg4: memref<1x32xf32, #tpu.memory_space<vmem>>, %arg5: memref<32x96xf32, #tpu.memory_space<vmem>>, %arg6: memref<1x96xf32, #tpu.memory_space<vmem>>, %arg7: memref<32x64xf32, #tpu.memory_space<vmem>>, %arg8: memref<32x64xf32, #tpu.memory_space<vmem>>, %arg9: memref<1x64xf32, #tpu.memory_space<vmem>>, %arg10: memref<1x8x32xf32, #tpu.memory_space<vmem>>, %arg11: memref<8x32xf32, #tpu.memory_space<vmem>>) attributes {dimension_semantics = [#tpu.dimension_semantics<parallel>], iteration_bounds = array<i64: 2>, scalar_prefetch = 0 : i64, scratch_operands = 1 : i64, tpu.core_type = #tpu.core_type<tc>, window_params = [{transform_indices = @transform_0, window_bounds = array<i64: 1, 8, 32>}, {transform_indices = @transform_1, window_bounds = array<i64: 1, 1, 8>}, {pipeline_mode = #tpu.pipeline_mode<synchronous>, transform_indices = @transform_2, window_bounds = array<i64: 1, 32>}, {pipeline_mode = #tpu.pipeline_mode<synchronous>, transform_indices = @transform_3, window_bounds = array<i64: 1, 32>}, {pipeline_mode = #tpu.pipeline_mode<synchronous>, transform_indices = @transform_4, window_bounds = array<i64: 32, 96>}, {pipeline_mode = #tpu.pipeline_mode<synchronous>, transform_indices = @transform_5, window_bounds = array<i64: 1, 96>}, {pipeline_mode = #tpu.pipeline_mode<synchronous>, transform_indices = @transform_6, window_bounds = array<i64: 32, 64>}, {pipeline_mode = #tpu.pipeline_mode<synchronous>, transform_indices = @transform_7, window_bounds = array<i64: 32, 64>}, {pipeline_mode = #tpu.pipeline_mode<synchronous>, transform_indices = @transform_8, window_bounds = array<i64: 1, 64>}, {transform_indices = @transform_9, window_bounds = array<i64: 1, 8, 32>}]} {
    %c0 = arith.constant 0 : index
    %c0_0 = arith.constant 0 : index
    %c0_1 = arith.constant 0 : index
    %0 = vector.load %arg1[%c0, %c0_0, %c0_1] : memref<1x8x32xf32, #tpu.memory_space<vmem>>, vector<1x8x32xf32>
    %1 = vector.shape_cast %0 : vector<1x8x32xf32> to vector<8x32xf32>
    %cst = arith.constant dense<0.000000e+00> : vector<8xf32>
    %2 = vector.multi_reduction <add>, %1, %cst [1] : vector<8x32xf32> to vector<8xf32>
    %3 = vector.shape_cast %2 : vector<8xf32> to vector<8x1xf32>
    %4 = arith.mulf %1, %1 : vector<8x32xf32>
    %cst_2 = arith.constant dense<0.000000e+00> : vector<8xf32>
    %5 = vector.multi_reduction <add>, %4, %cst_2 [1] : vector<8x32xf32> to vector<8xf32>
    %6 = vector.shape_cast %5 : vector<8xf32> to vector<8x1xf32>
    %cst_3 = arith.constant 3.125000e-02 : f32
    %7 = vector.broadcast %cst_3 : f32 to vector<8x1xf32>
    %8 = arith.mulf %3, %7 : vector<8x1xf32>
    %cst_4 = arith.constant 3.125000e-02 : f32
    %9 = vector.broadcast %cst_4 : f32 to vector<8x1xf32>
    %10 = arith.mulf %6, %9 : vector<8x1xf32>
    %11 = arith.mulf %8, %8 : vector<8x1xf32>
    %12 = arith.subf %10, %11 : vector<8x1xf32>
    %cst_5 = arith.constant 0.000000e+00 : f32
    %13 = vector.broadcast %cst_5 : f32 to vector<8x1xf32>
    %14 = arith.maximumf %12, %13 : vector<8x1xf32>
    %15 = vector.broadcast %8 : vector<8x1xf32> to vector<8x32xf32>
    %16 = arith.subf %1, %15 : vector<8x32xf32>
    %cst_6 = arith.constant 9.99999996E-13 : f32
    %17 = vector.broadcast %cst_6 : f32 to vector<8x1xf32>
    %18 = arith.addf %14, %17 : vector<8x1xf32>
    %19 = math.rsqrt %18 : vector<8x1xf32>
    %20 = vector.broadcast %19 : vector<8x1xf32> to vector<8x32xf32>
    %21 = arith.mulf %16, %20 : vector<8x32xf32>
    %c0_7 = arith.constant 0 : index
    %c0_8 = arith.constant 0 : index
    %22 = vector.load %arg3[%c0_7, %c0_8] : memref<1x32xf32, #tpu.memory_space<vmem>>, vector<1x32xf32>
    %23 = vector.broadcast %22 : vector<1x32xf32> to vector<8x32xf32>
    %24 = arith.mulf %21, %23 : vector<8x32xf32>
    %c0_9 = arith.constant 0 : index
    %c0_10 = arith.constant 0 : index
    %25 = vector.load %arg4[%c0_9, %c0_10] : memref<1x32xf32, #tpu.memory_space<vmem>>, vector<1x32xf32>
    %26 = vector.broadcast %25 : vector<1x32xf32> to vector<8x32xf32>
    %27 = arith.addf %24, %26 : vector<8x32xf32>
    %c0_11 = arith.constant 0 : index
    %c0_12 = arith.constant 0 : index
    %28 = vector.load %arg5[%c0_11, %c0_12] : memref<32x96xf32, #tpu.memory_space<vmem>>, vector<32x96xf32>
    %cst_13 = arith.constant dense<0.000000e+00> : vector<8x96xf32>
    %29 = tpu.matmul %27, %28, %cst_13 {dimension_numbers = #tpu.dot_dimension_numbers<[1], [0], [0], [1], [0, 0, 1, 1], [], []>} : vector<8x32xf32>, vector<32x96xf32>, vector<8x96xf32> -> vector<8x96xf32>
    %c0_14 = arith.constant 0 : index
    %c0_15 = arith.constant 0 : index
    %30 = vector.load %arg6[%c0_14, %c0_15] : memref<1x96xf32, #tpu.memory_space<vmem>>, vector<1x96xf32>
    %31 = vector.broadcast %30 : vector<1x96xf32> to vector<8x96xf32>
    %32 = arith.addf %29, %31 : vector<8x96xf32>
    %33 = vector.extract_strided_slice %32 {offsets = [0, 0], sizes = [8, 32], strides = [1, 1]} : vector<8x96xf32> to vector<8x32xf32>
    %cst_16 = arith.constant 0.353553385 : f32
    %34 = vector.broadcast %cst_16 : f32 to vector<8x32xf32>
    %35 = arith.mulf %33, %34 : vector<8x32xf32>
    %36 = vector.extract_strided_slice %32 {offsets = [0, 32], sizes = [8, 32], strides = [1, 1]} : vector<8x96xf32> to vector<8x32xf32>
    %37 = vector.extract_strided_slice %32 {offsets = [0, 64], sizes = [8, 32], strides = [1, 1]} : vector<8x96xf32> to vector<8x32xf32>
    %c0_17 = arith.constant 0 : index
    %c0_18 = arith.constant 0 : index
    %c0_19 = arith.constant 0 : index
    %38 = vector.load %arg2[%c0_17, %c0_18, %c0_19] : memref<1x1x8xf32, #tpu.memory_space<vmem>>, vector<1x1x8xf32>
    %39 = vector.shape_cast %38 : vector<1x1x8xf32> to vector<1x8xf32>
    %cst_20 = arith.constant 0.000000e+00 : f32
    %40 = vector.broadcast %cst_20 : f32 to vector<1x8xf32>
    %41 = arith.cmpf one, %39, %40 : vector<1x8xf32>
    %cst_21 = arith.constant 0.000000e+00 : f32
    %cst_22 = arith.constant -1.000000e+30 : f32
    %42 = vector.broadcast %cst_21 : f32 to vector<1x8xf32>
    %43 = vector.broadcast %cst_22 : f32 to vector<1x8xf32>
    %44 = arith.select %41, %42, %43 : vector<1x8xi1>, vector<1x8xf32>
    %45 = vector.extract_strided_slice %35 {offsets = [0, 0], sizes = [8, 8], strides = [1, 1]} : vector<8x32xf32> to vector<8x8xf32>
    %46 = vector.extract_strided_slice %36 {offsets = [0, 0], sizes = [8, 8], strides = [1, 1]} : vector<8x32xf32> to vector<8x8xf32>
    %47 = vector.extract_strided_slice %37 {offsets = [0, 0], sizes = [8, 8], strides = [1, 1]} : vector<8x32xf32> to vector<8x8xf32>
    %cst_23 = arith.constant dense<0.000000e+00> : vector<8x8xf32>
    %48 = tpu.matmul %45, %46, %cst_23 {dimension_numbers = #tpu.dot_dimension_numbers<[1], [1], [0], [0], [0, 0, 1, 0], [], []>} : vector<8x8xf32>, vector<8x8xf32>, vector<8x8xf32> -> vector<8x8xf32>
    %49 = vector.broadcast %44 : vector<1x8xf32> to vector<8x8xf32>
    %50 = arith.addf %48, %49 : vector<8x8xf32>
    %cst_24 = arith.constant dense<0xFF800000> : vector<8xf32>
    %51 = vector.multi_reduction <maximumf>, %50, %cst_24 [1] : vector<8x8xf32> to vector<8xf32>
    %52 = vector.shape_cast %51 : vector<8xf32> to vector<8x1xf32>
    %53 = vector.broadcast %52 : vector<8x1xf32> to vector<8x8xf32>
    %54 = arith.subf %50, %53 : vector<8x8xf32>
    %55 = math.exp %54 : vector<8x8xf32>
    %cst_25 = arith.constant dense<0.000000e+00> : vector<8xf32>
    %56 = vector.multi_reduction <add>, %55, %cst_25 [1] : vector<8x8xf32> to vector<8xf32>
    %57 = vector.shape_cast %56 : vector<8xf32> to vector<8x1xf32>
    %cst_26 = arith.constant dense<0.000000e+00> : vector<8x8xf32>
    %58 = tpu.matmul %55, %47, %cst_26 {dimension_numbers = #tpu.dot_dimension_numbers<[1], [0], [0], [1], [0, 0, 1, 1], [], []>} : vector<8x8xf32>, vector<8x8xf32>, vector<8x8xf32> -> vector<8x8xf32>
    %cst_27 = arith.constant 1.000000e+00 : f32
    %59 = vector.broadcast %cst_27 : f32 to vector<8x1xf32>
    %60 = arith.divf %59, %57 : vector<8x1xf32>
    %61 = vector.broadcast %60 : vector<8x1xf32> to vector<8x8xf32>
    %62 = arith.mulf %58, %61 : vector<8x8xf32>
    %c0_28 = arith.constant 0 : index
    %c0_29 = arith.constant 0 : index
    %63 = vector.load %arg11[%c0_28, %c0_29] : memref<8x32xf32, #tpu.memory_space<vmem>>, vector<8x8xf32>
    tpu.vector_store %arg11[%c0_28, %c0_29], %62 {strides = array<i32>} : memref<8x32xf32, #tpu.memory_space<vmem>>, vector<8x8xf32>,
    %64 = vector.extract_strided_slice %35 {offsets = [0, 8], sizes = [8, 8], strides = [1, 1]} : vector<8x32xf32> to vector<8x8xf32>
    %65 = vector.extract_strided_slice %36 {offsets = [0, 8], sizes = [8, 8], strides = [1, 1]} : vector<8x32xf32> to vector<8x8xf32>
    %66 = vector.extract_strided_slice %37 {offsets = [0, 8], sizes = [8, 8], strides = [1, 1]} : vector<8x32xf32> to vector<8x8xf32>
    %cst_30 = arith.constant dense<0.000000e+00> : vector<8x8xf32>
    %67 = tpu.matmul %64, %65, %cst_30 {dimension_numbers = #tpu.dot_dimension_numbers<[1], [1], [0], [0], [0, 0, 1, 0], [], []>} : vector<8x8xf32>, vector<8x8xf32>, vector<8x8xf32> -> vector<8x8xf32>
    %68 = vector.broadcast %44 : vector<1x8xf32> to vector<8x8xf32>
    %69 = arith.addf %67, %68 : vector<8x8xf32>
    %cst_31 = arith.constant dense<0xFF800000> : vector<8xf32>
    %70 = vector.multi_reduction <maximumf>, %69, %cst_31 [1] : vector<8x8xf32> to vector<8xf32>
    %71 = vector.shape_cast %70 : vector<8xf32> to vector<8x1xf32>
    %72 = vector.broadcast %71 : vector<8x1xf32> to vector<8x8xf32>
    %73 = arith.subf %69, %72 : vector<8x8xf32>
    %74 = math.exp %73 : vector<8x8xf32>
    %cst_32 = arith.constant dense<0.000000e+00> : vector<8xf32>
    %75 = vector.multi_reduction <add>, %74, %cst_32 [1] : vector<8x8xf32> to vector<8xf32>
    %76 = vector.shape_cast %75 : vector<8xf32> to vector<8x1xf32>
    %cst_33 = arith.constant dense<0.000000e+00> : vector<8x8xf32>
    %77 = tpu.matmul %74, %66, %cst_33 {dimension_numbers = #tpu.dot_dimension_numbers<[1], [0], [0], [1], [0, 0, 1, 1], [], []>} : vector<8x8xf32>, vector<8x8xf32>, vector<8x8xf32> -> vector<8x8xf32>
    %cst_34 = arith.constant 1.000000e+00 : f32
    %78 = vector.broadcast %cst_34 : f32 to vector<8x1xf32>
    %79 = arith.divf %78, %76 : vector<8x1xf32>
    %80 = vector.broadcast %79 : vector<8x1xf32> to vector<8x8xf32>
    %81 = arith.mulf %77, %80 : vector<8x8xf32>
    %c0_35 = arith.constant 0 : index
    %c8 = arith.constant 8 : index
    %82 = vector.load %arg11[%c0_35, %c8] : memref<8x32xf32, #tpu.memory_space<vmem>>, vector<8x8xf32>
    tpu.vector_store %arg11[%c0_35, %c8], %81 {strides = array<i32>} : memref<8x32xf32, #tpu.memory_space<vmem>>, vector<8x8xf32>,
    %83 = vector.extract_strided_slice %35 {offsets = [0, 16], sizes = [8, 8], strides = [1, 1]} : vector<8x32xf32> to vector<8x8xf32>
    %84 = vector.extract_strided_slice %36 {offsets = [0, 16], sizes = [8, 8], strides = [1, 1]} : vector<8x32xf32> to vector<8x8xf32>
    %85 = vector.extract_strided_slice %37 {offsets = [0, 16], sizes = [8, 8], strides = [1, 1]} : vector<8x32xf32> to vector<8x8xf32>
    %cst_36 = arith.constant dense<0.000000e+00> : vector<8x8xf32>
    %86 = tpu.matmul %83, %84, %cst_36 {dimension_numbers = #tpu.dot_dimension_numbers<[1], [1], [0], [0], [0, 0, 1, 0], [], []>} : vector<8x8xf32>, vector<8x8xf32>, vector<8x8xf32> -> vector<8x8xf32>
    %87 = vector.broadcast %44 : vector<1x8xf32> to vector<8x8xf32>
    %88 = arith.addf %86, %87 : vector<8x8xf32>
    %cst_37 = arith.constant dense<0xFF800000> : vector<8xf32>
    %89 = vector.multi_reduction <maximumf>, %88, %cst_37 [1] : vector<8x8xf32> to vector<8xf32>
    %90 = vector.shape_cast %89 : vector<8xf32> to vector<8x1xf32>
    %91 = vector.broadcast %90 : vector<8x1xf32> to vector<8x8xf32>
    %92 = arith.subf %88, %91 : vector<8x8xf32>
    %93 = math.exp %92 : vector<8x8xf32>
    %cst_38 = arith.constant dense<0.000000e+00> : vector<8xf32>
    %94 = vector.multi_reduction <add>, %93, %cst_38 [1] : vector<8x8xf32> to vector<8xf32>
    %95 = vector.shape_cast %94 : vector<8xf32> to vector<8x1xf32>
    %cst_39 = arith.constant dense<0.000000e+00> : vector<8x8xf32>
    %96 = tpu.matmul %93, %85, %cst_39 {dimension_numbers = #tpu.dot_dimension_numbers<[1], [0], [0], [1], [0, 0, 1, 1], [], []>} : vector<8x8xf32>, vector<8x8xf32>, vector<8x8xf32> -> vector<8x8xf32>
    %cst_40 = arith.constant 1.000000e+00 : f32
    %97 = vector.broadcast %cst_40 : f32 to vector<8x1xf32>
    %98 = arith.divf %97, %95 : vector<8x1xf32>
    %99 = vector.broadcast %98 : vector<8x1xf32> to vector<8x8xf32>
    %100 = arith.mulf %96, %99 : vector<8x8xf32>
    %c0_41 = arith.constant 0 : index
    %c16 = arith.constant 16 : index
    %101 = vector.load %arg11[%c0_41, %c16] : memref<8x32xf32, #tpu.memory_space<vmem>>, vector<8x8xf32>
    tpu.vector_store %arg11[%c0_41, %c16], %100 {strides = array<i32>} : memref<8x32xf32, #tpu.memory_space<vmem>>, vector<8x8xf32>,
    %102 = vector.extract_strided_slice %35 {offsets = [0, 24], sizes = [8, 8], strides = [1, 1]} : vector<8x32xf32> to vector<8x8xf32>
    %103 = vector.extract_strided_slice %36 {offsets = [0, 24], sizes = [8, 8], strides = [1, 1]} : vector<8x32xf32> to vector<8x8xf32>
    %104 = vector.extract_strided_slice %37 {offsets = [0, 24], sizes = [8, 8], strides = [1, 1]} : vector<8x32xf32> to vector<8x8xf32>
    %cst_42 = arith.constant dense<0.000000e+00> : vector<8x8xf32>
    %105 = tpu.matmul %102, %103, %cst_42 {dimension_numbers = #tpu.dot_dimension_numbers<[1], [1], [0], [0], [0, 0, 1, 0], [], []>} : vector<8x8xf32>, vector<8x8xf32>, vector<8x8xf32> -> vector<8x8xf32>
    %106 = vector.broadcast %44 : vector<1x8xf32> to vector<8x8xf32>
    %107 = arith.addf %105, %106 : vector<8x8xf32>
    %cst_43 = arith.constant dense<0xFF800000> : vector<8xf32>
    %108 = vector.multi_reduction <maximumf>, %107, %cst_43 [1] : vector<8x8xf32> to vector<8xf32>
    %109 = vector.shape_cast %108 : vector<8xf32> to vector<8x1xf32>
    %110 = vector.broadcast %109 : vector<8x1xf32> to vector<8x8xf32>
    %111 = arith.subf %107, %110 : vector<8x8xf32>
    %112 = math.exp %111 : vector<8x8xf32>
    %cst_44 = arith.constant dense<0.000000e+00> : vector<8xf32>
    %113 = vector.multi_reduction <add>, %112, %cst_44 [1] : vector<8x8xf32> to vector<8xf32>
    %114 = vector.shape_cast %113 : vector<8xf32> to vector<8x1xf32>
    %cst_45 = arith.constant dense<0.000000e+00> : vector<8x8xf32>
    %115 = tpu.matmul %112, %104, %cst_45 {dimension_numbers = #tpu.dot_dimension_numbers<[1], [0], [0], [1], [0, 0, 1, 1], [], []>} : vector<8x8xf32>, vector<8x8xf32>, vector<8x8xf32> -> vector<8x8xf32>
    %cst_46 = arith.constant 1.000000e+00 : f32
    %116 = vector.broadcast %cst_46 : f32 to vector<8x1xf32>
    %117 = arith.divf %116, %114 : vector<8x1xf32>
    %118 = vector.broadcast %117 : vector<8x1xf32> to vector<8x8xf32>
    %119 = arith.mulf %115, %118 : vector<8x8xf32>
    %c0_47 = arith.constant 0 : index
    %c24 = arith.constant 24 : index
    %120 = vector.load %arg11[%c0_47, %c24] : memref<8x32xf32, #tpu.memory_space<vmem>>, vector<8x8xf32>
    tpu.vector_store %arg11[%c0_47, %c24], %119 {strides = array<i32>} : memref<8x32xf32, #tpu.memory_space<vmem>>, vector<8x8xf32>,
    %c0_48 = arith.constant 0 : index
    %c0_49 = arith.constant 0 : index
    %121 = vector.load %arg11[%c0_48, %c0_49] : memref<8x32xf32, #tpu.memory_space<vmem>>, vector<8x32xf32>
    %c0_50 = arith.constant 0 : index
    %c0_51 = arith.constant 0 : index
    %122 = vector.load %arg7[%c0_50, %c0_51] : memref<32x64xf32, #tpu.memory_space<vmem>>, vector<32x64xf32>
    %cst_52 = arith.constant dense<0.000000e+00> : vector<8x64xf32>
    %123 = tpu.matmul %121, %122, %cst_52 {dimension_numbers = #tpu.dot_dimension_numbers<[1], [0], [0], [1], [0, 0, 1, 1], [], []>} : vector<8x32xf32>, vector<32x64xf32>, vector<8x64xf32> -> vector<8x64xf32>
    %c0_53 = arith.constant 0 : index
    %c0_54 = arith.constant 0 : index
    %124 = vector.load %arg8[%c0_53, %c0_54] : memref<32x64xf32, #tpu.memory_space<vmem>>, vector<32x64xf32>
    %cst_55 = arith.constant dense<0.000000e+00> : vector<8x64xf32>
    %125 = tpu.matmul %27, %124, %cst_55 {dimension_numbers = #tpu.dot_dimension_numbers<[1], [0], [0], [1], [0, 0, 1, 1], [], []>} : vector<8x32xf32>, vector<32x64xf32>, vector<8x64xf32> -> vector<8x64xf32>
    %126 = arith.addf %123, %125 : vector<8x64xf32>
    %c0_56 = arith.constant 0 : index
    %c0_57 = arith.constant 0 : index
    %127 = vector.load %arg9[%c0_56, %c0_57] : memref<1x64xf32, #tpu.memory_space<vmem>>, vector<1x64xf32>
    %128 = vector.broadcast %127 : vector<1x64xf32> to vector<8x64xf32>
    %129 = arith.addf %126, %128 : vector<8x64xf32>
    %130 = vector.extract_strided_slice %129 {offsets = [0, 0], sizes = [8, 32], strides = [1, 1]} : vector<8x64xf32> to vector<8x32xf32>
    %131 = vector.extract_strided_slice %129 {offsets = [0, 32], sizes = [8, 32], strides = [1, 1]} : vector<8x64xf32> to vector<8x32xf32>
    %132 = arith.negf %131 : vector<8x32xf32>
    %133 = math.exp %132 : vector<8x32xf32>
    %cst_58 = arith.constant 1.000000e+00 : f32
    %134 = vector.broadcast %cst_58 : f32 to vector<8x32xf32>
    %135 = arith.addf %134, %133 : vector<8x32xf32>
    %136 = arith.divf %134, %135 : vector<8x32xf32>
    %137 = arith.mulf %130, %136 : vector<8x32xf32>
    %138 = arith.addf %1, %137 : vector<8x32xf32>
    %c0_59 = arith.constant 0 : index
    %c0_60 = arith.constant 0 : index
    %c0_61 = arith.constant 0 : index
    %139 = vector.load %arg10[%c0_59, %c0_60, %c0_61] : memref<1x8x32xf32, #tpu.memory_space<vmem>>, vector<1x8x32xf32>
    %140 = vector.shape_cast %139 : vector<1x8x32xf32> to vector<8x32xf32>
    %141 = vector.shape_cast %138 : vector<8x32xf32> to vector<1x8x32xf32>
    tpu.vector_store %arg10[%c0_59, %c0_60, %c0_61], %141 {strides = array<i32>} : memref<1x8x32xf32, #tpu.memory_space<vmem>>, vector<1x8x32xf32>,
    return
  }
  func.func @transform_0(%arg0: i32) -> (i32, i32, i32) {
    %c0_i32 = arith.constant 0 : i32
    %c0_i32_0 = arith.constant 0 : i32
    %c0_i32_1 = arith.constant 0 : i32
    return %arg0, %c0_i32, %c0_i32_0 : i32, i32, i32
  }
  func.func @transform_1(%arg0: i32) -> (i32, i32, i32) {
    %c0_i32 = arith.constant 0 : i32
    %c0_i32_0 = arith.constant 0 : i32
    %c0_i32_1 = arith.constant 0 : i32
    return %arg0, %c0_i32, %c0_i32_0 : i32, i32, i32
  }
  func.func @transform_2(%arg0: i32) -> (i32, i32) {
    %c0_i32 = arith.constant 0 : i32
    %c0_i32_0 = arith.constant 0 : i32
    %c0_i32_1 = arith.constant 0 : i32
    return %c0_i32, %c0_i32_0 : i32, i32
  }
  func.func @transform_3(%arg0: i32) -> (i32, i32) {
    %c0_i32 = arith.constant 0 : i32
    %c0_i32_0 = arith.constant 0 : i32
    %c0_i32_1 = arith.constant 0 : i32
    return %c0_i32, %c0_i32_0 : i32, i32
  }
  func.func @transform_4(%arg0: i32) -> (i32, i32) {
    %c0_i32 = arith.constant 0 : i32
    %c0_i32_0 = arith.constant 0 : i32
    %c0_i32_1 = arith.constant 0 : i32
    return %c0_i32, %c0_i32_0 : i32, i32
  }
  func.func @transform_5(%arg0: i32) -> (i32, i32) {
    %c0_i32 = arith.constant 0 : i32
    %c0_i32_0 = arith.constant 0 : i32
    %c0_i32_1 = arith.constant 0 : i32
    return %c0_i32, %c0_i32_0 : i32, i32
  }
  func.func @transform_6(%arg0: i32) -> (i32, i32) {
    %c0_i32 = arith.constant 0 : i32
    %c0_i32_0 = arith.constant 0 : i32
    %c0_i32_1 = arith.constant 0 : i32
    return %c0_i32, %c0_i32_0 : i32, i32
  }
  func.func @transform_7(%arg0: i32) -> (i32, i32) {
    %c1_i32 = arith.constant 1 : i32
    %c0_i32 = arith.constant 0 : i32
    %c0_i32_0 = arith.constant 0 : i32
    return %c1_i32, %c0_i32 : i32, i32
  }
  func.func @transform_8(%arg0: i32) -> (i32, i32) {
    %c0_i32 = arith.constant 0 : i32
    %c0_i32_0 = arith.constant 0 : i32
    %c0_i32_1 = arith.constant 0 : i32
    return %c0_i32, %c0_i32_0 : i32, i32
  }
  func.func @transform_9(%arg0: i32) -> (i32, i32, i32) {
    %c0_i32 = arith.constant 0 : i32
    %c0_i32_0 = arith.constant 0 : i32
    %c0_i32_1 = arith.constant 0 : i32
    return %arg0, %c0_i32, %c0_i32_0 : i32, i32, i32
  }
}

module attributes {stable_mosaic.version = 11 : i64} {
  func.func @_ffn_final_ln_kernel(%arg0: i32, %arg1: memref<16x32xf32, #tpu.memory_space<vmem>>, %arg2: memref<1x32xf32, #tpu.memory_space<vmem>>, %arg3: memref<1x32xf32, #tpu.memory_space<vmem>>, %arg4: memref<32x64xf32, #tpu.memory_space<vmem>>, %arg5: memref<1x64xf32, #tpu.memory_space<vmem>>, %arg6: memref<64x32xf32, #tpu.memory_space<vmem>>, %arg7: memref<1x32xf32, #tpu.memory_space<vmem>>, %arg8: memref<1x32xf32, #tpu.memory_space<vmem>>, %arg9: memref<1x32xf32, #tpu.memory_space<vmem>>, %arg10: memref<16x32xf32, #tpu.memory_space<vmem>>) attributes {dimension_semantics = [#tpu.dimension_semantics<parallel>], iteration_bounds = array<i64: 1>, scalar_prefetch = 0 : i64, scratch_operands = 0 : i64, tpu.core_type = #tpu.core_type<tc>, window_params = [{transform_indices = @transform_0, window_bounds = array<i64: 16, 32>}, {pipeline_mode = #tpu.pipeline_mode<synchronous>, transform_indices = @transform_1, window_bounds = array<i64: 1, 32>}, {pipeline_mode = #tpu.pipeline_mode<synchronous>, transform_indices = @transform_2, window_bounds = array<i64: 1, 32>}, {pipeline_mode = #tpu.pipeline_mode<synchronous>, transform_indices = @transform_3, window_bounds = array<i64: 32, 64>}, {pipeline_mode = #tpu.pipeline_mode<synchronous>, transform_indices = @transform_4, window_bounds = array<i64: 1, 64>}, {pipeline_mode = #tpu.pipeline_mode<synchronous>, transform_indices = @transform_5, window_bounds = array<i64: 64, 32>}, {pipeline_mode = #tpu.pipeline_mode<synchronous>, transform_indices = @transform_6, window_bounds = array<i64: 1, 32>}, {pipeline_mode = #tpu.pipeline_mode<synchronous>, transform_indices = @transform_7, window_bounds = array<i64: 1, 32>}, {pipeline_mode = #tpu.pipeline_mode<synchronous>, transform_indices = @transform_8, window_bounds = array<i64: 1, 32>}, {transform_indices = @transform_9, window_bounds = array<i64: 16, 32>}]} {
    %c0 = arith.constant 0 : index
    %c0_0 = arith.constant 0 : index
    %0 = vector.load %arg1[%c0, %c0_0] : memref<16x32xf32, #tpu.memory_space<vmem>>, vector<16x32xf32>
    %cst = arith.constant dense<0.000000e+00> : vector<16xf32>
    %1 = vector.multi_reduction <add>, %0, %cst [1] : vector<16x32xf32> to vector<16xf32>
    %2 = vector.shape_cast %1 : vector<16xf32> to vector<16x1xf32>
    %3 = arith.mulf %0, %0 : vector<16x32xf32>
    %cst_1 = arith.constant dense<0.000000e+00> : vector<16xf32>
    %4 = vector.multi_reduction <add>, %3, %cst_1 [1] : vector<16x32xf32> to vector<16xf32>
    %5 = vector.shape_cast %4 : vector<16xf32> to vector<16x1xf32>
    %cst_2 = arith.constant 3.125000e-02 : f32
    %6 = vector.broadcast %cst_2 : f32 to vector<16x1xf32>
    %7 = arith.mulf %2, %6 : vector<16x1xf32>
    %cst_3 = arith.constant 3.125000e-02 : f32
    %8 = vector.broadcast %cst_3 : f32 to vector<16x1xf32>
    %9 = arith.mulf %5, %8 : vector<16x1xf32>
    %10 = arith.mulf %7, %7 : vector<16x1xf32>
    %11 = arith.subf %9, %10 : vector<16x1xf32>
    %cst_4 = arith.constant 0.000000e+00 : f32
    %12 = vector.broadcast %cst_4 : f32 to vector<16x1xf32>
    %13 = arith.maximumf %11, %12 : vector<16x1xf32>
    %14 = vector.broadcast %7 : vector<16x1xf32> to vector<16x32xf32>
    %15 = arith.subf %0, %14 : vector<16x32xf32>
    %cst_5 = arith.constant 9.99999996E-13 : f32
    %16 = vector.broadcast %cst_5 : f32 to vector<16x1xf32>
    %17 = arith.addf %13, %16 : vector<16x1xf32>
    %18 = math.rsqrt %17 : vector<16x1xf32>
    %19 = vector.broadcast %18 : vector<16x1xf32> to vector<16x32xf32>
    %20 = arith.mulf %15, %19 : vector<16x32xf32>
    %c0_6 = arith.constant 0 : index
    %c0_7 = arith.constant 0 : index
    %21 = vector.load %arg2[%c0_6, %c0_7] : memref<1x32xf32, #tpu.memory_space<vmem>>, vector<1x32xf32>
    %22 = vector.broadcast %21 : vector<1x32xf32> to vector<16x32xf32>
    %23 = arith.mulf %20, %22 : vector<16x32xf32>
    %c0_8 = arith.constant 0 : index
    %c0_9 = arith.constant 0 : index
    %24 = vector.load %arg3[%c0_8, %c0_9] : memref<1x32xf32, #tpu.memory_space<vmem>>, vector<1x32xf32>
    %25 = vector.broadcast %24 : vector<1x32xf32> to vector<16x32xf32>
    %26 = arith.addf %23, %25 : vector<16x32xf32>
    %c0_10 = arith.constant 0 : index
    %c0_11 = arith.constant 0 : index
    %27 = vector.load %arg4[%c0_10, %c0_11] : memref<32x64xf32, #tpu.memory_space<vmem>>, vector<32x64xf32>
    %cst_12 = arith.constant dense<0.000000e+00> : vector<16x64xf32>
    %28 = tpu.matmul %26, %27, %cst_12 {dimension_numbers = #tpu.dot_dimension_numbers<[1], [0], [0], [1], [0, 0, 1, 1], [], []>} : vector<16x32xf32>, vector<32x64xf32>, vector<16x64xf32> -> vector<16x64xf32>
    %c0_13 = arith.constant 0 : index
    %c0_14 = arith.constant 0 : index
    %29 = vector.load %arg5[%c0_13, %c0_14] : memref<1x64xf32, #tpu.memory_space<vmem>>, vector<1x64xf32>
    %30 = vector.broadcast %29 : vector<1x64xf32> to vector<16x64xf32>
    %31 = arith.addf %28, %30 : vector<16x64xf32>
    %cst_15 = arith.constant 5.000000e-01 : f32
    %32 = vector.broadcast %cst_15 : f32 to vector<16x64xf32>
    %33 = arith.mulf %32, %31 : vector<16x64xf32>
    %cst_16 = arith.constant 0.707106769 : f32
    %34 = vector.broadcast %cst_16 : f32 to vector<16x64xf32>
    %35 = arith.mulf %31, %34 : vector<16x64xf32>
    %36 = math.erf %35 : vector<16x64xf32>
    %cst_17 = arith.constant 1.000000e+00 : f32
    %37 = vector.broadcast %cst_17 : f32 to vector<16x64xf32>
    %38 = arith.addf %37, %36 : vector<16x64xf32>
    %39 = arith.mulf %33, %38 : vector<16x64xf32>
    %c0_18 = arith.constant 0 : index
    %c0_19 = arith.constant 0 : index
    %40 = vector.load %arg6[%c0_18, %c0_19] : memref<64x32xf32, #tpu.memory_space<vmem>>, vector<64x32xf32>
    %cst_20 = arith.constant dense<0.000000e+00> : vector<16x32xf32>
    %41 = tpu.matmul %39, %40, %cst_20 {dimension_numbers = #tpu.dot_dimension_numbers<[1], [0], [0], [1], [0, 0, 1, 1], [], []>} : vector<16x64xf32>, vector<64x32xf32>, vector<16x32xf32> -> vector<16x32xf32>
    %42 = arith.addf %0, %41 : vector<16x32xf32>
    %c0_21 = arith.constant 0 : index
    %c0_22 = arith.constant 0 : index
    %43 = vector.load %arg7[%c0_21, %c0_22] : memref<1x32xf32, #tpu.memory_space<vmem>>, vector<1x32xf32>
    %44 = vector.broadcast %43 : vector<1x32xf32> to vector<16x32xf32>
    %45 = arith.addf %42, %44 : vector<16x32xf32>
    %cst_23 = arith.constant dense<0.000000e+00> : vector<16xf32>
    %46 = vector.multi_reduction <add>, %45, %cst_23 [1] : vector<16x32xf32> to vector<16xf32>
    %47 = vector.shape_cast %46 : vector<16xf32> to vector<16x1xf32>
    %48 = arith.mulf %45, %45 : vector<16x32xf32>
    %cst_24 = arith.constant dense<0.000000e+00> : vector<16xf32>
    %49 = vector.multi_reduction <add>, %48, %cst_24 [1] : vector<16x32xf32> to vector<16xf32>
    %50 = vector.shape_cast %49 : vector<16xf32> to vector<16x1xf32>
    %cst_25 = arith.constant 3.125000e-02 : f32
    %51 = vector.broadcast %cst_25 : f32 to vector<16x1xf32>
    %52 = arith.mulf %47, %51 : vector<16x1xf32>
    %cst_26 = arith.constant 3.125000e-02 : f32
    %53 = vector.broadcast %cst_26 : f32 to vector<16x1xf32>
    %54 = arith.mulf %50, %53 : vector<16x1xf32>
    %55 = arith.mulf %52, %52 : vector<16x1xf32>
    %56 = arith.subf %54, %55 : vector<16x1xf32>
    %cst_27 = arith.constant 0.000000e+00 : f32
    %57 = vector.broadcast %cst_27 : f32 to vector<16x1xf32>
    %58 = arith.maximumf %56, %57 : vector<16x1xf32>
    %59 = vector.broadcast %52 : vector<16x1xf32> to vector<16x32xf32>
    %60 = arith.subf %45, %59 : vector<16x32xf32>
    %cst_28 = arith.constant 9.99999996E-13 : f32
    %61 = vector.broadcast %cst_28 : f32 to vector<16x1xf32>
    %62 = arith.addf %58, %61 : vector<16x1xf32>
    %63 = math.rsqrt %62 : vector<16x1xf32>
    %64 = vector.broadcast %63 : vector<16x1xf32> to vector<16x32xf32>
    %65 = arith.mulf %60, %64 : vector<16x32xf32>
    %c0_29 = arith.constant 0 : index
    %c0_30 = arith.constant 0 : index
    %66 = vector.load %arg8[%c0_29, %c0_30] : memref<1x32xf32, #tpu.memory_space<vmem>>, vector<1x32xf32>
    %67 = vector.broadcast %66 : vector<1x32xf32> to vector<16x32xf32>
    %68 = arith.mulf %65, %67 : vector<16x32xf32>
    %c0_31 = arith.constant 0 : index
    %c0_32 = arith.constant 0 : index
    %69 = vector.load %arg9[%c0_31, %c0_32] : memref<1x32xf32, #tpu.memory_space<vmem>>, vector<1x32xf32>
    %70 = vector.broadcast %69 : vector<1x32xf32> to vector<16x32xf32>
    %71 = arith.addf %68, %70 : vector<16x32xf32>
    %c0_33 = arith.constant 0 : index
    %c0_34 = arith.constant 0 : index
    %72 = vector.load %arg10[%c0_33, %c0_34] : memref<16x32xf32, #tpu.memory_space<vmem>>, vector<16x32xf32>
    tpu.vector_store %arg10[%c0_33, %c0_34], %71 {strides = array<i32>} : memref<16x32xf32, #tpu.memory_space<vmem>>, vector<16x32xf32>,
    return
  }
  func.func @transform_0(%arg0: i32) -> (i32, i32) {
    %c0_i32 = arith.constant 0 : i32
    %c0_i32_0 = arith.constant 0 : i32
    return %arg0, %c0_i32 : i32, i32
  }
  func.func @transform_1(%arg0: i32) -> (i32, i32) {
    %c0_i32 = arith.constant 0 : i32
    %c0_i32_0 = arith.constant 0 : i32
    %c0_i32_1 = arith.constant 0 : i32
    return %c0_i32, %c0_i32_0 : i32, i32
  }
  func.func @transform_2(%arg0: i32) -> (i32, i32) {
    %c0_i32 = arith.constant 0 : i32
    %c0_i32_0 = arith.constant 0 : i32
    %c0_i32_1 = arith.constant 0 : i32
    return %c0_i32, %c0_i32_0 : i32, i32
  }
  func.func @transform_3(%arg0: i32) -> (i32, i32) {
    %c0_i32 = arith.constant 0 : i32
    %c0_i32_0 = arith.constant 0 : i32
    %c0_i32_1 = arith.constant 0 : i32
    return %c0_i32, %c0_i32_0 : i32, i32
  }
  func.func @transform_4(%arg0: i32) -> (i32, i32) {
    %c0_i32 = arith.constant 0 : i32
    %c0_i32_0 = arith.constant 0 : i32
    %c0_i32_1 = arith.constant 0 : i32
    return %c0_i32, %c0_i32_0 : i32, i32
  }
  func.func @transform_5(%arg0: i32) -> (i32, i32) {
    %c0_i32 = arith.constant 0 : i32
    %c0_i32_0 = arith.constant 0 : i32
    %c0_i32_1 = arith.constant 0 : i32
    return %c0_i32, %c0_i32_0 : i32, i32
  }
  func.func @transform_6(%arg0: i32) -> (i32, i32) {
    %c0_i32 = arith.constant 0 : i32
    %c0_i32_0 = arith.constant 0 : i32
    %c0_i32_1 = arith.constant 0 : i32
    return %c0_i32, %c0_i32_0 : i32, i32
  }
  func.func @transform_7(%arg0: i32) -> (i32, i32) {
    %c0_i32 = arith.constant 0 : i32
    %c0_i32_0 = arith.constant 0 : i32
    %c0_i32_1 = arith.constant 0 : i32
    return %c0_i32, %c0_i32_0 : i32, i32
  }
  func.func @transform_8(%arg0: i32) -> (i32, i32) {
    %c0_i32 = arith.constant 0 : i32
    %c0_i32_0 = arith.constant 0 : i32
    %c0_i32_1 = arith.constant 0 : i32
    return %c0_i32, %c0_i32_0 : i32, i32
  }
  func.func @transform_9(%arg0: i32) -> (i32, i32) {
    %c0_i32 = arith.constant 0 : i32
    %c0_i32_0 = arith.constant 0 : i32
    return %arg0, %c0_i32 : i32, i32
  }
}

</mosaic_0001>

<llo_original>
// kernel: aoa_refiner_core.7
$region0: #{aoa_refiner_core.7}
  #allocation0 [shape = 'u32[]', space=smem, size = 0x4, offset = 0x4, fixed_abs, tag = 'smem constant byte address 0x4 - core index']
  #allocation1 [shape = 'u32[144,128]{1,0:T(1,128)}', space=vmem, size = 0x12000, scoped, tag = 'internal scratch']
  %s0 = inlined_call_operand.vmem [shape: f32[16,32], index: 0, kind: input, shape index: {}]
  %s1 = inlined_call_operand.vmem [shape: f32[1,32], index: 1, kind: input, shape index: {}]
  %s2 = inlined_call_operand.vmem [shape: f32[1,32], index: 2, kind: input, shape index: {}]
  %s3 = inlined_call_operand.vmem [shape: f32[32,64], index: 3, kind: input, shape index: {}]
  %s4 = inlined_call_operand.vmem [shape: f32[1,64], index: 4, kind: input, shape index: {}]
  %s5 = inlined_call_operand.vmem [shape: f32[64,32], index: 5, kind: input, shape index: {}]
  %s6 = inlined_call_operand.vmem [shape: f32[1,32], index: 6, kind: input, shape index: {}]
  %s7 = inlined_call_operand.vmem [shape: f32[16,32], index: 7, kind: output, shape index: {}]
  %s8 = sld [smem:[#allocation0]]
  $region38: #{aoa_refiner_core.7} parent=0
    _
  %s10 = ssub.s32 1, %s8
  %s11 = scalar_select 0, %s10, %s8
  // Predicated region
  $region2: #{aoa_refiner_core.7} parent=0 // pred_check
    _
  $region3: #{aoa_refiner_core.7} parent=0 // pred_check_branch
    %13 = sbr.rel (0) target = $region5
  $region4: #{aoa_refiner_core.7} parent=0 // pred_region
    _
  $region5: #{aoa_refiner_core.7} parent=0 // pred_fallthru
    _
  // Predicated region
  $region6: #{aoa_refiner_core.7} parent=0 // pred_check
    _
  $region7: #{aoa_refiner_core.7} parent=0 // pred_check_branch
    %15 = sbr.rel (0) target = $region9
  $region8: #{aoa_refiner_core.7} parent=0 // pred_region
    _
  $region9: #{aoa_refiner_core.7} parent=0 // pred_fallthru
    _
  // Predicated region
  $region10: #{aoa_refiner_core.7} parent=0 // pred_check
    _
  $region11: #{aoa_refiner_core.7} parent=0 // pred_check_branch
    %17 = sbr.rel (0) target = $region13
  $region12: #{aoa_refiner_core.7} parent=0 // pred_region
    _
  $region13: #{aoa_refiner_core.7} parent=0 // pred_fallthru
    _
  // Predicated region
  $region14: #{aoa_refiner_core.7} parent=0 // pred_check
    _
  $region15: #{aoa_refiner_core.7} parent=0 // pred_check_branch
    %19 = sbr.rel (0) target = $region17
  $region16: #{aoa_refiner_core.7} parent=0 // pred_region
    _
  $region17: #{aoa_refiner_core.7} parent=0 // pred_fallthru
    _
  // Predicated region
  $region18: #{aoa_refiner_core.7} parent=0 // pred_check
    _
  $region19: #{aoa_refiner_core.7} parent=0 // pred_check_branch
    %21 = sbr.rel (0) target = $region21
  $region20: #{aoa_refiner_core.7} parent=0 // pred_region
    _
  $region21: #{aoa_refiner_core.7} parent=0 // pred_fallthru
    _
  // Predicated region
  $region22: #{aoa_refiner_core.7} parent=0 // pred_check
    _
  $region23: #{aoa_refiner_core.7} parent=0 // pred_check_branch
    %23 = sbr.rel (0) target = $region25
  $region24: #{aoa_refiner_core.7} parent=0 // pred_region
    _
  $region25: #{aoa_refiner_core.7} parent=0 // pred_fallthru
    _
  // Predicated region
  $region26: #{aoa_refiner_core.7} parent=0 // pred_check
    _
  $region27: #{aoa_refiner_core.7} parent=0 // pred_check_branch
    %25 = sbr.rel (0) target = $region29
  $region28: #{aoa_refiner_core.7} parent=0 // pred_region
    _
  $region29: #{aoa_refiner_core.7} parent=0 // pred_fallthru
    _
  %v26 = vld [vmem:[%s0] sm:$0xff]
  %v27 = vld [vmem:[%s0 + $0x8] sm:$0xff]
  %vm28 = vcmask 261120
  %v29 = vsel %vm28, %v26, 0.0
  %30 = vadd.xlane.f32.xlu0 %v29
  %v31 = vpop.xlane.xlu0 %30
  %v32 = vsel %vm28, %v27, 0.0
  %33 = vadd.xlane.f32.xlu0 %v32
  %v34 = vpop.xlane.xlu0 %33
  %v35 = vmul.f32 %v26, %v26
  %v36 = vmul.f32 %v27, %v27
  %v37 = vsel %vm28, %v35, 0.0
  %38 = vadd.xlane.f32.xlu0 %v37
  %v39 = vpop.xlane.xlu0 %38
  %v40 = vsel %vm28, %v36, 0.0
  %41 = vadd.xlane.f32.xlu0 %v40
  %v42 = vpop.xlane.xlu0 %41
  %v43 = vmul.f32 %v31, 0.03125
  %v44 = vmul.f32 %v34, 0.03125
  %v45 = vmul.f32 %v39, 0.03125
  %v46 = vmul.f32 %v42, 0.03125
  %v47 = vmul.f32 %v43, %v43
  %v48 = vmul.f32 %v44, %v44
  %v49 = vsub.f32 %v45, %v47
  %v50 = vsub.f32 %v46, %v48
  %v51 = vmax.f32 %v49, 0.0
  %v52 = vmax.f32 %v50, 0.0
  %v53 = vsub.f32 %v26, %v43
  %v54 = vsub.f32 %v27, %v44
  %v55 = vadd.f32 %v51, 1e-12
  %v56 = vadd.f32 %v52, 1e-12
  %v57 = vrsqrt.pop %v55
  %v58 = vrsqrt.pop %v56
  %v59 = vmul.f32 %v53, %v57
  %v60 = vmul.f32 %v54, %v58
  %v61 = vld [vmem:[%s1] sm:$0x1]
  %v63 = vlaneseq
  %v64 = vshrl.u32 %v63, 7
  %v65 = vsub.s32 0, %v64
  %v66 = vrot.slane %v61, %v65
  %v68 = vmul.f32 %v59, %v66
  %v69 = vmul.f32 %v60, %v66
  %v70 = vld [vmem:[%s2] sm:$0x1]
  %v72 = vlaneseq
  %v73 = vshrl.u32 %v72, 7
  %v74 = vsub.s32 0, %v73
  %v75 = vrot.slane %v70, %v74
  %v77 = vadd.f32 %v68, %v75
  %v78 = vadd.f32 %v69, %v75
  %v79 = vld [vmem:[%s3] sm:$0xff]
  %v80 = vld [vmem:[%s3 + $0x8] sm:$0xff]
  %v81 = vld [vmem:[%s3 + $0x10] sm:$0xff]
  %v82 = vld [vmem:[%s3 + $0x18] sm:$0xff]
  %v83 = vld [vmem:[%s4] sm:$0x1]
  %v85 = vlaneseq
  %v86 = vshrl.u32 %v85, 7
  %v87 = vsub.s32 0, %v86
  %v88 = vrot.slane %v83, %v87
  %v91 = vsel %vm28, %v77, 0
  %v94 = vsel %vm28, %v78, 0
  %96 = vmatprep.subr.mxu0 0.0
  %97 = vmatpush1.msra.mxu0 0.0
  %98 = vmatprep.subr.mxu0 0.0
  %99 = vmatpush1.msra.mxu0 0.0
  %100 = vmatprep.subr.mxu0 0.0
  %101 = vmatpush1.msra.mxu0 0.0
  %102 = vmatprep.subr.mxu0 0.0
  %103 = vmatpush1.msra.mxu0 0.0
  %104 = vmatprep.subr.mxu0 0.0
  %105 = vmatpush1.msra.mxu0 0.0
  %106 = vmatprep.subr.mxu0 0.0
  %107 = vmatpush1.msra.mxu0 0.0
  %108 = vmatprep.subr.mxu0 0.0
  %109 = vmatpush1.msra.mxu0 0.0
  %110 = vmatprep.subr.mxu0 0.0
  %111 = vmatpush1.msra.mxu0 0.0
  %112 = vmatprep.subr.mxu0 0.0
  %113 = vmatpush1.msra.mxu0 0.0
  %114 = vmatprep.subr.mxu0 0.0
  %115 = vmatpush1.msra.mxu0 0.0
  %116 = vmatprep.subr.mxu0 0.0
  %117 = vmatpush1.msra.mxu0 0.0
  %118 = vmatprep.subr.mxu0 0.0
  %119 = vmatpush1.msra.mxu0 0.0
  %120 = vmatprep.subr.mxu0 0.0
  %121 = vmatpush1.msra.mxu0 %v82
  %122 = vmatprep.subr.mxu0 0.0
  %123 = vmatpush1.msra.mxu0 %v81
  %124 = vmatprep.subr.mxu0 0.0
  %125 = vmatpush1.msra.mxu0 %v80
  %126 = vmatprep.subr.mxu0 0.0
  %127 = vmatpush1.msra.mxu0 %v79
  %128 = vmatprep.subr.mxu0 0.0
  %129 = vmatpush2.msra.mxu0 0.0
  %130 = vmatprep.subr.mxu0 0.0
  %131 = vmatpush2.msra.mxu0 0.0
  %132 = vmatprep.subr.mxu0 0.0
  %133 = vmatpush2.msra.mxu0 0.0
  %134 = vmatprep.subr.mxu0 0.0
  %135 = vmatpush2.msra.mxu0 0.0
  %136 = vmatprep.subr.mxu0 0.0
  %137 = vmatpush2.msra.mxu0 0.0
  %138 = vmatprep.subr.mxu0 0.0
  %139 = vmatpush2.msra.mxu0 0.0
  %140 = vmatprep.subr.mxu0 0.0
  %141 = vmatpush2.msra.mxu0 0.0
  %142 = vmatprep.subr.mxu0 0.0
  %143 = vmatpush2.msra.mxu0 0.0
  %144 = vmatprep.subr.mxu0 0.0
  %145 = vmatpush2.msra.mxu0 0.0
  %146 = vmatprep.subr.mxu0 0.0
  %147 = vmatpush2.msra.mxu0 0.0
  %148 = vmatprep.subr.mxu0 0.0
  %149 = vmatpush2.msra.mxu0 0.0
  %150 = vmatprep.subr.mxu0 0.0
  %151 = vmatpush2.msra.mxu0 0.0
  %152 = vmatprep.subr.mxu0 0.0
  %153 = vmatpush2.msra.mxu0 0.0
  %154 = vmatprep.subr.mxu0 0.0
  %155 = vmatpush2.msra.mxu0 0.0
  %156 = vmatprep.subr.mxu0 0.0
  %157 = vmatpush2.msra.mxu0 0.0
  %158 = vmatprep.subr.mxu0 0.0
  %159 = vmatpush2.msra.mxu0 0.0
  %160 = vmatprep.mubr.f32.mxu0 0.0
  %161 = vmatmul.mubr.f32.gmra.mxu0 %v91
  %v162 = vpop.f32.mrf.mxu0
  %v163 = vadd.f32 %v88, %v162
  %v164 = vpop.f32.mrf.mxu0
  %165 = vmatprep.mubr.f32.mxu0 0.0
  %166 = vmatmul.mubr.f32.gmra.mxu0 %v94
  %v167 = vpop.f32.mrf.mxu0
  %v168 = vadd.f32 %v88, %v167
  %v169 = vpop.f32.mrf.mxu0
  %170 = vdwg.mxu0
  %v171 = vmul.f32 %v163, 0.5
  %v172 = vmul.f32 %v168, 0.5
  %v173 = vmul.f32 %v163, 0.70710677
  %v174 = vmul.f32 %v168, 0.70710677
  %v175 = verf.f32.pop %v173
  %v176 = verf.f32.pop %v174
  %v177 = vadd.f32 %v175, 1.0
  %v178 = vadd.f32 %v176, 1.0
  %v179 = vmul.f32 %v171, %v177
  %v180 = vmul.f32 %v172, %v178
  %v181 = vld [vmem:[%s5] sm:$0xff]
  %v182 = vld [vmem:[%s5 + $0x8] sm:$0xff]
  %v183 = vld [vmem:[%s5 + $0x10] sm:$0xff]
  %v184 = vld [vmem:[%s5 + $0x18] sm:$0xff]
  %v185 = vld [vmem:[%s5 + $0x20] sm:$0xff]
  %v186 = vld [vmem:[%s5 + $0x28] sm:$0xff]
  %v187 = vld [vmem:[%s5 + $0x30] sm:$0xff]
  %v188 = vld [vmem:[%s5 + $0x38] sm:$0xff]
  %vm189 = vcmask 523264
  %v191 = vsel %vm189, %v179, 0
  %v194 = vsel %vm189, %v180, 0
  %196 = vmatprep.subr.mxu0 0.0
  %197 = vmatpush1.msra.mxu0 0.0
  %198 = vmatprep.subr.mxu0 0.0
  %199 = vmatpush1.msra.mxu0 0.0
  %200 = vmatprep.subr.mxu0 0.0
  %201 = vmatpush1.msra.mxu0 0.0
  %202 = vmatprep.subr.mxu0 0.0
  %203 = vmatpush1.msra.mxu0 0.0
  %204 = vmatprep.subr.mxu0 0.0
  %205 = vmatpush1.msra.mxu0 0.0
  %206 = vmatprep.subr.mxu0 0.0
  %207 = vmatpush1.msra.mxu0 0.0
  %208 = vmatprep.subr.mxu0 0.0
  %209 = vmatpush1.msra.mxu0 0.0
  %210 = vmatprep.subr.mxu0 0.0
  %211 = vmatpush1.msra.mxu0 0.0
  %212 = vmatprep.subr.mxu0 0.0
  %213 = vmatpush1.msra.mxu0 %v188
  %214 = vmatprep.subr.mxu0 0.0
  %215 = vmatpush1.msra.mxu0 %v187
  %216 = vmatprep.subr.mxu0 0.0
  %217 = vmatpush1.msra.mxu0 %v186
  %218 = vmatprep.subr.mxu0 0.0
  %219 = vmatpush1.msra.mxu0 %v185
  %220 = vmatprep.subr.mxu0 0.0
  %221 = vmatpush1.msra.mxu0 %v184
  %222 = vmatprep.subr.mxu0 0.0
  %223 = vmatpush1.msra.mxu0 %v183
  %224 = vmatprep.subr.mxu0 0.0
  %225 = vmatpush1.msra.mxu0 %v182
  %226 = vmatprep.subr.mxu0 0.0
  %227 = vmatpush1.msra.mxu0 %v181
  %228 = vmatprep.subr.mxu0 0.0
  %229 = vmatpush2.msra.mxu0 0.0
  %230 = vmatprep.subr.mxu0 0.0
  %231 = vmatpush2.msra.mxu0 0.0
  %232 = vmatprep.subr.mxu0 0.0
  %233 = vmatpush2.msra.mxu0 0.0
  %234 = vmatprep.subr.mxu0 0.0
  %235 = vmatpush2.msra.mxu0 0.0
  %236 = vmatprep.subr.mxu0 0.0
  %237 = vmatpush2.msra.mxu0 0.0
  %238 = vmatprep.subr.mxu0 0.0
  %239 = vmatpush2.msra.mxu0 0.0
  %240 = vmatprep.subr.mxu0 0.0
  %241 = vmatpush2.msra.mxu0 0.0
  %242 = vmatprep.subr.mxu0 0.0
  %243 = vmatpush2.msra.mxu0 0.0
  %244 = vmatprep.subr.mxu0 0.0
  %245 = vmatpush2.msra.mxu0 0.0
  %246 = vmatprep.subr.mxu0 0.0
  %247 = vmatpush2.msra.mxu0 0.0
  %248 = vmatprep.subr.mxu0 0.0
  %249 = vmatpush2.msra.mxu0 0.0
  %250 = vmatprep.subr.mxu0 0.0
  %251 = vmatpush2.msra.mxu0 0.0
  %252 = vmatprep.subr.mxu0 0.0
  %253 = vmatpush2.msra.mxu0 0.0
  %254 = vmatprep.subr.mxu0 0.0
  %255 = vmatpush2.msra.mxu0 0.0
  %256 = vmatprep.subr.mxu0 0.0
  %257 = vmatpush2.msra.mxu0 0.0
  %258 = vmatprep.subr.mxu0 0.0
  %259 = vmatpush2.msra.mxu0 0.0
  %260 = vmatprep.mubr.f32.mxu0 0.0
  %261 = vmatmul.mubr.f32.gmra.mxu0 %v191
  %v262 = vpop.f32.mrf.mxu0
  %v263 = vadd.f32 0.0, %v262
  %v264 = vpop.f32.mrf.mxu0
  %265 = vmatprep.mubr.f32.mxu0 0.0
  %266 = vmatmul.mubr.f32.gmra.mxu0 %v194
  %v267 = vpop.f32.mrf.mxu0
  %v268 = vadd.f32 0.0, %v267
  %v269 = vpop.f32.mrf.mxu0
  %270 = vdwg.mxu0
  %v271 = vadd.f32 %v26, %v263
  %v272 = vadd.f32 %v27, %v268
  %v273 = vld [vmem:[%s6] sm:$0x1]
  %v275 = vlaneseq
  %v276 = vshrl.u32 %v275, 7
  %v277 = vsub.s32 0, %v276
  %v278 = vrot.slane %v273, %v277
  %v280 = vadd.f32 %v271, %v278
  %v281 = vadd.f32 %v272, %v278
  %282 = vst.msk [vmem:[%s7] sm:$0xff] %vm28, %v280
  %283 = vst.msk [vmem:[%s7 + $0x8] sm:$0xff] %vm28, %v281
  // Predicated region
  $region30: #{aoa_refiner_core.7} parent=0 // pred_check
    _
  $region31: #{aoa_refiner_core.7} parent=0 // pred_check_branch
    %285 = sbr.rel (0) target = $region33
  $region32: #{aoa_refiner_core.7} parent=0 // pred_region
    _
  $region33: #{aoa_refiner_core.7} parent=0 // pred_fallthru
    _
  // Predicated region
  $region34: #{aoa_refiner_core.7} parent=0 // pred_check
    _
  $region35: #{aoa_refiner_core.7} parent=0 // pred_check_branch
    %287 = sbr.rel (0) target = $region37
  $region36: #{aoa_refiner_core.7} parent=0 // pred_region
    _
  $region37: #{aoa_refiner_core.7} parent=0 // pred_fallthru
    _

// kernel: aoa_refiner_core.8
$region0: #{aoa_refiner_core.8}
  #allocation0 [shape = 'u32[]', space=smem, size = 0x4, offset = 0x4, fixed_abs, tag = 'smem constant byte address 0x4 - core index']
  #allocation1 [shape = 'u32[144,128]{1,0:T(1,128)}', space=vmem, size = 0x12000, scoped, tag = 'internal scratch']
  #allocation2 [shape = 'f32[8,32]{1,0:T(8,128)}', space=vmem, size = 0x1000, scoped, tag = 'scratch operand']
  %s0 = inlined_call_operand.vmem [shape: f32[2,8,32], index: 0, kind: input, shape index: {}]
  %s1 = inlined_call_operand.vmem [shape: f32[2,1,8], index: 1, kind: input, shape index: {}]
  %s2 = inlined_call_operand.vmem [shape: f32[1,32], index: 2, kind: input, shape index: {}]
  %s3 = inlined_call_operand.vmem [shape: f32[1,32], index: 3, kind: input, shape index: {}]
  %s4 = inlined_call_operand.vmem [shape: f32[32,96], index: 4, kind: input, shape index: {}]
  %s5 = inlined_call_operand.vmem [shape: f32[1,96], index: 5, kind: input, shape index: {}]
  %s6 = inlined_call_operand.vmem [shape: f32[64,64], index: 6, kind: input, shape index: {}, may-alias: {6,7}]
  %s7 = inlined_call_operand.vmem [shape: f32[64,64], index: 7, kind: input, shape index: {}, may-alias: {6,7}]
  %s8 = inlined_call_operand.vmem [shape: f32[1,64], index: 8, kind: input, shape index: {}]
  %s9 = inlined_call_operand.vmem [shape: f32[2,8,32], index: 9, kind: output, shape index: {}]
  %s10 = sld [smem:[#allocation0]]
  $region69: #{aoa_refiner_core.8} parent=0
    _
  %s12 = ssub.s32 1, %s10
  %s13 = scalar_select 0, %s12, %s10
  loop: start=0, step=1, limit=4
  $region2: #{aoa_refiner_core.8} parent=0 // loop_pre_header
    _
  $region3: #{aoa_refiner_core.8} parent=0 // loop_header
    %s15 = sphi 0, %s19
    %p16 = scmp.ge.s32.totalorder %s15, 4
    %s25 = sphi 0, %s27
    %s28 = sphi 0, %s25
    %s29 = sphi 0, %s28
    %s45 = sphi 0, %s29
    %s51 = sphi 0, %s53
    %s54 = sphi 0, %s51
    %s55 = sphi 0, %s54
    %s71 = sphi 0, %s55
    %s75 = sphi 0, %s75
    %s77 = sphi 0, %s75
    %s78 = sphi 0, %s77
    %s92 = sphi 0, %s78
    %s96 = sphi 0, %s96
    %s98 = sphi 0, %s96
    %s99 = sphi 0, %s98
    %s113 = sphi 0, %s99
    %s117 = sphi 0, %s117
    %s119 = sphi 0, %s117
    %s120 = sphi 0, %s119
    %s134 = sphi 0, %s120
    %s138 = sphi 0, %s138
    %s140 = sphi 0, %s138
    %s141 = sphi 0, %s140
    %s155 = sphi 0, %s141
    %s159 = sphi 0, %s159
    %s161 = sphi 0, %s159
    %s162 = sphi 0, %s161
    %s176 = sphi 0, %s162
    %s180 = sphi 0, %s180
    %s182 = sphi 0, %s180
    %s183 = sphi 0, %s182
    %s197 = sphi 0, %s183
    %s201 = sphi 0, %s201
    %s203 = sphi 0, %s201
    %s204 = sphi 0, %s203
    %s218 = sphi 0, %s204
    %s224 = sphi 0, %s226
    %s227 = sphi 0, %s224
    %s228 = sphi 0, %s227
    %s244 = sphi 0, %s228
  $region4: #{aoa_refiner_core.8} parent=0 // loop_header_branch
    %18 = sbr.rel (%p16) target = $region8
  $region5: #{aoa_refiner_core.8} parent=0 // loop_body
    %s20 = ssub.s32 %s15, 1
    %s21 = ssub.s32 %s15, 2
    %s22 = sadd.s32 %s15, 1
    %s23 = ssub.s32 %s15, %s22
    %p24 = scmp.eq.s32.totalorder %s23, 0
    %s26 = sadd.s32 %s25, 1
    %s27 = scalar_select %p24, %s25, %s26
    %p30 = pneg %p24
    %p31 = scmp.eq.s32.totalorder %s15, 1
    %p32 = por %p30, %p31
    %p33 = scmp.ne.s32.totalorder %s25, %s28
    %p34 = scmp.eq.s32.totalorder %s15, 0
    %p35 = por %p33, %p34
    %p36 = scmp.ne.s32.totalorder %s25, %s28
    %p37 = scmp.eq.s32.totalorder %s20, 1
    %p38 = por %p36, %p37
    %p39 = scmp.ne.s32.totalorder %s28, %s29
    %p40 = scmp.eq.s32.totalorder %s20, 0
    %p41 = por %p39, %p40
    %p42 = scmp.ne.s32.totalorder %s28, %s29
    %p43 = scmp.eq.s32.totalorder %s21, 1
    %p44 = por %p42, %p43
    %p46 = scmp.ne.s32.totalorder %s29, %s45
    %p47 = scmp.eq.s32.totalorder %s21, 0
    %p48 = por %p46, %p47
    %s49 = ssub.s32 %s15, %s22
    %p50 = scmp.eq.s32.totalorder %s49, 0
    %s52 = sadd.s32 %s51, 1
    %s53 = scalar_select %p50, %s51, %s52
    %p56 = pneg %p50
    %p57 = scmp.eq.s32.totalorder %s15, 1
    %p58 = por %p56, %p57
    %p59 = scmp.ne.s32.totalorder %s51, %s54
    %p60 = scmp.eq.s32.totalorder %s15, 0
    %p61 = por %p59, %p60
    %p62 = scmp.ne.s32.totalorder %s51, %s54
    %p63 = scmp.eq.s32.totalorder %s20, 1
    %p64 = por %p62, %p63
    %p65 = scmp.ne.s32.totalorder %s54, %s55
    %p66 = scmp.eq.s32.totalorder %s20, 0
    %p67 = por %p65, %p66
    %p68 = scmp.ne.s32.totalorder %s54, %s55
    %p69 = scmp.eq.s32.totalorder %s21, 1
    %p70 = por %p68, %p69
    %p72 = scmp.ne.s32.totalorder %s55, %s71
    %p73 = scmp.eq.s32.totalorder %s21, 0
    %p74 = por %p72, %p73
    %s76 = sadd.s32 %s75, 1
    %p79 = scmp.eq.s32.totalorder %s15, 1
    %p80 = scmp.ne.s32.totalorder %s75, %s77
    %p81 = scmp.eq.s32.totalorder %s15, 0
    %p82 = por %p80, %p81
    %p83 = scmp.ne.s32.totalorder %s75, %s77
    %p84 = scmp.eq.s32.totalorder %s20, 1
    %p85 = por %p83, %p84
    %p86 = scmp.ne.s32.totalorder %s77, %s78
    %p87 = scmp.eq.s32.totalorder %s20, 0
    %p88 = por %p86, %p87
    %p89 = scmp.ne.s32.totalorder %s77, %s78
    %p90 = scmp.eq.s32.totalorder %s21, 1
    %p91 = por %p89, %p90
    %p93 = scmp.ne.s32.totalorder %s78, %s92
    %p94 = scmp.eq.s32.totalorder %s21, 0
    %p95 = por %p93, %p94
    %s97 = sadd.s32 %s96, 1
    %p100 = scmp.eq.s32.totalorder %s15, 1
    %p101 = scmp.ne.s32.totalorder %s96, %s98
    %p102 = scmp.eq.s32.totalorder %s15, 0
    %p103 = por %p101, %p102
    %p104 = scmp.ne.s32.totalorder %s96, %s98
    %p105 = scmp.eq.s32.totalorder %s20, 1
    %p106 = por %p104, %p105
    %p107 = scmp.ne.s32.totalorder %s98, %s99
    %p108 = scmp.eq.s32.totalorder %s20, 0
    %p109 = por %p107, %p108
    %p110 = scmp.ne.s32.totalorder %s98, %s99
    %p111 = scmp.eq.s32.totalorder %s21, 1
    %p112 = por %p110, %p111
    %p114 = scmp.ne.s32.totalorder %s99, %s113
    %p115 = scmp.eq.s32.totalorder %s21, 0
    %p116 = por %p114, %p115
    %s118 = sadd.s32 %s117, 1
    %p121 = scmp.eq.s32.totalorder %s15, 1
    %p122 = scmp.ne.s32.totalorder %s117, %s119
    %p123 = scmp.eq.s32.totalorder %s15, 0
    %p124 = por %p122, %p123
    %p125 = scmp.ne.s32.totalorder %s117, %s119
    %p126 = scmp.eq.s32.totalorder %s20, 1
    %p127 = por %p125, %p126
    %p128 = scmp.ne.s32.totalorder %s119, %s120
    %p129 = scmp.eq.s32.totalorder %s20, 0
    %p130 = por %p128, %p129
    %p131 = scmp.ne.s32.totalorder %s119, %s120
    %p132 = scmp.eq.s32.totalorder %s21, 1
    %p133 = por %p131, %p132
    %p135 = scmp.ne.s32.totalorder %s120, %s134
    %p136 = scmp.eq.s32.totalorder %s21, 0
    %p137 = por %p135, %p136
    %s139 = sadd.s32 %s138, 1
    %p142 = scmp.eq.s32.totalorder %s15, 1
    %p143 = scmp.ne.s32.totalorder %s138, %s140
    %p144 = scmp.eq.s32.totalorder %s15, 0
    %p145 = por %p143, %p144
    %p146 = scmp.ne.s32.totalorder %s138, %s140
    %p147 = scmp.eq.s32.totalorder %s20, 1
    %p148 = por %p146, %p147
    %p149 = scmp.ne.s32.totalorder %s140, %s141
    %p150 = scmp.eq.s32.totalorder %s20, 0
    %p151 = por %p149, %p150
    %p152 = scmp.ne.s32.totalorder %s140, %s141
    %p153 = scmp.eq.s32.totalorder %s21, 1
    %p154 = por %p152, %p153
    %p156 = scmp.ne.s32.totalorder %s141, %s155
    %p157 = scmp.eq.s32.totalorder %s21, 0
    %p158 = por %p156, %p157
    %s160 = sadd.s32 %s159, 1
    %p163 = scmp.eq.s32.totalorder %s15, 1
    %p164 = scmp.ne.s32.totalorder %s159, %s161
    %p165 = scmp.eq.s32.totalorder %s15, 0
    %p166 = por %p164, %p165
    %p167 = scmp.ne.s32.totalorder %s159, %s161
    %p168 = scmp.eq.s32.totalorder %s20, 1
    %p169 = por %p167, %p168
    %p170 = scmp.ne.s32.totalorder %s161, %s162
    %p171 = scmp.eq.s32.totalorder %s20, 0
    %p172 = por %p170, %p171
    %p173 = scmp.ne.s32.totalorder %s161, %s162
    %p174 = scmp.eq.s32.totalorder %s21, 1
    %p175 = por %p173, %p174
    %p177 = scmp.ne.s32.totalorder %s162, %s176
    %p178 = scmp.eq.s32.totalorder %s21, 0
    %p179 = por %p177, %p178
    %s181 = sadd.s32 %s180, 1
    %p184 = scmp.eq.s32.totalorder %s15, 1
    %p185 = scmp.ne.s32.totalorder %s180, %s182
    %p186 = scmp.eq.s32.totalorder %s15, 0
    %p187 = por %p185, %p186
    %p188 = scmp.ne.s32.totalorder %s180, %s182
    %p189 = scmp.eq.s32.totalorder %s20, 1
    %p190 = por %p188, %p189
    %p191 = scmp.ne.s32.totalorder %s182, %s183
    %p192 = scmp.eq.s32.totalorder %s20, 0
    %p193 = por %p191, %p192
    %p194 = scmp.ne.s32.totalorder %s182, %s183
    %p195 = scmp.eq.s32.totalorder %s21, 1
    %p196 = por %p194, %p195
    %p198 = scmp.ne.s32.totalorder %s183, %s197
    %p199 = scmp.eq.s32.totalorder %s21, 0
    %p200 = por %p198, %p199
    %s202 = sadd.s32 %s201, 1
    %p205 = scmp.eq.s32.totalorder %s15, 1
    %p206 = scmp.ne.s32.totalorder %s201, %s203
    %p207 = scmp.eq.s32.totalorder %s15, 0
    %p208 = por %p206, %p207
    %p209 = scmp.ne.s32.totalorder %s201, %s203
    %p210 = scmp.eq.s32.totalorder %s20, 1
    %p211 = por %p209, %p210
    %p212 = scmp.ne.s32.totalorder %s203, %s204
    %p213 = scmp.eq.s32.totalorder %s20, 0
    %p214 = por %p212, %p213
    %p215 = scmp.ne.s32.totalorder %s203, %s204
    %p216 = scmp.eq.s32.totalorder %s21, 1
    %p217 = por %p215, %p216
    %p219 = scmp.ne.s32.totalorder %s204, %s218
    %p220 = scmp.eq.s32.totalorder %s21, 0
    %p221 = por %p219, %p220
    %s222 = ssub.s32 %s15, %s22
    %p223 = scmp.eq.s32.totalorder %s222, 0
    %s225 = sadd.s32 %s224, 1
    %s226 = scalar_select %p223, %s224, %s225
    %p229 = pneg %p223
    %p230 = scmp.eq.s32.totalorder %s15, 1
    %p231 = por %p229, %p230
    %p232 = scmp.ne.s32.totalorder %s224, %s227
    %p233 = scmp.eq.s32.totalorder %s15, 0
    %p234 = por %p232, %p233
    %p235 = scmp.ne.s32.totalorder %s224, %s227
    %p236 = scmp.eq.s32.totalorder %s20, 1
    %p237 = por %p235, %p236
    %p238 = scmp.ne.s32.totalorder %s227, %s228
    %p239 = scmp.eq.s32.totalorder %s20, 0
    %p240 = por %p238, %p239
    %p241 = scmp.ne.s32.totalorder %s227, %s228
    %p242 = scmp.eq.s32.totalorder %s21, 1
    %p243 = por %p241, %p242
    %p245 = scmp.ne.s32.totalorder %s228, %s244
    %p246 = scmp.eq.s32.totalorder %s21, 0
    %p247 = por %p245, %p246
    %p248 = scmp.le.s32.totalorder 1, %s15
    %p249 = scmp.lt.s32.totalorder %s15, 3
    %p250 = pnand %p248, %p249
    %p251 = pneg %p250
    // Predicated region
    $region9: #{aoa_refiner_core.8} parent=5 // pred_check
      _
    $region10: #{aoa_refiner_core.8} parent=5 // pred_check_branch
      %253 = sbr.rel (%p250) target = $region12
    $region11: #{aoa_refiner_core.8} parent=5 // pred_region
      %s254 = ssub.s32 %s15, 1
      // Predicated region
      $region13: #{aoa_refiner_core.8} parent=11 // pred_check
        %p255 = pneg %p88
      $region14: #{aoa_refiner_core.8} parent=11 // pred_check_branch
        %257 = sbr.rel (%p255) target = $region16
      $region15: #{aoa_refiner_core.8} parent=11 // pred_region
        _
      $region16: #{aoa_refiner_core.8} parent=11 // pred_fallthru
        _
      // Predicated region
      $region17: #{aoa_refiner_core.8} parent=11 // pred_check
        %p258 = pneg %p109
      $region18: #{aoa_refiner_core.8} parent=11 // pred_check_branch
        %260 = sbr.rel (%p258) target = $region20
      $region19: #{aoa_refiner_core.8} parent=11 // pred_region
        _
      $region20: #{aoa_refiner_core.8} parent=11 // pred_fallthru
        _
      // Predicated region
      $region21: #{aoa_refiner_core.8} parent=11 // pred_check
        %p261 = pneg %p130
      $region22: #{aoa_refiner_core.8} parent=11 // pred_check_branch
        %263 = sbr.rel (%p261) target = $region24
      $region23: #{aoa_refiner_core.8} parent=11 // pred_region
        _
      $region24: #{aoa_refiner_core.8} parent=11 // pred_fallthru
        _
      // Predicated region
      $region25: #{aoa_refiner_core.8} parent=11 // pred_check
        %p264 = pneg %p151
      $region26: #{aoa_refiner_core.8} parent=11 // pred_check_branch
        %266 = sbr.rel (%p264) target = $region28
      $region27: #{aoa_refiner_core.8} parent=11 // pred_region
        _
      $region28: #{aoa_refiner_core.8} parent=11 // pred_fallthru
        _
      // Predicated region
      $region29: #{aoa_refiner_core.8} parent=11 // pred_check
        %p267 = pneg %p172
      $region30: #{aoa_refiner_core.8} parent=11 // pred_check_branch
        %269 = sbr.rel (%p267) target = $region32
      $region31: #{aoa_refiner_core.8} parent=11 // pred_region
        _
      $region32: #{aoa_refiner_core.8} parent=11 // pred_fallthru
        _
      // Predicated region
      $region33: #{aoa_refiner_core.8} parent=11 // pred_check
        %p270 = pneg %p193
      $region34: #{aoa_refiner_core.8} parent=11 // pred_check_branch
        %272 = sbr.rel (%p270) target = $region36
      $region35: #{aoa_refiner_core.8} parent=11 // pred_region
        %s273 = scalar_lea.vmem %s7, 32
      $region36: #{aoa_refiner_core.8} parent=11 // pred_fallthru
        _
      // Predicated region
      $region37: #{aoa_refiner_core.8} parent=11 // pred_check
        %p274 = pneg %p214
      $region38: #{aoa_refiner_core.8} parent=11 // pred_check_branch
        %276 = sbr.rel (%p274) target = $region40
      $region39: #{aoa_refiner_core.8} parent=11 // pred_region
        _
      $region40: #{aoa_refiner_core.8} parent=11 // pred_fallthru
        _
    $region12: #{aoa_refiner_core.8} parent=5 // pred_fallthru
      _
    %p277 = scmp.lt.s32.totalorder %s15, 2
    // Predicated region
    $region41: #{aoa_refiner_core.8} parent=5 // pred_check
      %p278 = pneg %p277
    $region42: #{aoa_refiner_core.8} parent=5 // pred_check_branch
      %280 = sbr.rel (%p278) target = $region44
    $region43: #{aoa_refiner_core.8} parent=5 // pred_region
      // Predicated region
      $region45: #{aoa_refiner_core.8} parent=43 // pred_check
        %p281 = pneg %p35
      $region46: #{aoa_refiner_core.8} parent=43 // pred_check_branch
        %283 = sbr.rel (%p281) target = $region48
      $region47: #{aoa_refiner_core.8} parent=43 // pred_region
        %p284 = scmp.lt.s32.totalorder %s15, 1
        %s285 = scalar_select %p284, %s15, 1
        %s286 = smul.addr %s285, 8
        %s287 = scalar_lea.vmem %s0, %s286
      $region48: #{aoa_refiner_core.8} parent=43 // pred_fallthru
        _
      // Predicated region
      $region49: #{aoa_refiner_core.8} parent=43 // pred_check
        %p288 = pneg %p61
      $region50: #{aoa_refiner_core.8} parent=43 // pred_check_branch
        %290 = sbr.rel (%p288) target = $region52
      $region51: #{aoa_refiner_core.8} parent=43 // pred_region
        %p291 = scmp.lt.s32.totalorder %s15, 1
        %s292 = scalar_select %p291, %s15, 1
        %s293 = scalar_lea.vmem %s1, %s292
      $region52: #{aoa_refiner_core.8} parent=43 // pred_fallthru
        _
    $region44: #{aoa_refiner_core.8} parent=5 // pred_fallthru
      _
    %p294 = scmp.le.s32.totalorder 1, %s15
    %p295 = scmp.lt.s32.totalorder %s15, 3
    %p296 = pnand %p294, %p295
    %p297 = pneg %p296
    // Predicated region
    $region53: #{aoa_refiner_core.8} parent=5 // pred_check
      _
    $region54: #{aoa_refiner_core.8} parent=5 // pred_check_branch
      %299 = sbr.rel (%p296) target = $region56
    $region55: #{aoa_refiner_core.8} parent=5 // pred_region
      %s300 = ssub.s32 %s15, 1
      %p301 = scmp.lt.s32.totalorder %s20, 1
      %s302 = scalar_select %p301, %s20, 1
      %s303 = smul.addr %s302, 8
      %s304 = scalar_lea.vmem %s0, %s303
      %p305 = pneg %p41
      %p306 = pneg %p38
      %p307 = scmp.lt.s32.totalorder %s20, 1
      %s308 = scalar_select %p307, %s20, 1
      %s309 = scalar_lea.vmem %s1, %s308
      %p310 = pneg %p67
      %p311 = pneg %p64
      %p312 = pneg %p88
      %p313 = pneg %p85
      %p314 = pneg %p109
      %p315 = pneg %p106
      %p316 = pneg %p130
      %p317 = pneg %p127
      %p318 = pneg %p151
      %p319 = pneg %p148
      %p320 = pneg %p172
      %p321 = pneg %p169
      %s322 = scalar_lea.vmem %s7, 32
      %p323 = pneg %p193
      %p324 = pneg %p190
      %p325 = pneg %p214
      %p326 = pneg %p211
      %p327 = pneg %p240
      %p328 = pneg %p237
      %p329 = scmp.lt.s32.totalorder %s20, 1
      %s330 = scalar_select %p329, %s20, 1
      %s331 = smul.addr %s330, 8
      %s332 = scalar_lea.vmem %s9, %s331
      %p333 = scmp.lt.s32.totalorder %s20, 1
      %s334 = scalar_select %p333, %s20, 1
      %s335 = smul.addr %s334, 8
      %s336 = scalar_lea.vmem %s0, %s335
      %p337 = scmp.lt.s32.totalorder %s20, 1
      %s338 = scalar_select %p337, %s20, 1
      %s339 = scalar_lea.vmem %s1, %s338
      %s340 = scalar_lea.vmem %s7, 32
      %p341 = scmp.lt.s32.totalorder %s20, 1
      %s342 = scalar_select %p341, %s20, 1
      %s343 = smul.addr %s342, 8
      %s344 = scalar_lea.vmem %s9, %s343
      %v345 = vld [vmem:[%s336] sm:$0xff]
      %vm346 = vcmask 261120
      %v347 = vsel %vm346, %v345, 0.0
      %348 = vadd.xlane.f32.xlu0 %v347
      %v349 = vpop.xlane.xlu0 %348
      %v350 = vmul.f32 %v345, %v345
      %v351 = vsel %vm346, %v350, 0.0
      %352 = vadd.xlane.f32.xlu0 %v351
      %v353 = vpop.xlane.xlu0 %352
      %v354 = vmul.f32 %v349, 0.03125
      %v355 = vmul.f32 %v353, 0.03125
      %v356 = vmul.f32 %v354, %v354
      %v357 = vsub.f32 %v355, %v356
      %v358 = vmax.f32 %v357, 0.0
      %v359 = vsub.f32 %v345, %v354
      %v360 = vadd.f32 %v358, 1e-12
      %v361 = vrsqrt.pop %v360
      %v362 = vmul.f32 %v359, %v361
      %v363 = vld [vmem:[%s2] sm:$0x1]
      %v365 = vlaneseq
      %v366 = vshrl.u32 %v365, 7
      %v367 = vsub.s32 0, %v366
      %v368 = vrot.slane %v363, %v367
      %v370 = vmul.f32 %v362, %v368
      %v371 = vld [vmem:[%s3] sm:$0x1]
      %v373 = vlaneseq
      %v374 = vshrl.u32 %v373, 7
      %v375 = vsub.s32 0, %v374
      %v376 = vrot.slane %v371, %v375
      %v378 = vadd.f32 %v370, %v376
      %v379 = vld [vmem:[%s4] sm:$0xff]
      %v380 = vld [vmem:[%s4 + $0x8] sm:$0xff]
      %v381 = vld [vmem:[%s4 + $0x10] sm:$0xff]
      %v382 = vld [vmem:[%s4 + $0x18] sm:$0xff]
      %v383 = vld [vmem:[%s5] sm:$0x1]
      %v385 = vlaneseq
      %v386 = vshrl.u32 %v385, 7
      %v387 = vsub.s32 0, %v386
      %v388 = vrot.slane %v383, %v387
      %v391 = vsel %vm346, %v378, 0
      %393 = vmatprep.subr.mxu0 0.0
      %394 = vmatpush1.msra.mxu0 0.0
      %395 = vmatprep.subr.mxu0 0.0
      %396 = vmatpush1.msra.mxu0 0.0
      %397 = vmatprep.subr.mxu0 0.0
      %398 = vmatpush1.msra.mxu0 0.0
      %399 = vmatprep.subr.mxu0 0.0
      %400 = vmatpush1.msra.mxu0 0.0
      %401 = vmatprep.subr.mxu0 0.0
      %402 = vmatpush1.msra.mxu0 0.0
      %403 = vmatprep.subr.mxu0 0.0
      %404 = vmatpush1.msra.mxu0 0.0
      %405 = vmatprep.subr.mxu0 0.0
      %406 = vmatpush1.msra.mxu0 0.0
      %407 = vmatprep.subr.mxu0 0.0
      %408 = vmatpush1.msra.mxu0 0.0
      %409 = vmatprep.subr.mxu0 0.0
      %410 = vmatpush1.msra.mxu0 0.0
      %411 = vmatprep.subr.mxu0 0.0
      %412 = vmatpush1.msra.mxu0 0.0
      %413 = vmatprep.subr.mxu0 0.0
      %414 = vmatpush1.msra.mxu0 0.0
      %415 = vmatprep.subr.mxu0 0.0
      %416 = vmatpush1.msra.mxu0 0.0
      %417 = vmatprep.subr.mxu0 0.0
      %418 = vmatpush1.msra.mxu0 %v382
      %419 = vmatprep.subr.mxu0 0.0
      %420 = vmatpush1.msra.mxu0 %v381
      %421 = vmatprep.subr.mxu0 0.0
      %422 = vmatpush1.msra.mxu0 %v380
      %423 = vmatprep.subr.mxu0 0.0
      %424 = vmatpush1.msra.mxu0 %v379
      %425 = vmatprep.subr.mxu0 0.0
      %426 = vmatpush2.msra.mxu0 0.0
      %427 = vmatprep.subr.mxu0 0.0
      %428 = vmatpush2.msra.mxu0 0.0
      %429 = vmatprep.subr.mxu0 0.0
      %430 = vmatpush2.msra.mxu0 0.0
      %431 = vmatprep.subr.mxu0 0.0
      %432 = vmatpush2.msra.mxu0 0.0
      %433 = vmatprep.subr.mxu0 0.0
      %434 = vmatpush2.msra.mxu0 0.0
      %435 = vmatprep.subr.mxu0 0.0
      %436 = vmatpush2.msra.mxu0 0.0
      %437 = vmatprep.subr.mxu0 0.0
      %438 = vmatpush2.msra.mxu0 0.0
      %439 = vmatprep.subr.mxu0 0.0
      %440 = vmatpush2.msra.mxu0 0.0
      %441 = vmatprep.subr.mxu0 0.0
      %442 = vmatpush2.msra.mxu0 0.0
      %443 = vmatprep.subr.mxu0 0.0
      %444 = vmatpush2.msra.mxu0 0.0
      %445 = vmatprep.subr.mxu0 0.0
      %446 = vmatpush2.msra.mxu0 0.0
      %447 = vmatprep.subr.mxu0 0.0
      %448 = vmatpush2.msra.mxu0 0.0
      %449 = vmatprep.subr.mxu0 0.0
      %450 = vmatpush2.msra.mxu0 0.0
      %451 = vmatprep.subr.mxu0 0.0
      %452 = vmatpush2.msra.mxu0 0.0
      %453 = vmatprep.subr.mxu0 0.0
      %454 = vmatpush2.msra.mxu0 0.0
      %455 = vmatprep.subr.mxu0 0.0
      %456 = vmatpush2.msra.mxu0 0.0
      %457 = vmatprep.mubr.f32.mxu0 0.0
      %458 = vmatmul.mubr.f32.gmra.mxu0 %v391
      %v459 = vpop.f32.mrf.mxu0
      %v460 = vadd.f32 %v388, %v459
      %v461 = vpop.f32.mrf.mxu0
      %462 = vdwg.mxu0
      %v463 = vmul.f32 %v460, 0.35355338
      %v464 = vld [vmem:[%s339] sm:$0x1]
      %vm465 = vcmp.ne.f32.partialorder %v464, 0.0
      %v466 = vsel %vm465, 0.0, -1e+30
      %v468 = vlaneseq
      %v469 = vshrl.u32 %v468, 7
      %v470 = vsub.s32 0, %v469
      %v471 = vrot.slane %v466, %v470
      %474 = vrot.lane.b32.xlu0 %v460, 96
      %v475 = vpop.permute.xlu0 %474
      %vm476 = vcmask 64512
      %v478 = vsel %vm476, %v463, 0
      %v480 = vsel %vm476, %v475, 0
      %482 = vmatprep.subr.mxu0 0.0
      %483 = vmatpush1.xpose.msra.mxu0 0.0
      %484 = vmatprep.subr.mxu0 0.0
      %485 = vmatpush1.xpose.msra.mxu0 0.0
      %486 = vmatprep.subr.mxu0 0.0
      %487 = vmatpush1.xpose.msra.mxu0 0.0
      %488 = vmatprep.subr.mxu0 0.0
      %489 = vmatpush1.xpose.msra.mxu0 0.0
      %490 = vmatprep.subr.mxu0 0.0
      %491 = vmatpush1.xpose.msra.mxu0 0.0
      %492 = vmatprep.subr.mxu0 0.0
      %493 = vmatpush1.xpose.msra.mxu0 0.0
      %494 = vmatprep.subr.mxu0 0.0
      %495 = vmatpush1.xpose.msra.mxu0 0.0
      %496 = vmatprep.subr.mxu0 0.0
      %497 = vmatpush1.xpose.msra.mxu0 0.0
      %498 = vmatprep.subr.mxu0 0.0
      %499 = vmatpush1.xpose.msra.mxu0 0.0
      %500 = vmatprep.subr.mxu0 0.0
      %501 = vmatpush1.xpose.msra.mxu0 0.0
      %502 = vmatprep.subr.mxu0 0.0
      %503 = vmatpush1.xpose.msra.mxu0 0.0
      %504 = vmatprep.subr.mxu0 0.0
      %505 = vmatpush1.xpose.msra.mxu0 0.0
      %506 = vmatprep.subr.mxu0 0.0
      %507 = vmatpush1.xpose.msra.mxu0 0.0
      %508 = vmatprep.subr.mxu0 0.0
      %509 = vmatpush1.xpose.msra.mxu0 0.0
      %510 = vmatprep.subr.mxu0 0.0
      %511 = vmatpush1.xpose.msra.mxu0 0.0
      %512 = vmatprep.subr.mxu0 0.0
      %513 = vmatpush1.xpose.msra.mxu0 %v480
      %514 = vmatprep.subr.mxu0 0.0
      %515 = vmatpush2.xpose.msra.mxu0 0.0
      %516 = vmatprep.subr.mxu0 0.0
      %517 = vmatpush2.xpose.msra.mxu0 0.0
      %518 = vmatprep.subr.mxu0 0.0
      %519 = vmatpush2.xpose.msra.mxu0 0.0
      %520 = vmatprep.subr.mxu0 0.0
      %521 = vmatpush2.xpose.msra.mxu0 0.0
      %522 = vmatprep.subr.mxu0 0.0
      %523 = vmatpush2.xpose.msra.mxu0 0.0
      %524 = vmatprep.subr.mxu0 0.0
      %525 = vmatpush2.xpose.msra.mxu0 0.0
      %526 = vmatprep.subr.mxu0 0.0
      %527 = vmatpush2.xpose.msra.mxu0 0.0
      %528 = vmatprep.subr.mxu0 0.0
      %529 = vmatpush2.xpose.msra.mxu0 0.0
      %530 = vmatprep.subr.mxu0 0.0
      %531 = vmatpush2.xpose.msra.mxu0 0.0
      %532 = vmatprep.subr.mxu0 0.0
      %533 = vmatpush2.xpose.msra.mxu0 0.0
      %534 = vmatprep.subr.mxu0 0.0
      %535 = vmatpush2.xpose.msra.mxu0 0.0
      %536 = vmatprep.subr.mxu0 0.0
      %537 = vmatpush2.xpose.msra.mxu0 0.0
      %538 = vmatprep.subr.mxu0 0.0
      %539 = vmatpush2.xpose.msra.mxu0 0.0
      %540 = vmatprep.subr.mxu0 0.0
      %541 = vmatpush2.xpose.msra.mxu0 0.0
      %542 = vmatprep.subr.mxu0 0.0
      %543 = vmatpush2.xpose.msra.mxu0 0.0
      %544 = vmatprep.subr.mxu0 0.0
      %545 = vmatpush2.xpose.msra.mxu0 0.0
      %546 = vmatprep.mubr.f32.mxu0 0.0
      %547 = vmatmul.mubr.f32.gmra.mxu0 %v478
      %v548 = vpop.f32.mrf.mxu0
      %v549 = vadd.f32 %v471, %v548
      %v550 = vpop.f32.mrf.mxu0
      %551 = vdwg.mxu0
      %v552 = vsel %vm476, %v549, -inf
      %553 = vmax.xlane.f32.xlu0 %v552
      %v554 = vpop.xlane.xlu0 %553
      %v555 = vsub.f32 %v549, %v554
      %v556 = vmul.f32 %v555, 1.442695
      %v557 = vpow.pop %v556
      %v558 = vsel %vm476, %v557, 0.0
      %559 = vadd.xlane.f32.xlu0 %v558
      %v560 = vpop.xlane.xlu0 %559
      %561 = vrot.lane.b32.xlu0 %v460, 64
      %v562 = vpop.permute.xlu0 %561
      %v565 = vsel %vm476, %v557, 0
      %567 = vmatprep.subr.mxu0 0.0
      %568 = vmatpush1.msra.mxu0 0.0
      %569 = vmatprep.subr.mxu0 0.0
      %570 = vmatpush1.msra.mxu0 0.0
      %571 = vmatprep.subr.mxu0 0.0
      %572 = vmatpush1.msra.mxu0 0.0
      %573 = vmatprep.subr.mxu0 0.0
      %574 = vmatpush1.msra.mxu0 0.0
      %575 = vmatprep.subr.mxu0 0.0
      %576 = vmatpush1.msra.mxu0 0.0
      %577 = vmatprep.subr.mxu0 0.0
      %578 = vmatpush1.msra.mxu0 0.0
      %579 = vmatprep.subr.mxu0 0.0
      %580 = vmatpush1.msra.mxu0 0.0
      %581 = vmatprep.subr.mxu0 0.0
      %582 = vmatpush1.msra.mxu0 0.0
      %583 = vmatprep.subr.mxu0 0.0
      %584 = vmatpush1.msra.mxu0 0.0
      %585 = vmatprep.subr.mxu0 0.0
      %586 = vmatpush1.msra.mxu0 0.0
      %587 = vmatprep.subr.mxu0 0.0
      %588 = vmatpush1.msra.mxu0 0.0
      %589 = vmatprep.subr.mxu0 0.0
      %590 = vmatpush1.msra.mxu0 0.0
      %591 = vmatprep.subr.mxu0 0.0
      %592 = vmatpush1.msra.mxu0 0.0
      %593 = vmatprep.subr.mxu0 0.0
      %594 = vmatpush1.msra.mxu0 0.0
      %595 = vmatprep.subr.mxu0 0.0
      %596 = vmatpush1.msra.mxu0 0.0
      %597 = vmatprep.subr.mxu0 0.0
      %598 = vmatpush1.msra.mxu0 %v562
      %599 = vmatprep.subr.mxu0 0.0
      %600 = vmatpush2.msra.mxu0 0.0
      %601 = vmatprep.subr.mxu0 0.0
      %602 = vmatpush2.msra.mxu0 0.0
      %603 = vmatprep.subr.mxu0 0.0
      %604 = vmatpush2.msra.mxu0 0.0
      %605 = vmatprep.subr.mxu0 0.0
      %606 = vmatpush2.msra.mxu0 0.0
      %607 = vmatprep.subr.mxu0 0.0
      %608 = vmatpush2.msra.mxu0 0.0
      %609 = vmatprep.subr.mxu0 0.0
      %610 = vmatpush2.msra.mxu0 0.0
      %611 = vmatprep.subr.mxu0 0.0
      %612 = vmatpush2.msra.mxu0 0.0
      %613 = vmatprep.subr.mxu0 0.0
      %614 = vmatpush2.msra.mxu0 0.0
      %615 = vmatprep.subr.mxu0 0.0
      %616 = vmatpush2.msra.mxu0 0.0
      %617 = vmatprep.subr.mxu0 0.0
      %618 = vmatpush2.msra.mxu0 0.0
      %619 = vmatprep.subr.mxu0 0.0
      %620 = vmatpush2.msra.mxu0 0.0
      %621 = vmatprep.subr.mxu0 0.0
      %622 = vmatpush2.msra.mxu0 0.0
      %623 = vmatprep.subr.mxu0 0.0
      %624 = vmatpush2.msra.mxu0 0.0
      %625 = vmatprep.subr.mxu0 0.0
      %626 = vmatpush2.msra.mxu0 0.0
      %627 = vmatprep.subr.mxu0 0.0
      %628 = vmatpush2.msra.mxu0 0.0
      %629 = vmatprep.subr.mxu0 0.0
      %630 = vmatpush2.msra.mxu0 0.0
      %631 = vmatprep.mubr.f32.mxu0 0.0
      %632 = vmatmul.mubr.f32.gmra.mxu0 %v565
      %v633 = vpop.f32.mrf.mxu0
      %v634 = vadd.f32 0.0, %v633
      %v635 = vpop.f32.mrf.mxu0
      %636 = vdwg.mxu0
      %v637 = vrcp.pop %v560
      %v638 = vmul.f32 1.0, %v637
      %v639 = vmul.f32 %v634, %v638
      %640 = vst.msk [vmem:[#allocation2] sm:$0xff] %vm476, %v639
      %641 = vrot.lane.b32.xlu0 %v463, 120
      %v642 = vpop.permute.xlu0 %641
      %643 = vrot.lane.b32.xlu0 %v460, 88
      %v644 = vpop.permute.xlu0 %643
      %v645 = vsel %vm476, %v642, 0
      %v647 = vsel %vm476, %v644, 0
      %649 = vmatprep.subr.mxu0 0.0
      %650 = vmatpush1.xpose.msra.mxu0 0.0
      %651 = vmatprep.subr.mxu0 0.0
      %652 = vmatpush1.xpose.msra.mxu0 0.0
      %653 = vmatprep.subr.mxu0 0.0
      %654 = vmatpush1.xpose.msra.mxu0 0.0
      %655 = vmatprep.subr.mxu0 0.0
      %656 = vmatpush1.xpose.msra.mxu0 0.0
      %657 = vmatprep.subr.mxu0 0.0
      %658 = vmatpush1.xpose.msra.mxu0 0.0
      %659 = vmatprep.subr.mxu0 0.0
      %660 = vmatpush1.xpose.msra.mxu0 0.0
      %661 = vmatprep.subr.mxu0 0.0
      %662 = vmatpush1.xpose.msra.mxu0 0.0
      %663 = vmatprep.subr.mxu0 0.0
      %664 = vmatpush1.xpose.msra.mxu0 0.0
      %665 = vmatprep.subr.mxu0 0.0
      %666 = vmatpush1.xpose.msra.mxu0 0.0
      %667 = vmatprep.subr.mxu0 0.0
      %668 = vmatpush1.xpose.msra.mxu0 0.0
      %669 = vmatprep.subr.mxu0 0.0
      %670 = vmatpush1.xpose.msra.mxu0 0.0
      %671 = vmatprep.subr.mxu0 0.0
      %672 = vmatpush1.xpose.msra.mxu0 0.0
      %673 = vmatprep.subr.mxu0 0.0
      %674 = vmatpush1.xpose.msra.mxu0 0.0
      %675 = vmatprep.subr.mxu0 0.0
      %676 = vmatpush1.xpose.msra.mxu0 0.0
      %677 = vmatprep.subr.mxu0 0.0
      %678 = vmatpush1.xpose.msra.mxu0 0.0
      %679 = vmatprep.subr.mxu0 0.0
      %680 = vmatpush1.xpose.msra.mxu0 %v647
      %681 = vmatprep.subr.mxu0 0.0
      %682 = vmatpush2.xpose.msra.mxu0 0.0
      %683 = vmatprep.subr.mxu0 0.0
      %684 = vmatpush2.xpose.msra.mxu0 0.0
      %685 = vmatprep.subr.mxu0 0.0
      %686 = vmatpush2.xpose.msra.mxu0 0.0
      %687 = vmatprep.subr.mxu0 0.0
      %688 = vmatpush2.xpose.msra.mxu0 0.0
      %689 = vmatprep.subr.mxu0 0.0
      %690 = vmatpush2.xpose.msra.mxu0 0.0
      %691 = vmatprep.subr.mxu0 0.0
      %692 = vmatpush2.xpose.msra.mxu0 0.0
      %693 = vmatprep.subr.mxu0 0.0
      %694 = vmatpush2.xpose.msra.mxu0 0.0
      %695 = vmatprep.subr.mxu0 0.0
      %696 = vmatpush2.xpose.msra.mxu0 0.0
      %697 = vmatprep.subr.mxu0 0.0
      %698 = vmatpush2.xpose.msra.mxu0 0.0
      %699 = vmatprep.subr.mxu0 0.0
      %700 = vmatpush2.xpose.msra.mxu0 0.0
      %701 = vmatprep.subr.mxu0 0.0
      %702 = vmatpush2.xpose.msra.mxu0 0.0
      %703 = vmatprep.subr.mxu0 0.0
      %704 = vmatpush2.xpose.msra.mxu0 0.0
      %705 = vmatprep.subr.mxu0 0.0
      %706 = vmatpush2.xpose.msra.mxu0 0.0
      %707 = vmatprep.subr.mxu0 0.0
      %708 = vmatpush2.xpose.msra.mxu0 0.0
      %709 = vmatprep.subr.mxu0 0.0
      %710 = vmatpush2.xpose.msra.mxu0 0.0
      %711 = vmatprep.subr.mxu0 0.0
      %712 = vmatpush2.xpose.msra.mxu0 0.0
      %713 = vmatprep.mubr.f32.mxu0 0.0
      %714 = vmatmul.mubr.f32.gmra.mxu0 %v645
      %v715 = vpop.f32.mrf.mxu0
      %v716 = vadd.f32 %v471, %v715
      %v717 = vpop.f32.mrf.mxu0
      %718 = vdwg.mxu0
      %v719 = vsel %vm476, %v716, -inf
      %720 = vmax.xlane.f32.xlu0 %v719
      %v721 = vpop.xlane.xlu0 %720
      %v722 = vsub.f32 %v716, %v721
      %v723 = vmul.f32 %v722, 1.442695
      %v724 = vpow.pop %v723
      %v725 = vsel %vm476, %v724, 0.0
      %726 = vadd.xlane.f32.xlu0 %v725
      %v727 = vpop.xlane.xlu0 %726
      %728 = vrot.lane.b32.xlu0 %v460, 56
      %v729 = vpop.permute.xlu0 %728
      %v732 = vsel %vm476, %v724, 0
      %734 = vmatprep.subr.mxu0 0.0
      %735 = vmatpush1.msra.mxu0 0.0
      %736 = vmatprep.subr.mxu0 0.0
      %737 = vmatpush1.msra.mxu0 0.0
      %738 = vmatprep.subr.mxu0 0.0
      %739 = vmatpush1.msra.mxu0 0.0
      %740 = vmatprep.subr.mxu0 0.0
      %741 = vmatpush1.msra.mxu0 0.0
      %742 = vmatprep.subr.mxu0 0.0
      %743 = vmatpush1.msra.mxu0 0.0
      %744 = vmatprep.subr.mxu0 0.0
      %745 = vmatpush1.msra.mxu0 0.0
      %746 = vmatprep.subr.mxu0 0.0
      %747 = vmatpush1.msra.mxu0 0.0
      %748 = vmatprep.subr.mxu0 0.0
      %749 = vmatpush1.msra.mxu0 0.0
      %750 = vmatprep.subr.mxu0 0.0
      %751 = vmatpush1.msra.mxu0 0.0
      %752 = vmatprep.subr.mxu0 0.0
      %753 = vmatpush1.msra.mxu0 0.0
      %754 = vmatprep.subr.mxu0 0.0
      %755 = vmatpush1.msra.mxu0 0.0
      %756 = vmatprep.subr.mxu0 0.0
      %757 = vmatpush1.msra.mxu0 0.0
      %758 = vmatprep.subr.mxu0 0.0
      %759 = vmatpush1.msra.mxu0 0.0
      %760 = vmatprep.subr.mxu0 0.0
      %761 = vmatpush1.msra.mxu0 0.0
      %762 = vmatprep.subr.mxu0 0.0
      %763 = vmatpush1.msra.mxu0 0.0
      %764 = vmatprep.subr.mxu0 0.0
      %765 = vmatpush1.msra.mxu0 %v729
      %766 = vmatprep.subr.mxu0 0.0
      %767 = vmatpush2.msra.mxu0 0.0
      %768 = vmatprep.subr.mxu0 0.0
      %769 = vmatpush2.msra.mxu0 0.0
      %770 = vmatprep.subr.mxu0 0.0
      %771 = vmatpush2.msra.mxu0 0.0
      %772 = vmatprep.subr.mxu0 0.0
      %773 = vmatpush2.msra.mxu0 0.0
      %774 = vmatprep.subr.mxu0 0.0
      %775 = vmatpush2.msra.mxu0 0.0
      %776 = vmatprep.subr.mxu0 0.0
      %777 = vmatpush2.msra.mxu0 0.0
      %778 = vmatprep.subr.mxu0 0.0
      %779 = vmatpush2.msra.mxu0 0.0
      %780 = vmatprep.subr.mxu0 0.0
      %781 = vmatpush2.msra.mxu0 0.0
      %782 = vmatprep.subr.mxu0 0.0
      %783 = vmatpush2.msra.mxu0 0.0
      %784 = vmatprep.subr.mxu0 0.0
      %785 = vmatpush2.msra.mxu0 0.0
      %786 = vmatprep.subr.mxu0 0.0
      %787 = vmatpush2.msra.mxu0 0.0
      %788 = vmatprep.subr.mxu0 0.0
      %789 = vmatpush2.msra.mxu0 0.0
      %790 = vmatprep.subr.mxu0 0.0
      %791 = vmatpush2.msra.mxu0 0.0
      %792 = vmatprep.subr.mxu0 0.0
      %793 = vmatpush2.msra.mxu0 0.0
      %794 = vmatprep.subr.mxu0 0.0
      %795 = vmatpush2.msra.mxu0 0.0
      %796 = vmatprep.subr.mxu0 0.0
      %797 = vmatpush2.msra.mxu0 0.0
      %798 = vmatprep.mubr.f32.mxu0 0.0
      %799 = vmatmul.mubr.f32.gmra.mxu0 %v732
      %v800 = vpop.f32.mrf.mxu0
      %v801 = vadd.f32 0.0, %v800
      %v802 = vpop.f32.mrf.mxu0
      %803 = vdwg.mxu0
      %v804 = vrcp.pop %v727
      %v805 = vmul.f32 1.0, %v804
      %v806 = vmul.f32 %v801, %v805
      %808 = vrot.lane.b32.xlu0 %v806, 8
      %v809 = vpop.permute.xlu0 %808
      %vm811 = vcmask 130112
      %812 = vst.msk [vmem:[#allocation2] sm:$0xff] %vm811, %v809
      %813 = vrot.lane.b32.xlu0 %v463, 112
      %v814 = vpop.permute.xlu0 %813
      %815 = vrot.lane.b32.xlu0 %v460, 80
      %v816 = vpop.permute.xlu0 %815
      %v817 = vsel %vm476, %v814, 0
      %v819 = vsel %vm476, %v816, 0
      %821 = vmatprep.subr.mxu0 0.0
      %822 = vmatpush1.xpose.msra.mxu0 0.0
      %823 = vmatprep.subr.mxu0 0.0
      %824 = vmatpush1.xpose.msra.mxu0 0.0
      %825 = vmatprep.subr.mxu0 0.0
      %826 = vmatpush1.xpose.msra.mxu0 0.0
      %827 = vmatprep.subr.mxu0 0.0
      %828 = vmatpush1.xpose.msra.mxu0 0.0
      %829 = vmatprep.subr.mxu0 0.0
      %830 = vmatpush1.xpose.msra.mxu0 0.0
      %831 = vmatprep.subr.mxu0 0.0
      %832 = vmatpush1.xpose.msra.mxu0 0.0
      %833 = vmatprep.subr.mxu0 0.0
      %834 = vmatpush1.xpose.msra.mxu0 0.0
      %835 = vmatprep.subr.mxu0 0.0
      %836 = vmatpush1.xpose.msra.mxu0 0.0
      %837 = vmatprep.subr.mxu0 0.0
      %838 = vmatpush1.xpose.msra.mxu0 0.0
      %839 = vmatprep.subr.mxu0 0.0
      %840 = vmatpush1.xpose.msra.mxu0 0.0
      %841 = vmatprep.subr.mxu0 0.0
      %842 = vmatpush1.xpose.msra.mxu0 0.0
      %843 = vmatprep.subr.mxu0 0.0
      %844 = vmatpush1.xpose.msra.mxu0 0.0
      %845 = vmatprep.subr.mxu0 0.0
      %846 = vmatpush1.xpose.msra.mxu0 0.0
      %847 = vmatprep.subr.mxu0 0.0
      %848 = vmatpush1.xpose.msra.mxu0 0.0
      %849 = vmatprep.subr.mxu0 0.0
      %850 = vmatpush1.xpose.msra.mxu0 0.0
      %851 = vmatprep.subr.mxu0 0.0
      %852 = vmatpush1.xpose.msra.mxu0 %v819
      %853 = vmatprep.subr.mxu0 0.0
      %854 = vmatpush2.xpose.msra.mxu0 0.0
      %855 = vmatprep.subr.mxu0 0.0
      %856 = vmatpush2.xpose.msra.mxu0 0.0
      %857 = vmatprep.subr.mxu0 0.0
      %858 = vmatpush2.xpose.msra.mxu0 0.0
      %859 = vmatprep.subr.mxu0 0.0
      %860 = vmatpush2.xpose.msra.mxu0 0.0
      %861 = vmatprep.subr.mxu0 0.0
      %862 = vmatpush2.xpose.msra.mxu0 0.0
      %863 = vmatprep.subr.mxu0 0.0
      %864 = vmatpush2.xpose.msra.mxu0 0.0
      %865 = vmatprep.subr.mxu0 0.0
      %866 = vmatpush2.xpose.msra.mxu0 0.0
      %867 = vmatprep.subr.mxu0 0.0
      %868 = vmatpush2.xpose.msra.mxu0 0.0
      %869 = vmatprep.subr.mxu0 0.0
      %870 = vmatpush2.xpose.msra.mxu0 0.0
      %871 = vmatprep.subr.mxu0 0.0
      %872 = vmatpush2.xpose.msra.mxu0 0.0
      %873 = vmatprep.subr.mxu0 0.0
      %874 = vmatpush2.xpose.msra.mxu0 0.0
      %875 = vmatprep.subr.mxu0 0.0
      %876 = vmatpush2.xpose.msra.mxu0 0.0
      %877 = vmatprep.subr.mxu0 0.0
      %878 = vmatpush2.xpose.msra.mxu0 0.0
      %879 = vmatprep.subr.mxu0 0.0
      %880 = vmatpush2.xpose.msra.mxu0 0.0
      %881 = vmatprep.subr.mxu0 0.0
      %882 = vmatpush2.xpose.msra.mxu0 0.0
      %883 = vmatprep.subr.mxu0 0.0
      %884 = vmatpush2.xpose.msra.mxu0 0.0
      %885 = vmatprep.mubr.f32.mxu0 0.0
      %886 = vmatmul.mubr.f32.gmra.mxu0 %v817
      %v887 = vpop.f32.mrf.mxu0
      %v888 = vadd.f32 %v471, %v887
      %v889 = vpop.f32.mrf.mxu0
      %890 = vdwg.mxu0
      %v891 = vsel %vm476, %v888, -inf
      %892 = vmax.xlane.f32.xlu0 %v891
      %v893 = vpop.xlane.xlu0 %892
      %v894 = vsub.f32 %v888, %v893
      %v895 = vmul.f32 %v894, 1.442695
      %v896 = vpow.pop %v895
      %v897 = vsel %vm476, %v896, 0.0
      %898 = vadd.xlane.f32.xlu0 %v897
      %v899 = vpop.xlane.xlu0 %898
      %900 = vrot.lane.b32.xlu0 %v460, 48
      %v901 = vpop.permute.xlu0 %900
      %v904 = vsel %vm476, %v896, 0
      %906 = vmatprep.subr.mxu0 0.0
      %907 = vmatpush1.msra.mxu0 0.0
      %908 = vmatprep.subr.mxu0 0.0
      %909 = vmatpush1.msra.mxu0 0.0
      %910 = vmatprep.subr.mxu0 0.0
      %911 = vmatpush1.msra.mxu0 0.0
      %912 = vmatprep.subr.mxu0 0.0
      %913 = vmatpush1.msra.mxu0 0.0
      %914 = vmatprep.subr.mxu0 0.0
      %915 = vmatpush1.msra.mxu0 0.0
      %916 = vmatprep.subr.mxu0 0.0
      %917 = vmatpush1.msra.mxu0 0.0
      %918 = vmatprep.subr.mxu0 0.0
      %919 = vmatpush1.msra.mxu0 0.0
      %920 = vmatprep.subr.mxu0 0.0
      %921 = vmatpush1.msra.mxu0 0.0
      %922 = vmatprep.subr.mxu0 0.0
      %923 = vmatpush1.msra.mxu0 0.0
      %924 = vmatprep.subr.mxu0 0.0
      %925 = vmatpush1.msra.mxu0 0.0
      %926 = vmatprep.subr.mxu0 0.0
      %927 = vmatpush1.msra.mxu0 0.0
      %928 = vmatprep.subr.mxu0 0.0
      %929 = vmatpush1.msra.mxu0 0.0
      %930 = vmatprep.subr.mxu0 0.0
      %931 = vmatpush1.msra.mxu0 0.0
      %932 = vmatprep.subr.mxu0 0.0
      %933 = vmatpush1.msra.mxu0 0.0
      %934 = vmatprep.subr.mxu0 0.0
      %935 = vmatpush1.msra.mxu0 0.0
      %936 = vmatprep.subr.mxu0 0.0
      %937 = vmatpush1.msra.mxu0 %v901
      %938 = vmatprep.subr.mxu0 0.0
      %939 = vmatpush2.msra.mxu0 0.0
      %940 = vmatprep.subr.mxu0 0.0
      %941 = vmatpush2.msra.mxu0 0.0
      %942 = vmatprep.subr.mxu0 0.0
      %943 = vmatpush2.msra.mxu0 0.0
      %944 = vmatprep.subr.mxu0 0.0
      %945 = vmatpush2.msra.mxu0 0.0
      %946 = vmatprep.subr.mxu0 0.0
      %947 = vmatpush2.msra.mxu0 0.0
      %948 = vmatprep.subr.mxu0 0.0
      %949 = vmatpush2.msra.mxu0 0.0
      %950 = vmatprep.subr.mxu0 0.0
      %951 = vmatpush2.msra.mxu0 0.0
      %952 = vmatprep.subr.mxu0 0.0
      %953 = vmatpush2.msra.mxu0 0.0
      %954 = vmatprep.subr.mxu0 0.0
      %955 = vmatpush2.msra.mxu0 0.0
      %956 = vmatprep.subr.mxu0 0.0
      %957 = vmatpush2.msra.mxu0 0.0
      %958 = vmatprep.subr.mxu0 0.0
      %959 = vmatpush2.msra.mxu0 0.0
      %960 = vmatprep.subr.mxu0 0.0
      %961 = vmatpush2.msra.mxu0 0.0
      %962 = vmatprep.subr.mxu0 0.0
      %963 = vmatpush2.msra.mxu0 0.0
      %964 = vmatprep.subr.mxu0 0.0
      %965 = vmatpush2.msra.mxu0 0.0
      %966 = vmatprep.subr.mxu0 0.0
      %967 = vmatpush2.msra.mxu0 0.0
      %968 = vmatprep.subr.mxu0 0.0
      %969 = vmatpush2.msra.mxu0 0.0
      %970 = vmatprep.mubr.f32.mxu0 0.0
      %971 = vmatmul.mubr.f32.gmra.mxu0 %v904
      %v972 = vpop.f32.mrf.mxu0
      %v973 = vadd.f32 0.0, %v972
      %v974 = vpop.f32.mrf.mxu0
      %975 = vdwg.mxu0
      %v976 = vrcp.pop %v899
      %v977 = vmul.f32 1.0, %v976
      %v978 = vmul.f32 %v973, %v977
      %980 = vrot.lane.b32.xlu0 %v978, 16
      %v981 = vpop.permute.xlu0 %980
      %vm983 = vcmask 195712
      %984 = vst.msk [vmem:[#allocation2] sm:$0xff] %vm983, %v981
      %985 = vrot.lane.b32.xlu0 %v463, 104
      %v986 = vpop.permute.xlu0 %985
      %987 = vrot.lane.b32.xlu0 %v460, 72
      %v988 = vpop.permute.xlu0 %987
      %v989 = vsel %vm476, %v986, 0
      %v991 = vsel %vm476, %v988, 0
      %993 = vmatprep.subr.mxu0 0.0
      %994 = vmatpush1.xpose.msra.mxu0 0.0
      %995 = vmatprep.subr.mxu0 0.0
      %996 = vmatpush1.xpose.msra.mxu0 0.0
      %997 = vmatprep.subr.mxu0 0.0
      %998 = vmatpush1.xpose.msra.mxu0 0.0
      %999 = vmatprep.subr.mxu0 0.0
      %1000 = vmatpush1.xpose.msra.mxu0 0.0
      %1001 = vmatprep.subr.mxu0 0.0
      %1002 = vmatpush1.xpose.msra.mxu0 0.0
      %1003 = vmatprep.subr.mxu0 0.0
      %1004 = vmatpush1.xpose.msra.mxu0 0.0
      %1005 = vmatprep.subr.mxu0 0.0
      %1006 = vmatpush1.xpose.msra.mxu0 0.0
      %1007 = vmatprep.subr.mxu0 0.0
      %1008 = vmatpush1.xpose.msra.mxu0 0.0
      %1009 = vmatprep.subr.mxu0 0.0
      %1010 = vmatpush1.xpose.msra.mxu0 0.0
      %1011 = vmatprep.subr.mxu0 0.0
      %1012 = vmatpush1.xpose.msra.mxu0 0.0
      %1013 = vmatprep.subr.mxu0 0.0
      %1014 = vmatpush1.xpose.msra.mxu0 0.0
      %1015 = vmatprep.subr.mxu0 0.0
      %1016 = vmatpush1.xpose.msra.mxu0 0.0
      %1017 = vmatprep.subr.mxu0 0.0
      %1018 = vmatpush1.xpose.msra.mxu0 0.0
      %1019 = vmatprep.subr.mxu0 0.0
      %1020 = vmatpush1.xpose.msra.mxu0 0.0
      %1021 = vmatprep.subr.mxu0 0.0
      %1022 = vmatpush1.xpose.msra.mxu0 0.0
      %1023 = vmatprep.subr.mxu0 0.0
      %1024 = vmatpush1.xpose.msra.mxu0 %v991
      %1025 = vmatprep.subr.mxu0 0.0
      %1026 = vmatpush2.xpose.msra.mxu0 0.0
      %1027 = vmatprep.subr.mxu0 0.0
      %1028 = vmatpush2.xpose.msra.mxu0 0.0
      %1029 = vmatprep.subr.mxu0 0.0
      %1030 = vmatpush2.xpose.msra.mxu0 0.0
      %1031 = vmatprep.subr.mxu0 0.0
      %1032 = vmatpush2.xpose.msra.mxu0 0.0
      %1033 = vmatprep.subr.mxu0 0.0
      %1034 = vmatpush2.xpose.msra.mxu0 0.0
      %1035 = vmatprep.subr.mxu0 0.0
      %1036 = vmatpush2.xpose.msra.mxu0 0.0
      %1037 = vmatprep.subr.mxu0 0.0
      %1038 = vmatpush2.xpose.msra.mxu0 0.0
      %1039 = vmatprep.subr.mxu0 0.0
      %1040 = vmatpush2.xpose.msra.mxu0 0.0
      %1041 = vmatprep.subr.mxu0 0.0
      %1042 = vmatpush2.xpose.msra.mxu0 0.0
      %1043 = vmatprep.subr.mxu0 0.0
      %1044 = vmatpush2.xpose.msra.mxu0 0.0
      %1045 = vmatprep.subr.mxu0 0.0
      %1046 = vmatpush2.xpose.msra.mxu0 0.0
      %1047 = vmatprep.subr.mxu0 0.0
      %1048 = vmatpush2.xpose.msra.mxu0 0.0
      %1049 = vmatprep.subr.mxu0 0.0
      %1050 = vmatpush2.xpose.msra.mxu0 0.0
      %1051 = vmatprep.subr.mxu0 0.0
      %1052 = vmatpush2.xpose.msra.mxu0 0.0
      %1053 = vmatprep.subr.mxu0 0.0
      %1054 = vmatpush2.xpose.msra.mxu0 0.0
      %1055 = vmatprep.subr.mxu0 0.0
      %1056 = vmatpush2.xpose.msra.mxu0 0.0
      %1057 = vmatprep.mubr.f32.mxu0 0.0
      %1058 = vmatmul.mubr.f32.gmra.mxu0 %v989
      %v1059 = vpop.f32.mrf.mxu0
      %v1060 = vadd.f32 %v471, %v1059
      %v1061 = vpop.f32.mrf.mxu0
      %1062 = vdwg.mxu0
      %v1063 = vsel %vm476, %v1060, -inf
      %1064 = vmax.xlane.f32.xlu0 %v1063
      %v1065 = vpop.xlane.xlu0 %1064
      %v1066 = vsub.f32 %v1060, %v1065
      %v1067 = vmul.f32 %v1066, 1.442695
      %v1068 = vpow.pop %v1067
      %v1069 = vsel %vm476, %v1068, 0.0
      %1070 = vadd.xlane.f32.xlu0 %v1069
      %v1071 = vpop.xlane.xlu0 %1070
      %1072 = vrot.lane.b32.xlu0 %v460, 40
      %v1073 = vpop.permute.xlu0 %1072
      %v1076 = vsel %vm476, %v1068, 0
      %1078 = vmatprep.subr.mxu0 0.0
      %1079 = vmatpush1.msra.mxu0 0.0
      %1080 = vmatprep.subr.mxu0 0.0
      %1081 = vmatpush1.msra.mxu0 0.0
      %1082 = vmatprep.subr.mxu0 0.0
      %1083 = vmatpush1.msra.mxu0 0.0
      %1084 = vmatprep.subr.mxu0 0.0
      %1085 = vmatpush1.msra.mxu0 0.0
      %1086 = vmatprep.subr.mxu0 0.0
      %1087 = vmatpush1.msra.mxu0 0.0
      %1088 = vmatprep.subr.mxu0 0.0
      %1089 = vmatpush1.msra.mxu0 0.0
      %1090 = vmatprep.subr.mxu0 0.0
      %1091 = vmatpush1.msra.mxu0 0.0
      %1092 = vmatprep.subr.mxu0 0.0
      %1093 = vmatpush1.msra.mxu0 0.0
      %1094 = vmatprep.subr.mxu0 0.0
      %1095 = vmatpush1.msra.mxu0 0.0
      %1096 = vmatprep.subr.mxu0 0.0
      %1097 = vmatpush1.msra.mxu0 0.0
      %1098 = vmatprep.subr.mxu0 0.0
      %1099 = vmatpush1.msra.mxu0 0.0
      %1100 = vmatprep.subr.mxu0 0.0
      %1101 = vmatpush1.msra.mxu0 0.0
      %1102 = vmatprep.subr.mxu0 0.0
      %1103 = vmatpush1.msra.mxu0 0.0
      %1104 = vmatprep.subr.mxu0 0.0
      %1105 = vmatpush1.msra.mxu0 0.0
      %1106 = vmatprep.subr.mxu0 0.0
      %1107 = vmatpush1.msra.mxu0 0.0
      %1108 = vmatprep.subr.mxu0 0.0
      %1109 = vmatpush1.msra.mxu0 %v1073
      %1110 = vmatprep.subr.mxu0 0.0
      %1111 = vmatpush2.msra.mxu0 0.0
      %1112 = vmatprep.subr.mxu0 0.0
      %1113 = vmatpush2.msra.mxu0 0.0
      %1114 = vmatprep.subr.mxu0 0.0
      %1115 = vmatpush2.msra.mxu0 0.0
      %1116 = vmatprep.subr.mxu0 0.0
      %1117 = vmatpush2.msra.mxu0 0.0
      %1118 = vmatprep.subr.mxu0 0.0
      %1119 = vmatpush2.msra.mxu0 0.0
      %1120 = vmatprep.subr.mxu0 0.0
      %1121 = vmatpush2.msra.mxu0 0.0
      %1122 = vmatprep.subr.mxu0 0.0
      %1123 = vmatpush2.msra.mxu0 0.0
      %1124 = vmatprep.subr.mxu0 0.0
      %1125 = vmatpush2.msra.mxu0 0.0
      %1126 = vmatprep.subr.mxu0 0.0
      %1127 = vmatpush2.msra.mxu0 0.0
      %1128 = vmatprep.subr.mxu0 0.0
      %1129 = vmatpush2.msra.mxu0 0.0
      %1130 = vmatprep.subr.mxu0 0.0
      %1131 = vmatpush2.msra.mxu0 0.0
      %1132 = vmatprep.subr.mxu0 0.0
      %1133 = vmatpush2.msra.mxu0 0.0
      %1134 = vmatprep.subr.mxu0 0.0
      %1135 = vmatpush2.msra.mxu0 0.0
      %1136 = vmatprep.subr.mxu0 0.0
      %1137 = vmatpush2.msra.mxu0 0.0
      %1138 = vmatprep.subr.mxu0 0.0
      %1139 = vmatpush2.msra.mxu0 0.0
      %1140 = vmatprep.subr.mxu0 0.0
      %1141 = vmatpush2.msra.mxu0 0.0
      %1142 = vmatprep.mubr.f32.mxu0 0.0
      %1143 = vmatmul.mubr.f32.gmra.mxu0 %v1076
      %v1144 = vpop.f32.mrf.mxu0
      %v1145 = vadd.f32 0.0, %v1144
      %v1146 = vpop.f32.mrf.mxu0
      %1147 = vdwg.mxu0
      %v1148 = vrcp.pop %v1071
      %v1149 = vmul.f32 1.0, %v1148
      %v1150 = vmul.f32 %v1145, %v1149
      %1152 = vrot.lane.b32.xlu0 %v1150, 24
      %v1153 = vpop.permute.xlu0 %1152
      %vm1155 = vcmask 261312
      %1156 = vst.msk [vmem:[#allocation2] sm:$0xff] %vm1155, %v1153
      %v1157 = vld [vmem:[#allocation2] sm:$0xff]
      %v1158 = vld [vmem:[%s6] sm:$0xff]
      %v1159 = vld [vmem:[%s6 + $0x8] sm:$0xff]
      %v1160 = vld [vmem:[%s6 + $0x10] sm:$0xff]
      %v1161 = vld [vmem:[%s6 + $0x18] sm:$0xff]
      %v1162 = vld [vmem:[%s340] sm:$0xff]
      %v1163 = vld [vmem:[%s340 + $0x8] sm:$0xff]
      %v1164 = vld [vmem:[%s340 + $0x10] sm:$0xff]
      %v1165 = vld [vmem:[%s340 + $0x18] sm:$0xff]
      %1166 = vmatprep.subr.mxu0 0.0
      %1167 = vmatpush1.msra.mxu0 0.0
      %1168 = vmatprep.subr.mxu0 0.0
      %1169 = vmatpush1.msra.mxu0 0.0
      %1170 = vmatprep.subr.mxu0 0.0
      %1171 = vmatpush1.msra.mxu0 0.0
      %1172 = vmatprep.subr.mxu0 0.0
      %1173 = vmatpush1.msra.mxu0 0.0
      %1174 = vmatprep.subr.mxu0 0.0
      %1175 = vmatpush1.msra.mxu0 0.0
      %1176 = vmatprep.subr.mxu0 0.0
      %1177 = vmatpush1.msra.mxu0 0.0
      %1178 = vmatprep.subr.mxu0 0.0
      %1179 = vmatpush1.msra.mxu0 0.0
      %1180 = vmatprep.subr.mxu0 0.0
      %1181 = vmatpush1.msra.mxu0 0.0
      %1182 = vmatprep.subr.mxu0 0.0
      %1183 = vmatpush1.msra.mxu0 0.0
      %1184 = vmatprep.subr.mxu0 0.0
      %1185 = vmatpush1.msra.mxu0 0.0
      %1186 = vmatprep.subr.mxu0 0.0
      %1187 = vmatpush1.msra.mxu0 0.0
      %1188 = vmatprep.subr.mxu0 0.0
      %1189 = vmatpush1.msra.mxu0 0.0
      %1190 = vmatprep.subr.mxu0 0.0
      %1191 = vmatpush1.msra.mxu0 %v1165
      %1192 = vmatprep.subr.mxu0 0.0
      %1193 = vmatpush1.msra.mxu0 %v1164
      %1194 = vmatprep.subr.mxu0 0.0
      %1195 = vmatpush1.msra.mxu0 %v1163
      %1196 = vmatprep.subr.mxu0 0.0
      %1197 = vmatpush1.msra.mxu0 %v1162
      %1198 = vmatprep.subr.mxu0 0.0
      %1199 = vmatpush2.msra.mxu0 0.0
      %1200 = vmatprep.subr.mxu0 0.0
      %1201 = vmatpush2.msra.mxu0 0.0
      %1202 = vmatprep.subr.mxu0 0.0
      %1203 = vmatpush2.msra.mxu0 0.0
      %1204 = vmatprep.subr.mxu0 0.0
      %1205 = vmatpush2.msra.mxu0 0.0
      %1206 = vmatprep.subr.mxu0 0.0
      %1207 = vmatpush2.msra.mxu0 0.0
      %1208 = vmatprep.subr.mxu0 0.0
      %1209 = vmatpush2.msra.mxu0 0.0
      %1210 = vmatprep.subr.mxu0 0.0
      %1211 = vmatpush2.msra.mxu0 0.0
      %1212 = vmatprep.subr.mxu0 0.0
      %1213 = vmatpush2.msra.mxu0 0.0
      %1214 = vmatprep.subr.mxu0 0.0
      %1215 = vmatpush2.msra.mxu0 0.0
      %1216 = vmatprep.subr.mxu0 0.0
      %1217 = vmatpush2.msra.mxu0 0.0
      %1218 = vmatprep.subr.mxu0 0.0
      %1219 = vmatpush2.msra.mxu0 0.0
      %1220 = vmatprep.subr.mxu0 0.0
      %1221 = vmatpush2.msra.mxu0 0.0
      %1222 = vmatprep.subr.mxu0 0.0
      %1223 = vmatpush2.msra.mxu0 0.0
      %1224 = vmatprep.subr.mxu0 0.0
      %1225 = vmatpush2.msra.mxu0 0.0
      %1226 = vmatprep.subr.mxu0 0.0
      %1227 = vmatpush2.msra.mxu0 0.0
      %1228 = vmatprep.subr.mxu0 0.0
      %1229 = vmatpush2.msra.mxu0 0.0
      %1230 = vmatprep.mubr.f32.mxu0 0.0
      %1231 = vmatmul.mubr.f32.gmra.mxu0 %v391
      %v1232 = vpop.f32.mrf.mxu0
      %v1233 = vadd.f32 0.0, %v1232
      %v1234 = vpop.f32.mrf.mxu0
      %1235 = vdwg.mxu0
      %v1237 = vsel %vm346, %v1157, 0
      %1239 = vmatprep.subr.mxu0 0.0
      %1240 = vmatpush1.msra.mxu0 0.0
      %1241 = vmatprep.subr.mxu0 0.0
      %1242 = vmatpush1.msra.mxu0 0.0
      %1243 = vmatprep.subr.mxu0 0.0
      %1244 = vmatpush1.msra.mxu0 0.0
      %1245 = vmatprep.subr.mxu0 0.0
      %1246 = vmatpush1.msra.mxu0 0.0
      %1247 = vmatprep.subr.mxu0 0.0
      %1248 = vmatpush1.msra.mxu0 0.0
      %1249 = vmatprep.subr.mxu0 0.0
      %1250 = vmatpush1.msra.mxu0 0.0
      %1251 = vmatprep.subr.mxu0 0.0
      %1252 = vmatpush1.msra.mxu0 0.0
      %1253 = vmatprep.subr.mxu0 0.0
      %1254 = vmatpush1.msra.mxu0 0.0
      %1255 = vmatprep.subr.mxu0 0.0
      %1256 = vmatpush1.msra.mxu0 0.0
      %1257 = vmatprep.subr.mxu0 0.0
      %1258 = vmatpush1.msra.mxu0 0.0
      %1259 = vmatprep.subr.mxu0 0.0
      %1260 = vmatpush1.msra.mxu0 0.0
      %1261 = vmatprep.subr.mxu0 0.0
      %1262 = vmatpush1.msra.mxu0 0.0
      %1263 = vmatprep.subr.mxu0 0.0
      %1264 = vmatpush1.msra.mxu0 %v1161
      %1265 = vmatprep.subr.mxu0 0.0
      %1266 = vmatpush1.msra.mxu0 %v1160
      %1267 = vmatprep.subr.mxu0 0.0
      %1268 = vmatpush1.msra.mxu0 %v1159
      %1269 = vmatprep.subr.mxu0 0.0
      %1270 = vmatpush1.msra.mxu0 %v1158
      %1271 = vmatprep.subr.mxu0 0.0
      %1272 = vmatpush2.msra.mxu0 0.0
      %1273 = vmatprep.subr.mxu0 0.0
      %1274 = vmatpush2.msra.mxu0 0.0
      %1275 = vmatprep.subr.mxu0 0.0
      %1276 = vmatpush2.msra.mxu0 0.0
      %1277 = vmatprep.subr.mxu0 0.0
      %1278 = vmatpush2.msra.mxu0 0.0
      %1279 = vmatprep.subr.mxu0 0.0
      %1280 = vmatpush2.msra.mxu0 0.0
      %1281 = vmatprep.subr.mxu0 0.0
      %1282 = vmatpush2.msra.mxu0 0.0
      %1283 = vmatprep.subr.mxu0 0.0
      %1284 = vmatpush2.msra.mxu0 0.0
      %1285 = vmatprep.subr.mxu0 0.0
      %1286 = vmatpush2.msra.mxu0 0.0
      %1287 = vmatprep.subr.mxu0 0.0
      %1288 = vmatpush2.msra.mxu0 0.0
      %1289 = vmatprep.subr.mxu0 0.0
      %1290 = vmatpush2.msra.mxu0 0.0
      %1291 = vmatprep.subr.mxu0 0.0
      %1292 = vmatpush2.msra.mxu0 0.0
      %1293 = vmatprep.subr.mxu0 0.0
      %1294 = vmatpush2.msra.mxu0 0.0
      %1295 = vmatprep.subr.mxu0 0.0
      %1296 = vmatpush2.msra.mxu0 0.0
      %1297 = vmatprep.subr.mxu0 0.0
      %1298 = vmatpush2.msra.mxu0 0.0
      %1299 = vmatprep.subr.mxu0 0.0
      %1300 = vmatpush2.msra.mxu0 0.0
      %1301 = vmatprep.subr.mxu0 0.0
      %1302 = vmatpush2.msra.mxu0 0.0
      %1303 = vmatprep.mubr.f32.mxu0 0.0
      %1304 = vmatmul.mubr.f32.gmra.mxu0 %v1237
      %v1305 = vpop.f32.mrf.mxu0
      %v1306 = vadd.f32 %v1233, %v1305
      %v1307 = vpop.f32.mrf.mxu0
      %1308 = vdwg.mxu0
      %v1309 = vld [vmem:[%s8] sm:$0x1]
      %v1311 = vlaneseq
      %v1312 = vshrl.u32 %v1311, 7
      %v1313 = vsub.s32 0, %v1312
      %v1314 = vrot.slane %v1309, %v1313
      %v1316 = vadd.f32 %v1306, %v1314
      %v1317 = vxor.u32 %v1316, 2147483648
      %v1318 = vmul.f32 %v1317, 1.442695
      %v1319 = vpow.pop %v1318
      %v1320 = vadd.f32 %v1319, 1.0
      %v1321 = vrcp.pop %v1320
      %v1322 = vmul.f32 1.0, %v1321
      %1324 = vrot.lane.b32.xlu0 %v1322, 96
      %v1325 = vpop.permute.xlu0 %1324
      %v1327 = vmul.f32 %v1316, %v1325
      %v1328 = vadd.f32 %v345, %v1327
      %1329 = vst.msk [vmem:[%s344] sm:$0xff] %vm346, %v1328
      %p1330 = scmp.lt.s32.totalorder %s20, 1
      %s1331 = scalar_select %p1330, %s20, 1
      %s1332 = smul.addr %s1331, 8
      %s1333 = scalar_lea.vmem %s9, %s1332
      // Predicated region
      $region57: #{aoa_refiner_core.8} parent=55 // pred_check
        %p1334 = pneg %p237
      $region58: #{aoa_refiner_core.8} parent=55 // pred_check_branch
        %1336 = sbr.rel (%p1334) target = $region60
      $region59: #{aoa_refiner_core.8} parent=55 // pred_region
        _
      $region60: #{aoa_refiner_core.8} parent=55 // pred_fallthru
        _
    $region56: #{aoa_refiner_core.8} parent=5 // pred_fallthru
      _
    %p1337 = scmp.le.s32.totalorder 2, %s15
    // Predicated region
    $region61: #{aoa_refiner_core.8} parent=5 // pred_check
      %p1338 = pneg %p1337
    $region62: #{aoa_refiner_core.8} parent=5 // pred_check_branch
      %1340 = sbr.rel (%p1338) target = $region64
    $region63: #{aoa_refiner_core.8} parent=5 // pred_region
      %s1341 = ssub.s32 %s15, 2
      // Predicated region
      $region65: #{aoa_refiner_core.8} parent=63 // pred_check
        %p1342 = pneg %p243
      $region66: #{aoa_refiner_core.8} parent=63 // pred_check_branch
        %1344 = sbr.rel (%p1342) target = $region68
      $region67: #{aoa_refiner_core.8} parent=63 // pred_region
        %p1345 = scmp.lt.s32.totalorder %s21, 1
        %s1346 = scalar_select %p1345, %s21, 1
        %s1347 = smul.addr %s1346, 8
        %s1348 = scalar_lea.vmem %s9, %s1347
      $region68: #{aoa_refiner_core.8} parent=63 // pred_fallthru
        _
    $region64: #{aoa_refiner_core.8} parent=5 // pred_fallthru
      _
  $region6: #{aoa_refiner_core.8} parent=0 // loop_footer
    %s19 = sadd.s32 1, %s15
  $region7: #{aoa_refiner_core.8} parent=0 // loop_footer_branch
    %14 = sbr.rel target = $region3
  $region8: #{aoa_refiner_core.8} parent=0 // loop_exit
    _

// kernel: aoa_refiner_core.6
$region0: #{aoa_refiner_core.6}
  #allocation0 [shape = 'u32[]', space=smem, size = 0x4, offset = 0x4, fixed_abs, tag = 'smem constant byte address 0x4 - core index']
  #allocation1 [shape = 'u32[144,128]{1,0:T(1,128)}', space=vmem, size = 0x12000, scoped, tag = 'internal scratch']
  #allocation2 [shape = 'f32[8,32]{1,0:T(8,128)}', space=vmem, size = 0x1000, scoped, tag = 'scratch operand']
  %s0 = inlined_call_operand.hbm [shape: f32[2,8,32], index: 0, kind: input, shape index: {}]
  %s1 = inlined_call_operand.vmem [shape: f32[2,1,8], index: 1, kind: input, shape index: {}]
  %s2 = inlined_call_operand.vmem [shape: f32[1,32], index: 2, kind: input, shape index: {}]
  %s3 = inlined_call_operand.vmem [shape: f32[1,32], index: 3, kind: input, shape index: {}]
  %s4 = inlined_call_operand.hbm [shape: f32[32,96], index: 4, kind: input, shape index: {}]
  %s5 = inlined_call_operand.vmem [shape: f32[1,96], index: 5, kind: input, shape index: {}]
  %s6 = inlined_call_operand.hbm [shape: f32[64,64], index: 6, kind: input, shape index: {}, may-alias: {6,7}]
  %s7 = inlined_call_operand.hbm [shape: f32[64,64], index: 7, kind: input, shape index: {}, may-alias: {6,7}]
  %s8 = inlined_call_operand.vmem [shape: f32[1,64], index: 8, kind: input, shape index: {}]
  %s9 = inlined_call_operand.vmem [shape: f32[2,8,32], index: 9, kind: output, shape index: {}]
  %s10 = sld [smem:[#allocation0]]
  $region85: #{aoa_refiner_core.6} parent=0
    _
  %s12 = ssub.s32 1, %s10
  %s13 = scalar_select 0, %s12, %s10
  $region1: #{aoa_refiner_core.6} parent=0
    #allocation3 [shape = 'u8[8192]{0}', space=vmem, size = 0x2000, scoped, tag = 'input window, operand 0']
    #allocation4 [shape = 's32[2]{0}', space=sflag, size = 0x8, scoped, tag = 'scoped memory for aoa_refiner_core.6']
    #allocation5 [shape = 'u8[16384]{0}', space=vmem, size = 0x4000, scoped, tag = 'input window, operand 4, single buffered']
    #allocation6 [shape = 's32[1]{0}', space=sflag, size = 0x4, scoped, tag = 'scoped memory for aoa_refiner_core.6']
    #allocation7 [shape = 'u8[16384]{0}', space=vmem, size = 0x4000, scoped, tag = 'input window, operand 6, single buffered']
    #allocation8 [shape = 'u8[16384]{0}', space=vmem, size = 0x4000, scoped, tag = 'input window, operand 7, single buffered']
    #allocation9 [shape = 's32[1]{0}', space=sflag, size = 0x4, scoped, tag = 'scoped memory for aoa_refiner_core.6']
    %14 = vsyncpa [#allocation4], 0
    %s15 = scalar_lea.sflag [#allocation4], 1
    %16 = vsyncpa %s15, 0
    %17 = vsyncpa [#allocation6], 0
    %18 = vsyncpa [#allocation9], 0
    loop: start=0, step=1, limit=4
    $region2: #{aoa_refiner_core.6} parent=1 // loop_pre_header
      _
    $region3: #{aoa_refiner_core.6} parent=1 // loop_header
      %s20 = sphi 0, %s24
      %p21 = scmp.ge.s32.totalorder %s20, 4
      %s30 = sphi 0, %s32
      %s33 = sphi 0, %s30
      %s34 = sphi 0, %s33
      %s50 = sphi 0, %s34
      %s56 = sphi 0, %s58
      %s59 = sphi 0, %s56
      %s60 = sphi 0, %s59
      %s76 = sphi 0, %s60
      %s80 = sphi 0, %s80
      %s82 = sphi 0, %s80
      %s83 = sphi 0, %s82
      %s97 = sphi 0, %s83
      %s101 = sphi 0, %s101
      %s103 = sphi 0, %s101
      %s104 = sphi 0, %s103
      %s118 = sphi 0, %s104
      %s122 = sphi 0, %s122
      %s124 = sphi 0, %s122
      %s125 = sphi 0, %s124
      %s139 = sphi 0, %s125
      %s143 = sphi 0, %s143
      %s145 = sphi 0, %s143
      %s146 = sphi 0, %s145
      %s160 = sphi 0, %s146
      %s164 = sphi 0, %s164
      %s166 = sphi 0, %s164
      %s167 = sphi 0, %s166
      %s181 = sphi 0, %s167
      %s185 = sphi 0, %s185
      %s187 = sphi 0, %s185
      %s188 = sphi 0, %s187
      %s202 = sphi 0, %s188
      %s206 = sphi 0, %s206
      %s208 = sphi 0, %s206
      %s209 = sphi 0, %s208
      %s223 = sphi 0, %s209
      %s229 = sphi 0, %s231
      %s232 = sphi 0, %s229
      %s233 = sphi 0, %s232
      %s249 = sphi 0, %s233
    $region4: #{aoa_refiner_core.6} parent=1 // loop_header_branch
      %23 = sbr.rel (%p21) target = $region8
    $region5: #{aoa_refiner_core.6} parent=1 // loop_body
      %s25 = ssub.s32 %s20, 1
      %s26 = ssub.s32 %s20, 2
      %s27 = sadd.s32 %s20, 1
      %s28 = ssub.s32 %s20, %s27
      %p29 = scmp.eq.s32.totalorder %s28, 0
      %s31 = sadd.s32 %s30, 1
      %s32 = scalar_select %p29, %s30, %s31
      %p35 = pneg %p29
      %p36 = scmp.eq.s32.totalorder %s20, 1
      %p37 = por %p35, %p36
      %p38 = scmp.ne.s32.totalorder %s30, %s33
      %p39 = scmp.eq.s32.totalorder %s20, 0
      %p40 = por %p38, %p39
      %p41 = scmp.ne.s32.totalorder %s30, %s33
      %p42 = scmp.eq.s32.totalorder %s25, 1
      %p43 = por %p41, %p42
      %p44 = scmp.ne.s32.totalorder %s33, %s34
      %p45 = scmp.eq.s32.totalorder %s25, 0
      %p46 = por %p44, %p45
      %p47 = scmp.ne.s32.totalorder %s33, %s34
      %p48 = scmp.eq.s32.totalorder %s26, 1
      %p49 = por %p47, %p48
      %p51 = scmp.ne.s32.totalorder %s34, %s50
      %p52 = scmp.eq.s32.totalorder %s26, 0
      %p53 = por %p51, %p52
      %s54 = ssub.s32 %s20, %s27
      %p55 = scmp.eq.s32.totalorder %s54, 0
      %s57 = sadd.s32 %s56, 1
      %s58 = scalar_select %p55, %s56, %s57
      %p61 = pneg %p55
      %p62 = scmp.eq.s32.totalorder %s20, 1
      %p63 = por %p61, %p62
      %p64 = scmp.ne.s32.totalorder %s56, %s59
      %p65 = scmp.eq.s32.totalorder %s20, 0
      %p66 = por %p64, %p65
      %p67 = scmp.ne.s32.totalorder %s56, %s59
      %p68 = scmp.eq.s32.totalorder %s25, 1
      %p69 = por %p67, %p68
      %p70 = scmp.ne.s32.totalorder %s59, %s60
      %p71 = scmp.eq.s32.totalorder %s25, 0
      %p72 = por %p70, %p71
      %p73 = scmp.ne.s32.totalorder %s59, %s60
      %p74 = scmp.eq.s32.totalorder %s26, 1
      %p75 = por %p73, %p74
      %p77 = scmp.ne.s32.totalorder %s60, %s76
      %p78 = scmp.eq.s32.totalorder %s26, 0
      %p79 = por %p77, %p78
      %s81 = sadd.s32 %s80, 1
      %p84 = scmp.eq.s32.totalorder %s20, 1
      %p85 = scmp.ne.s32.totalorder %s80, %s82
      %p86 = scmp.eq.s32.totalorder %s20, 0
      %p87 = por %p85, %p86
      %p88 = scmp.ne.s32.totalorder %s80, %s82
      %p89 = scmp.eq.s32.totalorder %s25, 1
      %p90 = por %p88, %p89
      %p91 = scmp.ne.s32.totalorder %s82, %s83
      %p92 = scmp.eq.s32.totalorder %s25, 0
      %p93 = por %p91, %p92
      %p94 = scmp.ne.s32.totalorder %s82, %s83
      %p95 = scmp.eq.s32.totalorder %s26, 1
      %p96 = por %p94, %p95
      %p98 = scmp.ne.s32.totalorder %s83, %s97
      %p99 = scmp.eq.s32.totalorder %s26, 0
      %p100 = por %p98, %p99
      %s102 = sadd.s32 %s101, 1
      %p105 = scmp.eq.s32.totalorder %s20, 1
      %p106 = scmp.ne.s32.totalorder %s101, %s103
      %p107 = scmp.eq.s32.totalorder %s20, 0
      %p108 = por %p106, %p107
      %p109 = scmp.ne.s32.totalorder %s101, %s103
      %p110 = scmp.eq.s32.totalorder %s25, 1
      %p111 = por %p109, %p110
      %p112 = scmp.ne.s32.totalorder %s103, %s104
      %p113 = scmp.eq.s32.totalorder %s25, 0
      %p114 = por %p112, %p113
      %p115 = scmp.ne.s32.totalorder %s103, %s104
      %p116 = scmp.eq.s32.totalorder %s26, 1
      %p117 = por %p115, %p116
      %p119 = scmp.ne.s32.totalorder %s104, %s118
      %p120 = scmp.eq.s32.totalorder %s26, 0
      %p121 = por %p119, %p120
      %s123 = sadd.s32 %s122, 1
      %p126 = scmp.eq.s32.totalorder %s20, 1
      %p127 = scmp.ne.s32.totalorder %s122, %s124
      %p128 = scmp.eq.s32.totalorder %s20, 0
      %p129 = por %p127, %p128
      %p130 = scmp.ne.s32.totalorder %s122, %s124
      %p131 = scmp.eq.s32.totalorder %s25, 1
      %p132 = por %p130, %p131
      %p133 = scmp.ne.s32.totalorder %s124, %s125
      %p134 = scmp.eq.s32.totalorder %s25, 0
      %p135 = por %p133, %p134
      %p136 = scmp.ne.s32.totalorder %s124, %s125
      %p137 = scmp.eq.s32.totalorder %s26, 1
      %p138 = por %p136, %p137
      %p140 = scmp.ne.s32.totalorder %s125, %s139
      %p141 = scmp.eq.s32.totalorder %s26, 0
      %p142 = por %p140, %p141
      %s144 = sadd.s32 %s143, 1
      %p147 = scmp.eq.s32.totalorder %s20, 1
      %p148 = scmp.ne.s32.totalorder %s143, %s145
      %p149 = scmp.eq.s32.totalorder %s20, 0
      %p150 = por %p148, %p149
      %p151 = scmp.ne.s32.totalorder %s143, %s145
      %p152 = scmp.eq.s32.totalorder %s25, 1
      %p153 = por %p151, %p152
      %p154 = scmp.ne.s32.totalorder %s145, %s146
      %p155 = scmp.eq.s32.totalorder %s25, 0
      %p156 = por %p154, %p155
      %p157 = scmp.ne.s32.totalorder %s145, %s146
      %p158 = scmp.eq.s32.totalorder %s26, 1
      %p159 = por %p157, %p158
      %p161 = scmp.ne.s32.totalorder %s146, %s160
      %p162 = scmp.eq.s32.totalorder %s26, 0
      %p163 = por %p161, %p162
      %s165 = sadd.s32 %s164, 1
      %p168 = scmp.eq.s32.totalorder %s20, 1
      %p169 = scmp.ne.s32.totalorder %s164, %s166
      %p170 = scmp.eq.s32.totalorder %s20, 0
      %p171 = por %p169, %p170
      %p172 = scmp.ne.s32.totalorder %s164, %s166
      %p173 = scmp.eq.s32.totalorder %s25, 1
      %p174 = por %p172, %p173
      %p175 = scmp.ne.s32.totalorder %s166, %s167
      %p176 = scmp.eq.s32.totalorder %s25, 0
      %p177 = por %p175, %p176
      %p178 = scmp.ne.s32.totalorder %s166, %s167
      %p179 = scmp.eq.s32.totalorder %s26, 1
      %p180 = por %p178, %p179
      %p182 = scmp.ne.s32.totalorder %s167, %s181
      %p183 = scmp.eq.s32.totalorder %s26, 0
      %p184 = por %p182, %p183
      %s186 = sadd.s32 %s185, 1
      %p189 = scmp.eq.s32.totalorder %s20, 1
      %p190 = scmp.ne.s32.totalorder %s185, %s187
      %p191 = scmp.eq.s32.totalorder %s20, 0
      %p192 = por %p190, %p191
      %p193 = scmp.ne.s32.totalorder %s185, %s187
      %p194 = scmp.eq.s32.totalorder %s25, 1
      %p195 = por %p193, %p194
      %p196 = scmp.ne.s32.totalorder %s187, %s188
      %p197 = scmp.eq.s32.totalorder %s25, 0
      %p198 = por %p196, %p197
      %p199 = scmp.ne.s32.totalorder %s187, %s188
      %p200 = scmp.eq.s32.totalorder %s26, 1
      %p201 = por %p199, %p200
      %p203 = scmp.ne.s32.totalorder %s188, %s202
      %p204 = scmp.eq.s32.totalorder %s26, 0
      %p205 = por %p203, %p204
      %s207 = sadd.s32 %s206, 1
      %p210 = scmp.eq.s32.totalorder %s20, 1
      %p211 = scmp.ne.s32.totalorder %s206, %s208
      %p212 = scmp.eq.s32.totalorder %s20, 0
      %p213 = por %p211, %p212
      %p214 = scmp.ne.s32.totalorder %s206, %s208
      %p215 = scmp.eq.s32.totalorder %s25, 1
      %p216 = por %p214, %p215
      %p217 = scmp.ne.s32.totalorder %s208, %s209
      %p218 = scmp.eq.s32.totalorder %s25, 0
      %p219 = por %p217, %p218
      %p220 = scmp.ne.s32.totalorder %s208, %s209
      %p221 = scmp.eq.s32.totalorder %s26, 1
      %p222 = por %p220, %p221
      %p224 = scmp.ne.s32.totalorder %s209, %s223
      %p225 = scmp.eq.s32.totalorder %s26, 0
      %p226 = por %p224, %p225
      %s227 = ssub.s32 %s20, %s27
      %p228 = scmp.eq.s32.totalorder %s227, 0
      %s230 = sadd.s32 %s229, 1
      %s231 = scalar_select %p228, %s229, %s230
      %p234 = pneg %p228
      %p235 = scmp.eq.s32.totalorder %s20, 1
      %p236 = por %p234, %p235
      %p237 = scmp.ne.s32.totalorder %s229, %s232
      %p238 = scmp.eq.s32.totalorder %s20, 0
      %p239 = por %p237, %p238
      %p240 = scmp.ne.s32.totalorder %s229, %s232
      %p241 = scmp.eq.s32.totalorder %s25, 1
      %p242 = por %p240, %p241
      %p243 = scmp.ne.s32.totalorder %s232, %s233
      %p244 = scmp.eq.s32.totalorder %s25, 0
      %p245 = por %p243, %p244
      %p246 = scmp.ne.s32.totalorder %s232, %s233
      %p247 = scmp.eq.s32.totalorder %s26, 1
      %p248 = por %p246, %p247
      %p250 = scmp.ne.s32.totalorder %s233, %s249
      %p251 = scmp.eq.s32.totalorder %s26, 0
      %p252 = por %p250, %p251
      %p253 = scmp.le.s32.totalorder 1, %s20
      %p254 = scmp.lt.s32.totalorder %s20, 3
      %p255 = pnand %p253, %p254
      %p256 = pneg %p255
      // Predicated region
      $region9: #{aoa_refiner_core.6} parent=5 // pred_check
        _
      $region10: #{aoa_refiner_core.6} parent=5 // pred_check_branch
        %258 = sbr.rel (%p255) target = $region12
      $region11: #{aoa_refiner_core.6} parent=5 // pred_region
        %s259 = ssub.s32 %s20, 1
        // Predicated region
        $region13: #{aoa_refiner_core.6} parent=11 // pred_check
          %p260 = pneg %p93
        $region14: #{aoa_refiner_core.6} parent=11 // pred_check_branch
          %262 = sbr.rel (%p260) target = $region16
        $region15: #{aoa_refiner_core.6} parent=11 // pred_region
          _
        $region16: #{aoa_refiner_core.6} parent=11 // pred_fallthru
          _
        // Predicated region
        $region17: #{aoa_refiner_core.6} parent=11 // pred_check
          %p263 = pneg %p114
        $region18: #{aoa_refiner_core.6} parent=11 // pred_check_branch
          %265 = sbr.rel (%p263) target = $region20
        $region19: #{aoa_refiner_core.6} parent=11 // pred_region
          _
        $region20: #{aoa_refiner_core.6} parent=11 // pred_fallthru
          _
        // Predicated region
        $region21: #{aoa_refiner_core.6} parent=11 // pred_check
          %p266 = pneg %p135
        $region22: #{aoa_refiner_core.6} parent=11 // pred_check_branch
          %268 = sbr.rel (%p266) target = $region24
        $region23: #{aoa_refiner_core.6} parent=11 // pred_region
          %s270 = ssub.s32 512, 512
          %271 = vsyncadd [#allocation6], %s270
          %s272 = sshll.u32 [#allocation5], 4
          %s273 = int_to_ptr.vmem [resolvable:$true] %s272
          %278 = dma.hbm_to_vmem [thread:$0]  %s4, 512, %s273, [#allocation6], 128, 128, 8
        $region24: #{aoa_refiner_core.6} parent=11 // pred_fallthru
          _
        // Predicated region
        $region25: #{aoa_refiner_core.6} parent=11 // pred_check
          %p279 = pneg %p156
        $region26: #{aoa_refiner_core.6} parent=11 // pred_check_branch
          %281 = sbr.rel (%p279) target = $region28
        $region27: #{aoa_refiner_core.6} parent=11 // pred_region
          _
        $region28: #{aoa_refiner_core.6} parent=11 // pred_fallthru
          _
        // Predicated region
        $region29: #{aoa_refiner_core.6} parent=11 // pred_check
          %p282 = pneg %p177
        $region30: #{aoa_refiner_core.6} parent=11 // pred_check_branch
          %284 = sbr.rel (%p282) target = $region32
        $region31: #{aoa_refiner_core.6} parent=11 // pred_region
          %s286 = ssub.s32 512, 512
          %287 = vsyncadd [#allocation6], %s286
          %s288 = sshll.u32 [#allocation7], 4
          %s289 = int_to_ptr.vmem [resolvable:$true] %s288
          %294 = dma.hbm_to_vmem [thread:$0]  %s6, 512, %s289, [#allocation6], 128, 128, 8
        $region32: #{aoa_refiner_core.6} parent=11 // pred_fallthru
          _
        // Predicated region
        $region33: #{aoa_refiner_core.6} parent=11 // pred_check
          %p295 = pneg %p198
        $region34: #{aoa_refiner_core.6} parent=11 // pred_check_branch
          %297 = sbr.rel (%p295) target = $region36
        $region35: #{aoa_refiner_core.6} parent=11 // pred_region
          %s299 = ssub.s32 512, 512
          %300 = vsyncadd [#allocation9], %s299
          %s301 = scalar_lea.hbm %s7, 512
          %s302 = sshll.u32 [#allocation8], 4
          %s303 = int_to_ptr.vmem [resolvable:$true] %s302
          %308 = dma.hbm_to_vmem [thread:$0]  %s301, 512, %s303, [#allocation9], 128, 128, 8
        $region36: #{aoa_refiner_core.6} parent=11 // pred_fallthru
          _
        // Predicated region
        $region37: #{aoa_refiner_core.6} parent=11 // pred_check
          %p309 = pneg %p219
        $region38: #{aoa_refiner_core.6} parent=11 // pred_check_branch
          %311 = sbr.rel (%p309) target = $region40
        $region39: #{aoa_refiner_core.6} parent=11 // pred_region
          _
        $region40: #{aoa_refiner_core.6} parent=11 // pred_fallthru
          _
      $region12: #{aoa_refiner_core.6} parent=5 // pred_fallthru
        _
      %p312 = scmp.lt.s32.totalorder %s20, 2
      // Predicated region
      $region41: #{aoa_refiner_core.6} parent=5 // pred_check
        %p313 = pneg %p312
      $region42: #{aoa_refiner_core.6} parent=5 // pred_check_branch
        %315 = sbr.rel (%p313) target = $region44
      $region43: #{aoa_refiner_core.6} parent=5 // pred_region
        // Predicated region
        $region45: #{aoa_refiner_core.6} parent=43 // pred_check
          %p316 = pneg %p40
        $region46: #{aoa_refiner_core.6} parent=43 // pred_check_branch
          %318 = sbr.rel (%p316) target = $region48
        $region47: #{aoa_refiner_core.6} parent=43 // pred_region
          %s319 = sand.u32 %s30, 1
          %s320 = scalar_lea.sflag [#allocation4], %s319
          %s321 = sand.u32 %s30, 1
          %s322 = smul.addr %s321, 8
          %s323 = scalar_lea.vmem [#allocation3], %s322
          %s325 = ssub.s32 128, 128
          %326 = vsyncadd %s320, %s325
          %s327 = smul.addr %s20, 128
          %s328 = scalar_lea.hbm %s0, %s327
          %s330 = sshll.u32 %s323, 4
          %s331 = int_to_ptr.vmem [resolvable:$true] %s330
          %333 = dma.hbm_to_vmem [thread:$0]  %s328, 128, %s331, %s320
        $region48: #{aoa_refiner_core.6} parent=43 // pred_fallthru
          _
        // Predicated region
        $region49: #{aoa_refiner_core.6} parent=43 // pred_check
          %p334 = pneg %p66
        $region50: #{aoa_refiner_core.6} parent=43 // pred_check_branch
          %336 = sbr.rel (%p334) target = $region52
        $region51: #{aoa_refiner_core.6} parent=43 // pred_region
          %p337 = scmp.lt.s32.totalorder %s20, 1
          %s338 = scalar_select %p337, %s20, 1
          %s339 = scalar_lea.vmem %s1, %s338
        $region52: #{aoa_refiner_core.6} parent=43 // pred_fallthru
          _
      $region44: #{aoa_refiner_core.6} parent=5 // pred_fallthru
        _
      %p340 = scmp.le.s32.totalorder 1, %s20
      %p341 = scmp.lt.s32.totalorder %s20, 3
      %p342 = pnand %p340, %p341
      %p343 = pneg %p342
      // Predicated region
      $region53: #{aoa_refiner_core.6} parent=5 // pred_check
        _
      $region54: #{aoa_refiner_core.6} parent=5 // pred_check_branch
        %345 = sbr.rel (%p342) target = $region56
      $region55: #{aoa_refiner_core.6} parent=5 // pred_region
        %s346 = ssub.s32 %s20, 1
        %s347 = sand.u32 %s33, 1
        %s348 = scalar_lea.sflag [#allocation4], %s347
        %s349 = sand.u32 %s33, 1
        %s350 = smul.addr %s349, 8
        %s351 = scalar_lea.vmem [#allocation3], %s350
        // Predicated region
        $region57: #{aoa_refiner_core.6} parent=55 // pred_check
          %p352 = pneg %p46
        $region58: #{aoa_refiner_core.6} parent=55 // pred_check_branch
          %354 = sbr.rel (%p352) target = $region60
        $region59: #{aoa_refiner_core.6} parent=55 // pred_region
          %355 = dma.done %s348, 128
        $region60: #{aoa_refiner_core.6} parent=55 // pred_fallthru
          _
        // Predicated region
        $region61: #{aoa_refiner_core.6} parent=55 // pred_check
          %p356 = pneg %p135
        $region62: #{aoa_refiner_core.6} parent=55 // pred_check_branch
          %358 = sbr.rel (%p356) target = $region64
        $region63: #{aoa_refiner_core.6} parent=55 // pred_region
          %359 = dma.done [#allocation6], 512
        $region64: #{aoa_refiner_core.6} parent=55 // pred_fallthru
          _
        // Predicated region
        $region65: #{aoa_refiner_core.6} parent=55 // pred_check
          %p360 = pneg %p177
        $region66: #{aoa_refiner_core.6} parent=55 // pred_check_branch
          %362 = sbr.rel (%p360) target = $region68
        $region67: #{aoa_refiner_core.6} parent=55 // pred_region
          %363 = dma.done [#allocation6], 512
        $region68: #{aoa_refiner_core.6} parent=55 // pred_fallthru
          _
        // Predicated region
        $region69: #{aoa_refiner_core.6} parent=55 // pred_check
          %p364 = pneg %p198
        $region70: #{aoa_refiner_core.6} parent=55 // pred_check_branch
          %366 = sbr.rel (%p364) target = $region72
        $region71: #{aoa_refiner_core.6} parent=55 // pred_region
          %367 = dma.done [#allocation9], 512
        $region72: #{aoa_refiner_core.6} parent=55 // pred_fallthru
          _
        %s368 = sand.u32 %s33, 1
        %s369 = scalar_lea.sflag [#allocation4], %s368
        %s370 = sand.u32 %s33, 1
        %s371 = smul.addr %s370, 8
        %s372 = scalar_lea.vmem [#allocation3], %s371
        %p373 = pneg %p46
        %p374 = pneg %p43
        %p375 = scmp.lt.s32.totalorder %s25, 1
        %s376 = scalar_select %p375, %s25, 1
        %s377 = scalar_lea.vmem %s1, %s376
        %p378 = pneg %p72
        %p379 = pneg %p69
        %p380 = pneg %p93
        %p381 = pneg %p90
        %p382 = pneg %p114
        %p383 = pneg %p111
        %p384 = pneg %p135
        %p385 = pneg %p132
        %p386 = pneg %p156
        %p387 = pneg %p153
        %p388 = pneg %p177
        %p389 = pneg %p174
        %p390 = pneg %p198
        %p391 = pneg %p195
        %p392 = pneg %p219
        %p393 = pneg %p216
        %p394 = pneg %p245
        %p395 = pneg %p242
        %p396 = scmp.lt.s32.totalorder %s25, 1
        %s397 = scalar_select %p396, %s25, 1
        %s398 = smul.addr %s397, 8
        %s399 = scalar_lea.vmem %s9, %s398
        %p400 = scmp.lt.s32.totalorder %s25, 1
        %s401 = scalar_select %p400, %s25, 1
        %s402 = scalar_lea.vmem %s1, %s401
        %p403 = scmp.lt.s32.totalorder %s25, 1
        %s404 = scalar_select %p403, %s25, 1
        %s405 = smul.addr %s404, 8
        %s406 = scalar_lea.vmem %s9, %s405
        %v407 = vld [vmem:[%s351] sm:$0xff]
        %vm408 = vcmask 261120
        %v409 = vsel %vm408, %v407, 0.0
        %410 = vadd.xlane.f32.xlu0 %v409
        %v411 = vpop.xlane.xlu0 %410
        %v412 = vmul.f32 %v407, %v407
        %v413 = vsel %vm408, %v412, 0.0
        %414 = vadd.xlane.f32.xlu0 %v413
        %v415 = vpop.xlane.xlu0 %414
        %v416 = vmul.f32 %v411, 0.03125
        %v417 = vmul.f32 %v415, 0.03125
        %v418 = vmul.f32 %v416, %v416
        %v419 = vsub.f32 %v417, %v418
        %v420 = vmax.f32 %v419, 0.0
        %v421 = vsub.f32 %v407, %v416
        %v422 = vadd.f32 %v420, 1e-12
        %v423 = vrsqrt.pop %v422
        %v424 = vmul.f32 %v421, %v423
        %v425 = vld [vmem:[%s2] sm:$0x1]
        %v427 = vlaneseq
        %v428 = vshrl.u32 %v427, 7
        %v429 = vsub.s32 0, %v428
        %v430 = vrot.slane %v425, %v429
        %v432 = vmul.f32 %v424, %v430
        %v433 = vld [vmem:[%s3] sm:$0x1]
        %v435 = vlaneseq
        %v436 = vshrl.u32 %v435, 7
        %v437 = vsub.s32 0, %v436
        %v438 = vrot.slane %v433, %v437
        %v440 = vadd.f32 %v432, %v438
        %v441 = vld [vmem:[#allocation5] sm:$0xff]
        %v442 = vld [vmem:[#allocation5 + $0x8] sm:$0xff]
        %v443 = vld [vmem:[#allocation5 + $0x10] sm:$0xff]
        %v444 = vld [vmem:[#allocation5 + $0x18] sm:$0xff]
        %v445 = vld [vmem:[%s5] sm:$0x1]
        %v447 = vlaneseq
        %v448 = vshrl.u32 %v447, 7
        %v449 = vsub.s32 0, %v448
        %v450 = vrot.slane %v445, %v449
        %v453 = vsel %vm408, %v440, 0
        %455 = vmatprep.subr.mxu0 0.0
        %456 = vmatpush1.msra.mxu0 0.0
        %457 = vmatprep.subr.mxu0 0.0
        %458 = vmatpush1.msra.mxu0 0.0
        %459 = vmatprep.subr.mxu0 0.0
        %460 = vmatpush1.msra.mxu0 0.0
        %461 = vmatprep.subr.mxu0 0.0
        %462 = vmatpush1.msra.mxu0 0.0
        %463 = vmatprep.subr.mxu0 0.0
        %464 = vmatpush1.msra.mxu0 0.0
        %465 = vmatprep.subr.mxu0 0.0
        %466 = vmatpush1.msra.mxu0 0.0
        %467 = vmatprep.subr.mxu0 0.0
        %468 = vmatpush1.msra.mxu0 0.0
        %469 = vmatprep.subr.mxu0 0.0
        %470 = vmatpush1.msra.mxu0 0.0
        %471 = vmatprep.subr.mxu0 0.0
        %472 = vmatpush1.msra.mxu0 0.0
        %473 = vmatprep.subr.mxu0 0.0
        %474 = vmatpush1.msra.mxu0 0.0
        %475 = vmatprep.subr.mxu0 0.0
        %476 = vmatpush1.msra.mxu0 0.0
        %477 = vmatprep.subr.mxu0 0.0
        %478 = vmatpush1.msra.mxu0 0.0
        %479 = vmatprep.subr.mxu0 0.0
        %480 = vmatpush1.msra.mxu0 %v444
        %481 = vmatprep.subr.mxu0 0.0
        %482 = vmatpush1.msra.mxu0 %v443
        %483 = vmatprep.subr.mxu0 0.0
        %484 = vmatpush1.msra.mxu0 %v442
        %485 = vmatprep.subr.mxu0 0.0
        %486 = vmatpush1.msra.mxu0 %v441
        %487 = vmatprep.subr.mxu0 0.0
        %488 = vmatpush2.msra.mxu0 0.0
        %489 = vmatprep.subr.mxu0 0.0
        %490 = vmatpush2.msra.mxu0 0.0
        %491 = vmatprep.subr.mxu0 0.0
        %492 = vmatpush2.msra.mxu0 0.0
        %493 = vmatprep.subr.mxu0 0.0
        %494 = vmatpush2.msra.mxu0 0.0
        %495 = vmatprep.subr.mxu0 0.0
        %496 = vmatpush2.msra.mxu0 0.0
        %497 = vmatprep.subr.mxu0 0.0
        %498 = vmatpush2.msra.mxu0 0.0
        %499 = vmatprep.subr.mxu0 0.0
        %500 = vmatpush2.msra.mxu0 0.0
        %501 = vmatprep.subr.mxu0 0.0
        %502 = vmatpush2.msra.mxu0 0.0
        %503 = vmatprep.subr.mxu0 0.0
        %504 = vmatpush2.msra.mxu0 0.0
        %505 = vmatprep.subr.mxu0 0.0
        %506 = vmatpush2.msra.mxu0 0.0
        %507 = vmatprep.subr.mxu0 0.0
        %508 = vmatpush2.msra.mxu0 0.0
        %509 = vmatprep.subr.mxu0 0.0
        %510 = vmatpush2.msra.mxu0 0.0
        %511 = vmatprep.subr.mxu0 0.0
        %512 = vmatpush2.msra.mxu0 0.0
        %513 = vmatprep.subr.mxu0 0.0
        %514 = vmatpush2.msra.mxu0 0.0
        %515 = vmatprep.subr.mxu0 0.0
        %516 = vmatpush2.msra.mxu0 0.0
        %517 = vmatprep.subr.mxu0 0.0
        %518 = vmatpush2.msra.mxu0 0.0
        %519 = vmatprep.mubr.f32.mxu0 0.0
        %520 = vmatmul.mubr.f32.gmra.mxu0 %v453
        %v521 = vpop.f32.mrf.mxu0
        %v522 = vadd.f32 %v450, %v521
        %v523 = vpop.f32.mrf.mxu0
        %524 = vdwg.mxu0
        %v525 = vmul.f32 %v522, 0.35355338
        %v526 = vld [vmem:[%s402] sm:$0x1]
        %vm527 = vcmp.ne.f32.partialorder %v526, 0.0
        %v528 = vsel %vm527, 0.0, -1e+30
        %v530 = vlaneseq
        %v531 = vshrl.u32 %v530, 7
        %v532 = vsub.s32 0, %v531
        %v533 = vrot.slane %v528, %v532
        %536 = vrot.lane.b32.xlu0 %v522, 96
        %v537 = vpop.permute.xlu0 %536
        %vm538 = vcmask 64512
        %v540 = vsel %vm538, %v525, 0
        %v542 = vsel %vm538, %v537, 0
        %544 = vmatprep.subr.mxu0 0.0
        %545 = vmatpush1.xpose.msra.mxu0 0.0
        %546 = vmatprep.subr.mxu0 0.0
        %547 = vmatpush1.xpose.msra.mxu0 0.0
        %548 = vmatprep.subr.mxu0 0.0
        %549 = vmatpush1.xpose.msra.mxu0 0.0
        %550 = vmatprep.subr.mxu0 0.0
        %551 = vmatpush1.xpose.msra.mxu0 0.0
        %552 = vmatprep.subr.mxu0 0.0
        %553 = vmatpush1.xpose.msra.mxu0 0.0
        %554 = vmatprep.subr.mxu0 0.0
        %555 = vmatpush1.xpose.msra.mxu0 0.0
        %556 = vmatprep.subr.mxu0 0.0
        %557 = vmatpush1.xpose.msra.mxu0 0.0
        %558 = vmatprep.subr.mxu0 0.0
        %559 = vmatpush1.xpose.msra.mxu0 0.0
        %560 = vmatprep.subr.mxu0 0.0
        %561 = vmatpush1.xpose.msra.mxu0 0.0
        %562 = vmatprep.subr.mxu0 0.0
        %563 = vmatpush1.xpose.msra.mxu0 0.0
        %564 = vmatprep.subr.mxu0 0.0
        %565 = vmatpush1.xpose.msra.mxu0 0.0
        %566 = vmatprep.subr.mxu0 0.0
        %567 = vmatpush1.xpose.msra.mxu0 0.0
        %568 = vmatprep.subr.mxu0 0.0
        %569 = vmatpush1.xpose.msra.mxu0 0.0
        %570 = vmatprep.subr.mxu0 0.0
        %571 = vmatpush1.xpose.msra.mxu0 0.0
        %572 = vmatprep.subr.mxu0 0.0
        %573 = vmatpush1.xpose.msra.mxu0 0.0
        %574 = vmatprep.subr.mxu0 0.0
        %575 = vmatpush1.xpose.msra.mxu0 %v542
        %576 = vmatprep.subr.mxu0 0.0
        %577 = vmatpush2.xpose.msra.mxu0 0.0
        %578 = vmatprep.subr.mxu0 0.0
        %579 = vmatpush2.xpose.msra.mxu0 0.0
        %580 = vmatprep.subr.mxu0 0.0
        %581 = vmatpush2.xpose.msra.mxu0 0.0
        %582 = vmatprep.subr.mxu0 0.0
        %583 = vmatpush2.xpose.msra.mxu0 0.0
        %584 = vmatprep.subr.mxu0 0.0
        %585 = vmatpush2.xpose.msra.mxu0 0.0
        %586 = vmatprep.subr.mxu0 0.0
        %587 = vmatpush2.xpose.msra.mxu0 0.0
        %588 = vmatprep.subr.mxu0 0.0
        %589 = vmatpush2.xpose.msra.mxu0 0.0
        %590 = vmatprep.subr.mxu0 0.0
        %591 = vmatpush2.xpose.msra.mxu0 0.0
        %592 = vmatprep.subr.mxu0 0.0
        %593 = vmatpush2.xpose.msra.mxu0 0.0
        %594 = vmatprep.subr.mxu0 0.0
        %595 = vmatpush2.xpose.msra.mxu0 0.0
        %596 = vmatprep.subr.mxu0 0.0
        %597 = vmatpush2.xpose.msra.mxu0 0.0
        %598 = vmatprep.subr.mxu0 0.0
        %599 = vmatpush2.xpose.msra.mxu0 0.0
        %600 = vmatprep.subr.mxu0 0.0
        %601 = vmatpush2.xpose.msra.mxu0 0.0
        %602 = vmatprep.subr.mxu0 0.0
        %603 = vmatpush2.xpose.msra.mxu0 0.0
        %604 = vmatprep.subr.mxu0 0.0
        %605 = vmatpush2.xpose.msra.mxu0 0.0
        %606 = vmatprep.subr.mxu0 0.0
        %607 = vmatpush2.xpose.msra.mxu0 0.0
        %608 = vmatprep.mubr.f32.mxu0 0.0
        %609 = vmatmul.mubr.f32.gmra.mxu0 %v540
        %v610 = vpop.f32.mrf.mxu0
        %v611 = vadd.f32 %v533, %v610
        %v612 = vpop.f32.mrf.mxu0
        %613 = vdwg.mxu0
        %v614 = vsel %vm538, %v611, -inf
        %615 = vmax.xlane.f32.xlu0 %v614
        %v616 = vpop.xlane.xlu0 %615
        %v617 = vsub.f32 %v611, %v616
        %v618 = vmul.f32 %v617, 1.442695
        %v619 = vpow.pop %v618
        %v620 = vsel %vm538, %v619, 0.0
        %621 = vadd.xlane.f32.xlu0 %v620
        %v622 = vpop.xlane.xlu0 %621
        %623 = vrot.lane.b32.xlu0 %v522, 64
        %v624 = vpop.permute.xlu0 %623
        %v627 = vsel %vm538, %v619, 0
        %629 = vmatprep.subr.mxu0 0.0
        %630 = vmatpush1.msra.mxu0 0.0
        %631 = vmatprep.subr.mxu0 0.0
        %632 = vmatpush1.msra.mxu0 0.0
        %633 = vmatprep.subr.mxu0 0.0
        %634 = vmatpush1.msra.mxu0 0.0
        %635 = vmatprep.subr.mxu0 0.0
        %636 = vmatpush1.msra.mxu0 0.0
        %637 = vmatprep.subr.mxu0 0.0
        %638 = vmatpush1.msra.mxu0 0.0
        %639 = vmatprep.subr.mxu0 0.0
        %640 = vmatpush1.msra.mxu0 0.0
        %641 = vmatprep.subr.mxu0 0.0
        %642 = vmatpush1.msra.mxu0 0.0
        %643 = vmatprep.subr.mxu0 0.0
        %644 = vmatpush1.msra.mxu0 0.0
        %645 = vmatprep.subr.mxu0 0.0
        %646 = vmatpush1.msra.mxu0 0.0
        %647 = vmatprep.subr.mxu0 0.0
        %648 = vmatpush1.msra.mxu0 0.0
        %649 = vmatprep.subr.mxu0 0.0
        %650 = vmatpush1.msra.mxu0 0.0
        %651 = vmatprep.subr.mxu0 0.0
        %652 = vmatpush1.msra.mxu0 0.0
        %653 = vmatprep.subr.mxu0 0.0
        %654 = vmatpush1.msra.mxu0 0.0
        %655 = vmatprep.subr.mxu0 0.0
        %656 = vmatpush1.msra.mxu0 0.0
        %657 = vmatprep.subr.mxu0 0.0
        %658 = vmatpush1.msra.mxu0 0.0
        %659 = vmatprep.subr.mxu0 0.0
        %660 = vmatpush1.msra.mxu0 %v624
        %661 = vmatprep.subr.mxu0 0.0
        %662 = vmatpush2.msra.mxu0 0.0
        %663 = vmatprep.subr.mxu0 0.0
        %664 = vmatpush2.msra.mxu0 0.0
        %665 = vmatprep.subr.mxu0 0.0
        %666 = vmatpush2.msra.mxu0 0.0
        %667 = vmatprep.subr.mxu0 0.0
        %668 = vmatpush2.msra.mxu0 0.0
        %669 = vmatprep.subr.mxu0 0.0
        %670 = vmatpush2.msra.mxu0 0.0
        %671 = vmatprep.subr.mxu0 0.0
        %672 = vmatpush2.msra.mxu0 0.0
        %673 = vmatprep.subr.mxu0 0.0
        %674 = vmatpush2.msra.mxu0 0.0
        %675 = vmatprep.subr.mxu0 0.0
        %676 = vmatpush2.msra.mxu0 0.0
        %677 = vmatprep.subr.mxu0 0.0
        %678 = vmatpush2.msra.mxu0 0.0
        %679 = vmatprep.subr.mxu0 0.0
        %680 = vmatpush2.msra.mxu0 0.0
        %681 = vmatprep.subr.mxu0 0.0
        %682 = vmatpush2.msra.mxu0 0.0
        %683 = vmatprep.subr.mxu0 0.0
        %684 = vmatpush2.msra.mxu0 0.0
        %685 = vmatprep.subr.mxu0 0.0
        %686 = vmatpush2.msra.mxu0 0.0
        %687 = vmatprep.subr.mxu0 0.0
        %688 = vmatpush2.msra.mxu0 0.0
        %689 = vmatprep.subr.mxu0 0.0
        %690 = vmatpush2.msra.mxu0 0.0
        %691 = vmatprep.subr.mxu0 0.0
        %692 = vmatpush2.msra.mxu0 0.0
        %693 = vmatprep.mubr.f32.mxu0 0.0
        %694 = vmatmul.mubr.f32.gmra.mxu0 %v627
        %v695 = vpop.f32.mrf.mxu0
        %v696 = vadd.f32 0.0, %v695
        %v697 = vpop.f32.mrf.mxu0
        %698 = vdwg.mxu0
        %v699 = vrcp.pop %v622
        %v700 = vmul.f32 1.0, %v699
        %v701 = vmul.f32 %v696, %v700
        %702 = vst.msk [vmem:[#allocation2] sm:$0xff] %vm538, %v701
        %703 = vrot.lane.b32.xlu0 %v525, 120
        %v704 = vpop.permute.xlu0 %703
        %705 = vrot.lane.b32.xlu0 %v522, 88
        %v706 = vpop.permute.xlu0 %705
        %v707 = vsel %vm538, %v704, 0
        %v709 = vsel %vm538, %v706, 0
        %711 = vmatprep.subr.mxu0 0.0
        %712 = vmatpush1.xpose.msra.mxu0 0.0
        %713 = vmatprep.subr.mxu0 0.0
        %714 = vmatpush1.xpose.msra.mxu0 0.0
        %715 = vmatprep.subr.mxu0 0.0
        %716 = vmatpush1.xpose.msra.mxu0 0.0
        %717 = vmatprep.subr.mxu0 0.0
        %718 = vmatpush1.xpose.msra.mxu0 0.0
        %719 = vmatprep.subr.mxu0 0.0
        %720 = vmatpush1.xpose.msra.mxu0 0.0
        %721 = vmatprep.subr.mxu0 0.0
        %722 = vmatpush1.xpose.msra.mxu0 0.0
        %723 = vmatprep.subr.mxu0 0.0
        %724 = vmatpush1.xpose.msra.mxu0 0.0
        %725 = vmatprep.subr.mxu0 0.0
        %726 = vmatpush1.xpose.msra.mxu0 0.0
        %727 = vmatprep.subr.mxu0 0.0
        %728 = vmatpush1.xpose.msra.mxu0 0.0
        %729 = vmatprep.subr.mxu0 0.0
        %730 = vmatpush1.xpose.msra.mxu0 0.0
        %731 = vmatprep.subr.mxu0 0.0
        %732 = vmatpush1.xpose.msra.mxu0 0.0
        %733 = vmatprep.subr.mxu0 0.0
        %734 = vmatpush1.xpose.msra.mxu0 0.0
        %735 = vmatprep.subr.mxu0 0.0
        %736 = vmatpush1.xpose.msra.mxu0 0.0
        %737 = vmatprep.subr.mxu0 0.0
        %738 = vmatpush1.xpose.msra.mxu0 0.0
        %739 = vmatprep.subr.mxu0 0.0
        %740 = vmatpush1.xpose.msra.mxu0 0.0
        %741 = vmatprep.subr.mxu0 0.0
        %742 = vmatpush1.xpose.msra.mxu0 %v709
        %743 = vmatprep.subr.mxu0 0.0
        %744 = vmatpush2.xpose.msra.mxu0 0.0
        %745 = vmatprep.subr.mxu0 0.0
        %746 = vmatpush2.xpose.msra.mxu0 0.0
        %747 = vmatprep.subr.mxu0 0.0
        %748 = vmatpush2.xpose.msra.mxu0 0.0
        %749 = vmatprep.subr.mxu0 0.0
        %750 = vmatpush2.xpose.msra.mxu0 0.0
        %751 = vmatprep.subr.mxu0 0.0
        %752 = vmatpush2.xpose.msra.mxu0 0.0
        %753 = vmatprep.subr.mxu0 0.0
        %754 = vmatpush2.xpose.msra.mxu0 0.0
        %755 = vmatprep.subr.mxu0 0.0
        %756 = vmatpush2.xpose.msra.mxu0 0.0
        %757 = vmatprep.subr.mxu0 0.0
        %758 = vmatpush2.xpose.msra.mxu0 0.0
        %759 = vmatprep.subr.mxu0 0.0
        %760 = vmatpush2.xpose.msra.mxu0 0.0
        %761 = vmatprep.subr.mxu0 0.0
        %762 = vmatpush2.xpose.msra.mxu0 0.0
        %763 = vmatprep.subr.mxu0 0.0
        %764 = vmatpush2.xpose.msra.mxu0 0.0
        %765 = vmatprep.subr.mxu0 0.0
        %766 = vmatpush2.xpose.msra.mxu0 0.0
        %767 = vmatprep.subr.mxu0 0.0
        %768 = vmatpush2.xpose.msra.mxu0 0.0
        %769 = vmatprep.subr.mxu0 0.0
        %770 = vmatpush2.xpose.msra.mxu0 0.0
        %771 = vmatprep.subr.mxu0 0.0
        %772 = vmatpush2.xpose.msra.mxu0 0.0
        %773 = vmatprep.subr.mxu0 0.0
        %774 = vmatpush2.xpose.msra.mxu0 0.0
        %775 = vmatprep.mubr.f32.mxu0 0.0
        %776 = vmatmul.mubr.f32.gmra.mxu0 %v707
        %v777 = vpop.f32.mrf.mxu0
        %v778 = vadd.f32 %v533, %v777
        %v779 = vpop.f32.mrf.mxu0
        %780 = vdwg.mxu0
        %v781 = vsel %vm538, %v778, -inf
        %782 = vmax.xlane.f32.xlu0 %v781
        %v783 = vpop.xlane.xlu0 %782
        %v784 = vsub.f32 %v778, %v783
        %v785 = vmul.f32 %v784, 1.442695
        %v786 = vpow.pop %v785
        %v787 = vsel %vm538, %v786, 0.0
        %788 = vadd.xlane.f32.xlu0 %v787
        %v789 = vpop.xlane.xlu0 %788
        %790 = vrot.lane.b32.xlu0 %v522, 56
        %v791 = vpop.permute.xlu0 %790
        %v794 = vsel %vm538, %v786, 0
        %796 = vmatprep.subr.mxu0 0.0
        %797 = vmatpush1.msra.mxu0 0.0
        %798 = vmatprep.subr.mxu0 0.0
        %799 = vmatpush1.msra.mxu0 0.0
        %800 = vmatprep.subr.mxu0 0.0
        %801 = vmatpush1.msra.mxu0 0.0
        %802 = vmatprep.subr.mxu0 0.0
        %803 = vmatpush1.msra.mxu0 0.0
        %804 = vmatprep.subr.mxu0 0.0
        %805 = vmatpush1.msra.mxu0 0.0
        %806 = vmatprep.subr.mxu0 0.0
        %807 = vmatpush1.msra.mxu0 0.0
        %808 = vmatprep.subr.mxu0 0.0
        %809 = vmatpush1.msra.mxu0 0.0
        %810 = vmatprep.subr.mxu0 0.0
        %811 = vmatpush1.msra.mxu0 0.0
        %812 = vmatprep.subr.mxu0 0.0
        %813 = vmatpush1.msra.mxu0 0.0
        %814 = vmatprep.subr.mxu0 0.0
        %815 = vmatpush1.msra.mxu0 0.0
        %816 = vmatprep.subr.mxu0 0.0
        %817 = vmatpush1.msra.mxu0 0.0
        %818 = vmatprep.subr.mxu0 0.0
        %819 = vmatpush1.msra.mxu0 0.0
        %820 = vmatprep.subr.mxu0 0.0
        %821 = vmatpush1.msra.mxu0 0.0
        %822 = vmatprep.subr.mxu0 0.0
        %823 = vmatpush1.msra.mxu0 0.0
        %824 = vmatprep.subr.mxu0 0.0
        %825 = vmatpush1.msra.mxu0 0.0
        %826 = vmatprep.subr.mxu0 0.0
        %827 = vmatpush1.msra.mxu0 %v791
        %828 = vmatprep.subr.mxu0 0.0
        %829 = vmatpush2.msra.mxu0 0.0
        %830 = vmatprep.subr.mxu0 0.0
        %831 = vmatpush2.msra.mxu0 0.0
        %832 = vmatprep.subr.mxu0 0.0
        %833 = vmatpush2.msra.mxu0 0.0
        %834 = vmatprep.subr.mxu0 0.0
        %835 = vmatpush2.msra.mxu0 0.0
        %836 = vmatprep.subr.mxu0 0.0
        %837 = vmatpush2.msra.mxu0 0.0
        %838 = vmatprep.subr.mxu0 0.0
        %839 = vmatpush2.msra.mxu0 0.0
        %840 = vmatprep.subr.mxu0 0.0
        %841 = vmatpush2.msra.mxu0 0.0
        %842 = vmatprep.subr.mxu0 0.0
        %843 = vmatpush2.msra.mxu0 0.0
        %844 = vmatprep.subr.mxu0 0.0
        %845 = vmatpush2.msra.mxu0 0.0
        %846 = vmatprep.subr.mxu0 0.0
        %847 = vmatpush2.msra.mxu0 0.0
        %848 = vmatprep.subr.mxu0 0.0
        %849 = vmatpush2.msra.mxu0 0.0
        %850 = vmatprep.subr.mxu0 0.0
        %851 = vmatpush2.msra.mxu0 0.0
        %852 = vmatprep.subr.mxu0 0.0
        %853 = vmatpush2.msra.mxu0 0.0
        %854 = vmatprep.subr.mxu0 0.0
        %855 = vmatpush2.msra.mxu0 0.0
        %856 = vmatprep.subr.mxu0 0.0
        %857 = vmatpush2.msra.mxu0 0.0
        %858 = vmatprep.subr.mxu0 0.0
        %859 = vmatpush2.msra.mxu0 0.0
        %860 = vmatprep.mubr.f32.mxu0 0.0
        %861 = vmatmul.mubr.f32.gmra.mxu0 %v794
        %v862 = vpop.f32.mrf.mxu0
        %v863 = vadd.f32 0.0, %v862
        %v864 = vpop.f32.mrf.mxu0
        %865 = vdwg.mxu0
        %v866 = vrcp.pop %v789
        %v867 = vmul.f32 1.0, %v866
        %v868 = vmul.f32 %v863, %v867
        %870 = vrot.lane.b32.xlu0 %v868, 8
        %v871 = vpop.permute.xlu0 %870
        %vm873 = vcmask 130112
        %874 = vst.msk [vmem:[#allocation2] sm:$0xff] %vm873, %v871
        %875 = vrot.lane.b32.xlu0 %v525, 112
        %v876 = vpop.permute.xlu0 %875
        %877 = vrot.lane.b32.xlu0 %v522, 80
        %v878 = vpop.permute.xlu0 %877
        %v879 = vsel %vm538, %v876, 0
        %v881 = vsel %vm538, %v878, 0
        %883 = vmatprep.subr.mxu0 0.0
        %884 = vmatpush1.xpose.msra.mxu0 0.0
        %885 = vmatprep.subr.mxu0 0.0
        %886 = vmatpush1.xpose.msra.mxu0 0.0
        %887 = vmatprep.subr.mxu0 0.0
        %888 = vmatpush1.xpose.msra.mxu0 0.0
        %889 = vmatprep.subr.mxu0 0.0
        %890 = vmatpush1.xpose.msra.mxu0 0.0
        %891 = vmatprep.subr.mxu0 0.0
        %892 = vmatpush1.xpose.msra.mxu0 0.0
        %893 = vmatprep.subr.mxu0 0.0
        %894 = vmatpush1.xpose.msra.mxu0 0.0
        %895 = vmatprep.subr.mxu0 0.0
        %896 = vmatpush1.xpose.msra.mxu0 0.0
        %897 = vmatprep.subr.mxu0 0.0
        %898 = vmatpush1.xpose.msra.mxu0 0.0
        %899 = vmatprep.subr.mxu0 0.0
        %900 = vmatpush1.xpose.msra.mxu0 0.0
        %901 = vmatprep.subr.mxu0 0.0
        %902 = vmatpush1.xpose.msra.mxu0 0.0
        %903 = vmatprep.subr.mxu0 0.0
        %904 = vmatpush1.xpose.msra.mxu0 0.0
        %905 = vmatprep.subr.mxu0 0.0
        %906 = vmatpush1.xpose.msra.mxu0 0.0
        %907 = vmatprep.subr.mxu0 0.0
        %908 = vmatpush1.xpose.msra.mxu0 0.0
        %909 = vmatprep.subr.mxu0 0.0
        %910 = vmatpush1.xpose.msra.mxu0 0.0
        %911 = vmatprep.subr.mxu0 0.0
        %912 = vmatpush1.xpose.msra.mxu0 0.0
        %913 = vmatprep.subr.mxu0 0.0
        %914 = vmatpush1.xpose.msra.mxu0 %v881
        %915 = vmatprep.subr.mxu0 0.0
        %916 = vmatpush2.xpose.msra.mxu0 0.0
        %917 = vmatprep.subr.mxu0 0.0
        %918 = vmatpush2.xpose.msra.mxu0 0.0
        %919 = vmatprep.subr.mxu0 0.0
        %920 = vmatpush2.xpose.msra.mxu0 0.0
        %921 = vmatprep.subr.mxu0 0.0
        %922 = vmatpush2.xpose.msra.mxu0 0.0
        %923 = vmatprep.subr.mxu0 0.0
        %924 = vmatpush2.xpose.msra.mxu0 0.0
        %925 = vmatprep.subr.mxu0 0.0
        %926 = vmatpush2.xpose.msra.mxu0 0.0
        %927 = vmatprep.subr.mxu0 0.0
        %928 = vmatpush2.xpose.msra.mxu0 0.0
        %929 = vmatprep.subr.mxu0 0.0
        %930 = vmatpush2.xpose.msra.mxu0 0.0
        %931 = vmatprep.subr.mxu0 0.0
        %932 = vmatpush2.xpose.msra.mxu0 0.0
        %933 = vmatprep.subr.mxu0 0.0
        %934 = vmatpush2.xpose.msra.mxu0 0.0
        %935 = vmatprep.subr.mxu0 0.0
        %936 = vmatpush2.xpose.msra.mxu0 0.0
        %937 = vmatprep.subr.mxu0 0.0
        %938 = vmatpush2.xpose.msra.mxu0 0.0
        %939 = vmatprep.subr.mxu0 0.0
        %940 = vmatpush2.xpose.msra.mxu0 0.0
        %941 = vmatprep.subr.mxu0 0.0
        %942 = vmatpush2.xpose.msra.mxu0 0.0
        %943 = vmatprep.subr.mxu0 0.0
        %944 = vmatpush2.xpose.msra.mxu0 0.0
        %945 = vmatprep.subr.mxu0 0.0
        %946 = vmatpush2.xpose.msra.mxu0 0.0
        %947 = vmatprep.mubr.f32.mxu0 0.0
        %948 = vmatmul.mubr.f32.gmra.mxu0 %v879
        %v949 = vpop.f32.mrf.mxu0
        %v950 = vadd.f32 %v533, %v949
        %v951 = vpop.f32.mrf.mxu0
        %952 = vdwg.mxu0
        %v953 = vsel %vm538, %v950, -inf
        %954 = vmax.xlane.f32.xlu0 %v953
        %v955 = vpop.xlane.xlu0 %954
        %v956 = vsub.f32 %v950, %v955
        %v957 = vmul.f32 %v956, 1.442695
        %v958 = vpow.pop %v957
        %v959 = vsel %vm538, %v958, 0.0
        %960 = vadd.xlane.f32.xlu0 %v959
        %v961 = vpop.xlane.xlu0 %960
        %962 = vrot.lane.b32.xlu0 %v522, 48
        %v963 = vpop.permute.xlu0 %962
        %v966 = vsel %vm538, %v958, 0
        %968 = vmatprep.subr.mxu0 0.0
        %969 = vmatpush1.msra.mxu0 0.0
        %970 = vmatprep.subr.mxu0 0.0
        %971 = vmatpush1.msra.mxu0 0.0
        %972 = vmatprep.subr.mxu0 0.0
        %973 = vmatpush1.msra.mxu0 0.0
        %974 = vmatprep.subr.mxu0 0.0
        %975 = vmatpush1.msra.mxu0 0.0
        %976 = vmatprep.subr.mxu0 0.0
        %977 = vmatpush1.msra.mxu0 0.0
        %978 = vmatprep.subr.mxu0 0.0
        %979 = vmatpush1.msra.mxu0 0.0
        %980 = vmatprep.subr.mxu0 0.0
        %981 = vmatpush1.msra.mxu0 0.0
        %982 = vmatprep.subr.mxu0 0.0
        %983 = vmatpush1.msra.mxu0 0.0
        %984 = vmatprep.subr.mxu0 0.0
        %985 = vmatpush1.msra.mxu0 0.0
        %986 = vmatprep.subr.mxu0 0.0
        %987 = vmatpush1.msra.mxu0 0.0
        %988 = vmatprep.subr.mxu0 0.0
        %989 = vmatpush1.msra.mxu0 0.0
        %990 = vmatprep.subr.mxu0 0.0
        %991 = vmatpush1.msra.mxu0 0.0
        %992 = vmatprep.subr.mxu0 0.0
        %993 = vmatpush1.msra.mxu0 0.0
        %994 = vmatprep.subr.mxu0 0.0
        %995 = vmatpush1.msra.mxu0 0.0
        %996 = vmatprep.subr.mxu0 0.0
        %997 = vmatpush1.msra.mxu0 0.0
        %998 = vmatprep.subr.mxu0 0.0
        %999 = vmatpush1.msra.mxu0 %v963
        %1000 = vmatprep.subr.mxu0 0.0
        %1001 = vmatpush2.msra.mxu0 0.0
        %1002 = vmatprep.subr.mxu0 0.0
        %1003 = vmatpush2.msra.mxu0 0.0
        %1004 = vmatprep.subr.mxu0 0.0
        %1005 = vmatpush2.msra.mxu0 0.0
        %1006 = vmatprep.subr.mxu0 0.0
        %1007 = vmatpush2.msra.mxu0 0.0
        %1008 = vmatprep.subr.mxu0 0.0
        %1009 = vmatpush2.msra.mxu0 0.0
        %1010 = vmatprep.subr.mxu0 0.0
        %1011 = vmatpush2.msra.mxu0 0.0
        %1012 = vmatprep.subr.mxu0 0.0
        %1013 = vmatpush2.msra.mxu0 0.0
        %1014 = vmatprep.subr.mxu0 0.0
        %1015 = vmatpush2.msra.mxu0 0.0
        %1016 = vmatprep.subr.mxu0 0.0
        %1017 = vmatpush2.msra.mxu0 0.0
        %1018 = vmatprep.subr.mxu0 0.0
        %1019 = vmatpush2.msra.mxu0 0.0
        %1020 = vmatprep.subr.mxu0 0.0
        %1021 = vmatpush2.msra.mxu0 0.0
        %1022 = vmatprep.subr.mxu0 0.0
        %1023 = vmatpush2.msra.mxu0 0.0
        %1024 = vmatprep.subr.mxu0 0.0
        %1025 = vmatpush2.msra.mxu0 0.0
        %1026 = vmatprep.subr.mxu0 0.0
        %1027 = vmatpush2.msra.mxu0 0.0
        %1028 = vmatprep.subr.mxu0 0.0
        %1029 = vmatpush2.msra.mxu0 0.0
        %1030 = vmatprep.subr.mxu0 0.0
        %1031 = vmatpush2.msra.mxu0 0.0
        %1032 = vmatprep.mubr.f32.mxu0 0.0
        %1033 = vmatmul.mubr.f32.gmra.mxu0 %v966
        %v1034 = vpop.f32.mrf.mxu0
        %v1035 = vadd.f32 0.0, %v1034
        %v1036 = vpop.f32.mrf.mxu0
        %1037 = vdwg.mxu0
        %v1038 = vrcp.pop %v961
        %v1039 = vmul.f32 1.0, %v1038
        %v1040 = vmul.f32 %v1035, %v1039
        %1042 = vrot.lane.b32.xlu0 %v1040, 16
        %v1043 = vpop.permute.xlu0 %1042
        %vm1045 = vcmask 195712
        %1046 = vst.msk [vmem:[#allocation2] sm:$0xff] %vm1045, %v1043
        %1047 = vrot.lane.b32.xlu0 %v525, 104
        %v1048 = vpop.permute.xlu0 %1047
        %1049 = vrot.lane.b32.xlu0 %v522, 72
        %v1050 = vpop.permute.xlu0 %1049
        %v1051 = vsel %vm538, %v1048, 0
        %v1053 = vsel %vm538, %v1050, 0
        %1055 = vmatprep.subr.mxu0 0.0
        %1056 = vmatpush1.xpose.msra.mxu0 0.0
        %1057 = vmatprep.subr.mxu0 0.0
        %1058 = vmatpush1.xpose.msra.mxu0 0.0
        %1059 = vmatprep.subr.mxu0 0.0
        %1060 = vmatpush1.xpose.msra.mxu0 0.0
        %1061 = vmatprep.subr.mxu0 0.0
        %1062 = vmatpush1.xpose.msra.mxu0 0.0
        %1063 = vmatprep.subr.mxu0 0.0
        %1064 = vmatpush1.xpose.msra.mxu0 0.0
        %1065 = vmatprep.subr.mxu0 0.0
        %1066 = vmatpush1.xpose.msra.mxu0 0.0
        %1067 = vmatprep.subr.mxu0 0.0
        %1068 = vmatpush1.xpose.msra.mxu0 0.0
        %1069 = vmatprep.subr.mxu0 0.0
        %1070 = vmatpush1.xpose.msra.mxu0 0.0
        %1071 = vmatprep.subr.mxu0 0.0
        %1072 = vmatpush1.xpose.msra.mxu0 0.0
        %1073 = vmatprep.subr.mxu0 0.0
        %1074 = vmatpush1.xpose.msra.mxu0 0.0
        %1075 = vmatprep.subr.mxu0 0.0
        %1076 = vmatpush1.xpose.msra.mxu0 0.0
        %1077 = vmatprep.subr.mxu0 0.0
        %1078 = vmatpush1.xpose.msra.mxu0 0.0
        %1079 = vmatprep.subr.mxu0 0.0
        %1080 = vmatpush1.xpose.msra.mxu0 0.0
        %1081 = vmatprep.subr.mxu0 0.0
        %1082 = vmatpush1.xpose.msra.mxu0 0.0
        %1083 = vmatprep.subr.mxu0 0.0
        %1084 = vmatpush1.xpose.msra.mxu0 0.0
        %1085 = vmatprep.subr.mxu0 0.0
        %1086 = vmatpush1.xpose.msra.mxu0 %v1053
        %1087 = vmatprep.subr.mxu0 0.0
        %1088 = vmatpush2.xpose.msra.mxu0 0.0
        %1089 = vmatprep.subr.mxu0 0.0
        %1090 = vmatpush2.xpose.msra.mxu0 0.0
        %1091 = vmatprep.subr.mxu0 0.0
        %1092 = vmatpush2.xpose.msra.mxu0 0.0
        %1093 = vmatprep.subr.mxu0 0.0
        %1094 = vmatpush2.xpose.msra.mxu0 0.0
        %1095 = vmatprep.subr.mxu0 0.0
        %1096 = vmatpush2.xpose.msra.mxu0 0.0
        %1097 = vmatprep.subr.mxu0 0.0
        %1098 = vmatpush2.xpose.msra.mxu0 0.0
        %1099 = vmatprep.subr.mxu0 0.0
        %1100 = vmatpush2.xpose.msra.mxu0 0.0
        %1101 = vmatprep.subr.mxu0 0.0
        %1102 = vmatpush2.xpose.msra.mxu0 0.0
        %1103 = vmatprep.subr.mxu0 0.0
        %1104 = vmatpush2.xpose.msra.mxu0 0.0
        %1105 = vmatprep.subr.mxu0 0.0
        %1106 = vmatpush2.xpose.msra.mxu0 0.0
        %1107 = vmatprep.subr.mxu0 0.0
        %1108 = vmatpush2.xpose.msra.mxu0 0.0
        %1109 = vmatprep.subr.mxu0 0.0
        %1110 = vmatpush2.xpose.msra.mxu0 0.0
        %1111 = vmatprep.subr.mxu0 0.0
        %1112 = vmatpush2.xpose.msra.mxu0 0.0
        %1113 = vmatprep.subr.mxu0 0.0
        %1114 = vmatpush2.xpose.msra.mxu0 0.0
        %1115 = vmatprep.subr.mxu0 0.0
        %1116 = vmatpush2.xpose.msra.mxu0 0.0
        %1117 = vmatprep.subr.mxu0 0.0
        %1118 = vmatpush2.xpose.msra.mxu0 0.0
        %1119 = vmatprep.mubr.f32.mxu0 0.0
        %1120 = vmatmul.mubr.f32.gmra.mxu0 %v1051
        %v1121 = vpop.f32.mrf.mxu0
        %v1122 = vadd.f32 %v533, %v1121
        %v1123 = vpop.f32.mrf.mxu0
        %1124 = vdwg.mxu0
        %v1125 = vsel %vm538, %v1122, -inf
        %1126 = vmax.xlane.f32.xlu0 %v1125
        %v1127 = vpop.xlane.xlu0 %1126
        %v1128 = vsub.f32 %v1122, %v1127
        %v1129 = vmul.f32 %v1128, 1.442695
        %v1130 = vpow.pop %v1129
        %v1131 = vsel %vm538, %v1130, 0.0
        %1132 = vadd.xlane.f32.xlu0 %v1131
        %v1133 = vpop.xlane.xlu0 %1132
        %1134 = vrot.lane.b32.xlu0 %v522, 40
        %v1135 = vpop.permute.xlu0 %1134
        %v1138 = vsel %vm538, %v1130, 0
        %1140 = vmatprep.subr.mxu0 0.0
        %1141 = vmatpush1.msra.mxu0 0.0
        %1142 = vmatprep.subr.mxu0 0.0
        %1143 = vmatpush1.msra.mxu0 0.0
        %1144 = vmatprep.subr.mxu0 0.0
        %1145 = vmatpush1.msra.mxu0 0.0
        %1146 = vmatprep.subr.mxu0 0.0
        %1147 = vmatpush1.msra.mxu0 0.0
        %1148 = vmatprep.subr.mxu0 0.0
        %1149 = vmatpush1.msra.mxu0 0.0
        %1150 = vmatprep.subr.mxu0 0.0
        %1151 = vmatpush1.msra.mxu0 0.0
        %1152 = vmatprep.subr.mxu0 0.0
        %1153 = vmatpush1.msra.mxu0 0.0
        %1154 = vmatprep.subr.mxu0 0.0
        %1155 = vmatpush1.msra.mxu0 0.0
        %1156 = vmatprep.subr.mxu0 0.0
        %1157 = vmatpush1.msra.mxu0 0.0
        %1158 = vmatprep.subr.mxu0 0.0
        %1159 = vmatpush1.msra.mxu0 0.0
        %1160 = vmatprep.subr.mxu0 0.0
        %1161 = vmatpush1.msra.mxu0 0.0
        %1162 = vmatprep.subr.mxu0 0.0
        %1163 = vmatpush1.msra.mxu0 0.0
        %1164 = vmatprep.subr.mxu0 0.0
        %1165 = vmatpush1.msra.mxu0 0.0
        %1166 = vmatprep.subr.mxu0 0.0
        %1167 = vmatpush1.msra.mxu0 0.0
        %1168 = vmatprep.subr.mxu0 0.0
        %1169 = vmatpush1.msra.mxu0 0.0
        %1170 = vmatprep.subr.mxu0 0.0
        %1171 = vmatpush1.msra.mxu0 %v1135
        %1172 = vmatprep.subr.mxu0 0.0
        %1173 = vmatpush2.msra.mxu0 0.0
        %1174 = vmatprep.subr.mxu0 0.0
        %1175 = vmatpush2.msra.mxu0 0.0
        %1176 = vmatprep.subr.mxu0 0.0
        %1177 = vmatpush2.msra.mxu0 0.0
        %1178 = vmatprep.subr.mxu0 0.0
        %1179 = vmatpush2.msra.mxu0 0.0
        %1180 = vmatprep.subr.mxu0 0.0
        %1181 = vmatpush2.msra.mxu0 0.0
        %1182 = vmatprep.subr.mxu0 0.0
        %1183 = vmatpush2.msra.mxu0 0.0
        %1184 = vmatprep.subr.mxu0 0.0
        %1185 = vmatpush2.msra.mxu0 0.0
        %1186 = vmatprep.subr.mxu0 0.0
        %1187 = vmatpush2.msra.mxu0 0.0
        %1188 = vmatprep.subr.mxu0 0.0
        %1189 = vmatpush2.msra.mxu0 0.0
        %1190 = vmatprep.subr.mxu0 0.0
        %1191 = vmatpush2.msra.mxu0 0.0
        %1192 = vmatprep.subr.mxu0 0.0
        %1193 = vmatpush2.msra.mxu0 0.0
        %1194 = vmatprep.subr.mxu0 0.0
        %1195 = vmatpush2.msra.mxu0 0.0
        %1196 = vmatprep.subr.mxu0 0.0
        %1197 = vmatpush2.msra.mxu0 0.0
        %1198 = vmatprep.subr.mxu0 0.0
        %1199 = vmatpush2.msra.mxu0 0.0
        %1200 = vmatprep.subr.mxu0 0.0
        %1201 = vmatpush2.msra.mxu0 0.0
        %1202 = vmatprep.subr.mxu0 0.0
        %1203 = vmatpush2.msra.mxu0 0.0
        %1204 = vmatprep.mubr.f32.mxu0 0.0
        %1205 = vmatmul.mubr.f32.gmra.mxu0 %v1138
        %v1206 = vpop.f32.mrf.mxu0
        %v1207 = vadd.f32 0.0, %v1206
        %v1208 = vpop.f32.mrf.mxu0
        %1209 = vdwg.mxu0
        %v1210 = vrcp.pop %v1133
        %v1211 = vmul.f32 1.0, %v1210
        %v1212 = vmul.f32 %v1207, %v1211
        %1214 = vrot.lane.b32.xlu0 %v1212, 24
        %v1215 = vpop.permute.xlu0 %1214
        %vm1217 = vcmask 261312
        %1218 = vst.msk [vmem:[#allocation2] sm:$0xff] %vm1217, %v1215
        %v1219 = vld [vmem:[#allocation2] sm:$0xff]
        %v1220 = vld [vmem:[#allocation7] sm:$0xff]
        %v1221 = vld [vmem:[#allocation7 + $0x8] sm:$0xff]
        %v1222 = vld [vmem:[#allocation7 + $0x10] sm:$0xff]
        %v1223 = vld [vmem:[#allocation7 + $0x18] sm:$0xff]
        %v1224 = vld [vmem:[#allocation8] sm:$0xff]
        %v1225 = vld [vmem:[#allocation8 + $0x8] sm:$0xff]
        %v1226 = vld [vmem:[#allocation8 + $0x10] sm:$0xff]
        %v1227 = vld [vmem:[#allocation8 + $0x18] sm:$0xff]
        %1228 = vmatprep.subr.mxu0 0.0
        %1229 = vmatpush1.msra.mxu0 0.0
        %1230 = vmatprep.subr.mxu0 0.0
        %1231 = vmatpush1.msra.mxu0 0.0
        %1232 = vmatprep.subr.mxu0 0.0
        %1233 = vmatpush1.msra.mxu0 0.0
        %1234 = vmatprep.subr.mxu0 0.0
        %1235 = vmatpush1.msra.mxu0 0.0
        %1236 = vmatprep.subr.mxu0 0.0
        %1237 = vmatpush1.msra.mxu0 0.0
        %1238 = vmatprep.subr.mxu0 0.0
        %1239 = vmatpush1.msra.mxu0 0.0
        %1240 = vmatprep.subr.mxu0 0.0
        %1241 = vmatpush1.msra.mxu0 0.0
        %1242 = vmatprep.subr.mxu0 0.0
        %1243 = vmatpush1.msra.mxu0 0.0
        %1244 = vmatprep.subr.mxu0 0.0
        %1245 = vmatpush1.msra.mxu0 0.0
        %1246 = vmatprep.subr.mxu0 0.0
        %1247 = vmatpush1.msra.mxu0 0.0
        %1248 = vmatprep.subr.mxu0 0.0
        %1249 = vmatpush1.msra.mxu0 0.0
        %1250 = vmatprep.subr.mxu0 0.0
        %1251 = vmatpush1.msra.mxu0 0.0
        %1252 = vmatprep.subr.mxu0 0.0
        %1253 = vmatpush1.msra.mxu0 %v1227
        %1254 = vmatprep.subr.mxu0 0.0
        %1255 = vmatpush1.msra.mxu0 %v1226
        %1256 = vmatprep.subr.mxu0 0.0
        %1257 = vmatpush1.msra.mxu0 %v1225
        %1258 = vmatprep.subr.mxu0 0.0
        %1259 = vmatpush1.msra.mxu0 %v1224
        %1260 = vmatprep.subr.mxu0 0.0
        %1261 = vmatpush2.msra.mxu0 0.0
        %1262 = vmatprep.subr.mxu0 0.0
        %1263 = vmatpush2.msra.mxu0 0.0
        %1264 = vmatprep.subr.mxu0 0.0
        %1265 = vmatpush2.msra.mxu0 0.0
        %1266 = vmatprep.subr.mxu0 0.0
        %1267 = vmatpush2.msra.mxu0 0.0
        %1268 = vmatprep.subr.mxu0 0.0
        %1269 = vmatpush2.msra.mxu0 0.0
        %1270 = vmatprep.subr.mxu0 0.0
        %1271 = vmatpush2.msra.mxu0 0.0
        %1272 = vmatprep.subr.mxu0 0.0
        %1273 = vmatpush2.msra.mxu0 0.0
        %1274 = vmatprep.subr.mxu0 0.0
        %1275 = vmatpush2.msra.mxu0 0.0
        %1276 = vmatprep.subr.mxu0 0.0
        %1277 = vmatpush2.msra.mxu0 0.0
        %1278 = vmatprep.subr.mxu0 0.0
        %1279 = vmatpush2.msra.mxu0 0.0
        %1280 = vmatprep.subr.mxu0 0.0
        %1281 = vmatpush2.msra.mxu0 0.0
        %1282 = vmatprep.subr.mxu0 0.0
        %1283 = vmatpush2.msra.mxu0 0.0
        %1284 = vmatprep.subr.mxu0 0.0
        %1285 = vmatpush2.msra.mxu0 0.0
        %1286 = vmatprep.subr.mxu0 0.0
        %1287 = vmatpush2.msra.mxu0 0.0
        %1288 = vmatprep.subr.mxu0 0.0
        %1289 = vmatpush2.msra.mxu0 0.0
        %1290 = vmatprep.subr.mxu0 0.0
        %1291 = vmatpush2.msra.mxu0 0.0
        %1292 = vmatprep.mubr.f32.mxu0 0.0
        %1293 = vmatmul.mubr.f32.gmra.mxu0 %v453
        %v1294 = vpop.f32.mrf.mxu0
        %v1295 = vadd.f32 0.0, %v1294
        %v1296 = vpop.f32.mrf.mxu0
        %1297 = vdwg.mxu0
        %v1299 = vsel %vm408, %v1219, 0
        %1301 = vmatprep.subr.mxu0 0.0
        %1302 = vmatpush1.msra.mxu0 0.0
        %1303 = vmatprep.subr.mxu0 0.0
        %1304 = vmatpush1.msra.mxu0 0.0
        %1305 = vmatprep.subr.mxu0 0.0
        %1306 = vmatpush1.msra.mxu0 0.0
        %1307 = vmatprep.subr.mxu0 0.0
        %1308 = vmatpush1.msra.mxu0 0.0
        %1309 = vmatprep.subr.mxu0 0.0
        %1310 = vmatpush1.msra.mxu0 0.0
        %1311 = vmatprep.subr.mxu0 0.0
        %1312 = vmatpush1.msra.mxu0 0.0
        %1313 = vmatprep.subr.mxu0 0.0
        %1314 = vmatpush1.msra.mxu0 0.0
        %1315 = vmatprep.subr.mxu0 0.0
        %1316 = vmatpush1.msra.mxu0 0.0
        %1317 = vmatprep.subr.mxu0 0.0
        %1318 = vmatpush1.msra.mxu0 0.0
        %1319 = vmatprep.subr.mxu0 0.0
        %1320 = vmatpush1.msra.mxu0 0.0
        %1321 = vmatprep.subr.mxu0 0.0
        %1322 = vmatpush1.msra.mxu0 0.0
        %1323 = vmatprep.subr.mxu0 0.0
        %1324 = vmatpush1.msra.mxu0 0.0
        %1325 = vmatprep.subr.mxu0 0.0
        %1326 = vmatpush1.msra.mxu0 %v1223
        %1327 = vmatprep.subr.mxu0 0.0
        %1328 = vmatpush1.msra.mxu0 %v1222
        %1329 = vmatprep.subr.mxu0 0.0
        %1330 = vmatpush1.msra.mxu0 %v1221
        %1331 = vmatprep.subr.mxu0 0.0
        %1332 = vmatpush1.msra.mxu0 %v1220
        %1333 = vmatprep.subr.mxu0 0.0
        %1334 = vmatpush2.msra.mxu0 0.0
        %1335 = vmatprep.subr.mxu0 0.0
        %1336 = vmatpush2.msra.mxu0 0.0
        %1337 = vmatprep.subr.mxu0 0.0
        %1338 = vmatpush2.msra.mxu0 0.0
        %1339 = vmatprep.subr.mxu0 0.0
        %1340 = vmatpush2.msra.mxu0 0.0
        %1341 = vmatprep.subr.mxu0 0.0
        %1342 = vmatpush2.msra.mxu0 0.0
        %1343 = vmatprep.subr.mxu0 0.0
        %1344 = vmatpush2.msra.mxu0 0.0
        %1345 = vmatprep.subr.mxu0 0.0
        %1346 = vmatpush2.msra.mxu0 0.0
        %1347 = vmatprep.subr.mxu0 0.0
        %1348 = vmatpush2.msra.mxu0 0.0
        %1349 = vmatprep.subr.mxu0 0.0
        %1350 = vmatpush2.msra.mxu0 0.0
        %1351 = vmatprep.subr.mxu0 0.0
        %1352 = vmatpush2.msra.mxu0 0.0
        %1353 = vmatprep.subr.mxu0 0.0
        %1354 = vmatpush2.msra.mxu0 0.0
        %1355 = vmatprep.subr.mxu0 0.0
        %1356 = vmatpush2.msra.mxu0 0.0
        %1357 = vmatprep.subr.mxu0 0.0
        %1358 = vmatpush2.msra.mxu0 0.0
        %1359 = vmatprep.subr.mxu0 0.0
        %1360 = vmatpush2.msra.mxu0 0.0
        %1361 = vmatprep.subr.mxu0 0.0
        %1362 = vmatpush2.msra.mxu0 0.0
        %1363 = vmatprep.subr.mxu0 0.0
        %1364 = vmatpush2.msra.mxu0 0.0
        %1365 = vmatprep.mubr.f32.mxu0 0.0
        %1366 = vmatmul.mubr.f32.gmra.mxu0 %v1299
        %v1367 = vpop.f32.mrf.mxu0
        %v1368 = vadd.f32 %v1295, %v1367
        %v1369 = vpop.f32.mrf.mxu0
        %1370 = vdwg.mxu0
        %v1371 = vld [vmem:[%s8] sm:$0x1]
        %v1373 = vlaneseq
        %v1374 = vshrl.u32 %v1373, 7
        %v1375 = vsub.s32 0, %v1374
        %v1376 = vrot.slane %v1371, %v1375
        %v1378 = vadd.f32 %v1368, %v1376
        %v1379 = vxor.u32 %v1378, 2147483648
        %v1380 = vmul.f32 %v1379, 1.442695
        %v1381 = vpow.pop %v1380
        %v1382 = vadd.f32 %v1381, 1.0
        %v1383 = vrcp.pop %v1382
        %v1384 = vmul.f32 1.0, %v1383
        %1386 = vrot.lane.b32.xlu0 %v1384, 96
        %v1387 = vpop.permute.xlu0 %1386
        %v1389 = vmul.f32 %v1378, %v1387
        %v1390 = vadd.f32 %v407, %v1389
        %1391 = vst.msk [vmem:[%s406] sm:$0xff] %vm408, %v1390
        %p1392 = scmp.lt.s32.totalorder %s25, 1
        %s1393 = scalar_select %p1392, %s25, 1
        %s1394 = smul.addr %s1393, 8
        %s1395 = scalar_lea.vmem %s9, %s1394
        // Predicated region
        $region73: #{aoa_refiner_core.6} parent=55 // pred_check
          %p1396 = pneg %p242
        $region74: #{aoa_refiner_core.6} parent=55 // pred_check_branch
          %1398 = sbr.rel (%p1396) target = $region76
        $region75: #{aoa_refiner_core.6} parent=55 // pred_region
          _
        $region76: #{aoa_refiner_core.6} parent=55 // pred_fallthru
          _
      $region56: #{aoa_refiner_core.6} parent=5 // pred_fallthru
        _
      %p1399 = scmp.le.s32.totalorder 2, %s20
      // Predicated region
      $region77: #{aoa_refiner_core.6} parent=5 // pred_check
        %p1400 = pneg %p1399
      $region78: #{aoa_refiner_core.6} parent=5 // pred_check_branch
        %1402 = sbr.rel (%p1400) target = $region80
      $region79: #{aoa_refiner_core.6} parent=5 // pred_region
        %s1403 = ssub.s32 %s20, 2
        // Predicated region
        $region81: #{aoa_refiner_core.6} parent=79 // pred_check
          %p1404 = pneg %p248
        $region82: #{aoa_refiner_core.6} parent=79 // pred_check_branch
          %1406 = sbr.rel (%p1404) target = $region84
        $region83: #{aoa_refiner_core.6} parent=79 // pred_region
          %p1407 = scmp.lt.s32.totalorder %s26, 1
          %s1408 = scalar_select %p1407, %s26, 1
          %s1409 = smul.addr %s1408, 8
          %s1410 = scalar_lea.vmem %s9, %s1409
        $region84: #{aoa_refiner_core.6} parent=79 // pred_fallthru
          _
      $region80: #{aoa_refiner_core.6} parent=5 // pred_fallthru
        _
    $region6: #{aoa_refiner_core.6} parent=1 // loop_footer
      %s24 = sadd.s32 1, %s20
    $region7: #{aoa_refiner_core.6} parent=1 // loop_footer_branch
      %19 = sbr.rel target = $region3
    $region8: #{aoa_refiner_core.6} parent=1 // loop_exit
      _
    %1411 = vsyncpa [#allocation4], 1
    %s1412 = scalar_lea.sflag [#allocation4], 1
    %1413 = vsyncpa %s1412, 1
    %1414 = vsyncpa [#allocation6], 1
    %1415 = vsyncpa [#allocation9], 1

// kernel: aoa_refiner_core.11
$region0: #{aoa_refiner_core.11}
  #allocation0 [shape = 'u32[]', space=smem, size = 0x4, offset = 0x4, fixed_abs, tag = 'smem constant byte address 0x4 - core index']
  #allocation1 [shape = 'u32[144,128]{1,0:T(1,128)}', space=vmem, size = 0x12000, scoped, tag = 'internal scratch']
  %s0 = inlined_call_operand.vmem [shape: f32[16,32], index: 0, kind: input, shape index: {}]
  %s1 = inlined_call_operand.vmem [shape: f32[1,32], index: 1, kind: input, shape index: {}]
  %s2 = inlined_call_operand.vmem [shape: f32[1,32], index: 2, kind: input, shape index: {}]
  %s3 = inlined_call_operand.vmem [shape: f32[32,64], index: 3, kind: input, shape index: {}]
  %s4 = inlined_call_operand.vmem [shape: f32[1,64], index: 4, kind: input, shape index: {}]
  %s5 = inlined_call_operand.vmem [shape: f32[64,32], index: 5, kind: input, shape index: {}]
  %s6 = inlined_call_operand.vmem [shape: f32[1,32], index: 6, kind: input, shape index: {}]
  %s7 = inlined_call_operand.vmem [shape: f32[1,32], index: 7, kind: input, shape index: {}]
  %s8 = inlined_call_operand.vmem [shape: f32[1,32], index: 8, kind: input, shape index: {}]
  %s9 = inlined_call_operand.hbm [shape: f32[16,32], index: 9, kind: output, shape index: {}]
  %s10 = sld [smem:[#allocation0]]
  $region46: #{aoa_refiner_core.11} parent=0
    _
  %s12 = ssub.s32 1, %s10
  %s13 = scalar_select 0, %s12, %s10
  $region1: #{aoa_refiner_core.11} parent=0
    #allocation2 [shape = 'u8[8192]{0}', space=vmem, size = 0x2000, scoped, tag = 'output window, operand 0, single buffered']
    #allocation3 [shape = 's32[1]{0}', space=sflag, size = 0x4, scoped, tag = 'scoped memory for aoa_refiner_core.11']
    %14 = vsyncpa [#allocation3], 0
    // Predicated region
    $region2: #{aoa_refiner_core.11} parent=1 // pred_check
      _
    $region3: #{aoa_refiner_core.11} parent=1 // pred_check_branch
      %16 = sbr.rel (0) target = $region5
    $region4: #{aoa_refiner_core.11} parent=1 // pred_region
      _
    $region5: #{aoa_refiner_core.11} parent=1 // pred_fallthru
      _
    // Predicated region
    $region6: #{aoa_refiner_core.11} parent=1 // pred_check
      _
    $region7: #{aoa_refiner_core.11} parent=1 // pred_check_branch
      %18 = sbr.rel (0) target = $region9
    $region8: #{aoa_refiner_core.11} parent=1 // pred_region
      _
    $region9: #{aoa_refiner_core.11} parent=1 // pred_fallthru
      _
    // Predicated region
    $region10: #{aoa_refiner_core.11} parent=1 // pred_check
      _
    $region11: #{aoa_refiner_core.11} parent=1 // pred_check_branch
      %20 = sbr.rel (0) target = $region13
    $region12: #{aoa_refiner_core.11} parent=1 // pred_region
      _
    $region13: #{aoa_refiner_core.11} parent=1 // pred_fallthru
      _
    // Predicated region
    $region14: #{aoa_refiner_core.11} parent=1 // pred_check
      _
    $region15: #{aoa_refiner_core.11} parent=1 // pred_check_branch
      %22 = sbr.rel (0) target = $region17
    $region16: #{aoa_refiner_core.11} parent=1 // pred_region
      _
    $region17: #{aoa_refiner_core.11} parent=1 // pred_fallthru
      _
    // Predicated region
    $region18: #{aoa_refiner_core.11} parent=1 // pred_check
      _
    $region19: #{aoa_refiner_core.11} parent=1 // pred_check_branch
      %24 = sbr.rel (0) target = $region21
    $region20: #{aoa_refiner_core.11} parent=1 // pred_region
      _
    $region21: #{aoa_refiner_core.11} parent=1 // pred_fallthru
      _
    // Predicated region
    $region22: #{aoa_refiner_core.11} parent=1 // pred_check
      _
    $region23: #{aoa_refiner_core.11} parent=1 // pred_check_branch
      %26 = sbr.rel (0) target = $region25
    $region24: #{aoa_refiner_core.11} parent=1 // pred_region
      _
    $region25: #{aoa_refiner_core.11} parent=1 // pred_fallthru
      _
    // Predicated region
    $region26: #{aoa_refiner_core.11} parent=1 // pred_check
      _
    $region27: #{aoa_refiner_core.11} parent=1 // pred_check_branch
      %28 = sbr.rel (0) target = $region29
    $region28: #{aoa_refiner_core.11} parent=1 // pred_region
      _
    $region29: #{aoa_refiner_core.11} parent=1 // pred_fallthru
      _
    // Predicated region
    $region30: #{aoa_refiner_core.11} parent=1 // pred_check
      _
    $region31: #{aoa_refiner_core.11} parent=1 // pred_check_branch
      %30 = sbr.rel (0) target = $region33
    $region32: #{aoa_refiner_core.11} parent=1 // pred_region
      _
    $region33: #{aoa_refiner_core.11} parent=1 // pred_fallthru
      _
    // Predicated region
    $region34: #{aoa_refiner_core.11} parent=1 // pred_check
      _
    $region35: #{aoa_refiner_core.11} parent=1 // pred_check_branch
      %32 = sbr.rel (0) target = $region37
    $region36: #{aoa_refiner_core.11} parent=1 // pred_region
      _
    $region37: #{aoa_refiner_core.11} parent=1 // pred_fallthru
      _
    %v33 = vld [vmem:[%s0] sm:$0xff]
    %v34 = vld [vmem:[%s0 + $0x8] sm:$0xff]
    %vm35 = vcmask 261120
    %v36 = vsel %vm35, %v33, 0.0
    %37 = vadd.xlane.f32.xlu0 %v36
    %v38 = vpop.xlane.xlu0 %37
    %v39 = vsel %vm35, %v34, 0.0
    %40 = vadd.xlane.f32.xlu0 %v39
    %v41 = vpop.xlane.xlu0 %40
    %v42 = vmul.f32 %v33, %v33
    %v43 = vmul.f32 %v34, %v34
    %v44 = vsel %vm35, %v42, 0.0
    %45 = vadd.xlane.f32.xlu0 %v44
    %v46 = vpop.xlane.xlu0 %45
    %v47 = vsel %vm35, %v43, 0.0
    %48 = vadd.xlane.f32.xlu0 %v47
    %v49 = vpop.xlane.xlu0 %48
    %v50 = vmul.f32 %v38, 0.03125
    %v51 = vmul.f32 %v41, 0.03125
    %v52 = vmul.f32 %v46, 0.03125
    %v53 = vmul.f32 %v49, 0.03125
    %v54 = vmul.f32 %v50, %v50
    %v55 = vmul.f32 %v51, %v51
    %v56 = vsub.f32 %v52, %v54
    %v57 = vsub.f32 %v53, %v55
    %v58 = vmax.f32 %v56, 0.0
    %v59 = vmax.f32 %v57, 0.0
    %v60 = vsub.f32 %v33, %v50
    %v61 = vsub.f32 %v34, %v51
    %v62 = vadd.f32 %v58, 1e-12
    %v63 = vadd.f32 %v59, 1e-12
    %v64 = vrsqrt.pop %v62
    %v65 = vrsqrt.pop %v63
    %v66 = vmul.f32 %v60, %v64
    %v67 = vmul.f32 %v61, %v65
    %v68 = vld [vmem:[%s1] sm:$0x1]
    %v70 = vlaneseq
    %v71 = vshrl.u32 %v70, 7
    %v72 = vsub.s32 0, %v71
    %v73 = vrot.slane %v68, %v72
    %v75 = vmul.f32 %v66, %v73
    %v76 = vmul.f32 %v67, %v73
    %v77 = vld [vmem:[%s2] sm:$0x1]
    %v79 = vlaneseq
    %v80 = vshrl.u32 %v79, 7
    %v81 = vsub.s32 0, %v80
    %v82 = vrot.slane %v77, %v81
    %v84 = vadd.f32 %v75, %v82
    %v85 = vadd.f32 %v76, %v82
    %v86 = vld [vmem:[%s3] sm:$0xff]
    %v87 = vld [vmem:[%s3 + $0x8] sm:$0xff]
    %v88 = vld [vmem:[%s3 + $0x10] sm:$0xff]
    %v89 = vld [vmem:[%s3 + $0x18] sm:$0xff]
    %v90 = vld [vmem:[%s4] sm:$0x1]
    %v92 = vlaneseq
    %v93 = vshrl.u32 %v92, 7
    %v94 = vsub.s32 0, %v93
    %v95 = vrot.slane %v90, %v94
    %v98 = vsel %vm35, %v84, 0
    %v101 = vsel %vm35, %v85, 0
    %103 = vmatprep.subr.mxu0 0.0
    %104 = vmatpush1.msra.mxu0 0.0
    %105 = vmatprep.subr.mxu0 0.0
    %106 = vmatpush1.msra.mxu0 0.0
    %107 = vmatprep.subr.mxu0 0.0
    %108 = vmatpush1.msra.mxu0 0.0
    %109 = vmatprep.subr.mxu0 0.0
    %110 = vmatpush1.msra.mxu0 0.0
    %111 = vmatprep.subr.mxu0 0.0
    %112 = vmatpush1.msra.mxu0 0.0
    %113 = vmatprep.subr.mxu0 0.0
    %114 = vmatpush1.msra.mxu0 0.0
    %115 = vmatprep.subr.mxu0 0.0
    %116 = vmatpush1.msra.mxu0 0.0
    %117 = vmatprep.subr.mxu0 0.0
    %118 = vmatpush1.msra.mxu0 0.0
    %119 = vmatprep.subr.mxu0 0.0
    %120 = vmatpush1.msra.mxu0 0.0
    %121 = vmatprep.subr.mxu0 0.0
    %122 = vmatpush1.msra.mxu0 0.0
    %123 = vmatprep.subr.mxu0 0.0
    %124 = vmatpush1.msra.mxu0 0.0
    %125 = vmatprep.subr.mxu0 0.0
    %126 = vmatpush1.msra.mxu0 0.0
    %127 = vmatprep.subr.mxu0 0.0
    %128 = vmatpush1.msra.mxu0 %v89
    %129 = vmatprep.subr.mxu0 0.0
    %130 = vmatpush1.msra.mxu0 %v88
    %131 = vmatprep.subr.mxu0 0.0
    %132 = vmatpush1.msra.mxu0 %v87
    %133 = vmatprep.subr.mxu0 0.0
    %134 = vmatpush1.msra.mxu0 %v86
    %135 = vmatprep.subr.mxu0 0.0
    %136 = vmatpush2.msra.mxu0 0.0
    %137 = vmatprep.subr.mxu0 0.0
    %138 = vmatpush2.msra.mxu0 0.0
    %139 = vmatprep.subr.mxu0 0.0
    %140 = vmatpush2.msra.mxu0 0.0
    %141 = vmatprep.subr.mxu0 0.0
    %142 = vmatpush2.msra.mxu0 0.0
    %143 = vmatprep.subr.mxu0 0.0
    %144 = vmatpush2.msra.mxu0 0.0
    %145 = vmatprep.subr.mxu0 0.0
    %146 = vmatpush2.msra.mxu0 0.0
    %147 = vmatprep.subr.mxu0 0.0
    %148 = vmatpush2.msra.mxu0 0.0
    %149 = vmatprep.subr.mxu0 0.0
    %150 = vmatpush2.msra.mxu0 0.0
    %151 = vmatprep.subr.mxu0 0.0
    %152 = vmatpush2.msra.mxu0 0.0
    %153 = vmatprep.subr.mxu0 0.0
    %154 = vmatpush2.msra.mxu0 0.0
    %155 = vmatprep.subr.mxu0 0.0
    %156 = vmatpush2.msra.mxu0 0.0
    %157 = vmatprep.subr.mxu0 0.0
    %158 = vmatpush2.msra.mxu0 0.0
    %159 = vmatprep.subr.mxu0 0.0
    %160 = vmatpush2.msra.mxu0 0.0
    %161 = vmatprep.subr.mxu0 0.0
    %162 = vmatpush2.msra.mxu0 0.0
    %163 = vmatprep.subr.mxu0 0.0
    %164 = vmatpush2.msra.mxu0 0.0
    %165 = vmatprep.subr.mxu0 0.0
    %166 = vmatpush2.msra.mxu0 0.0
    %167 = vmatprep.mubr.f32.mxu0 0.0
    %168 = vmatmul.mubr.f32.gmra.mxu0 %v98
    %v169 = vpop.f32.mrf.mxu0
    %v170 = vadd.f32 %v95, %v169
    %v171 = vpop.f32.mrf.mxu0
    %172 = vmatprep.mubr.f32.mxu0 0.0
    %173 = vmatmul.mubr.f32.gmra.mxu0 %v101
    %v174 = vpop.f32.mrf.mxu0
    %v175 = vadd.f32 %v95, %v174
    %v176 = vpop.f32.mrf.mxu0
    %177 = vdwg.mxu0
    %v178 = vmul.f32 %v170, 0.5
    %v179 = vmul.f32 %v175, 0.5
    %v180 = vmul.f32 %v170, 0.70710677
    %v181 = vmul.f32 %v175, 0.70710677
    %v182 = verf.f32.pop %v180
    %v183 = verf.f32.pop %v181
    %v184 = vadd.f32 %v182, 1.0
    %v185 = vadd.f32 %v183, 1.0
    %v186 = vmul.f32 %v178, %v184
    %v187 = vmul.f32 %v179, %v185
    %v188 = vld [vmem:[%s5] sm:$0xff]
    %v189 = vld [vmem:[%s5 + $0x8] sm:$0xff]
    %v190 = vld [vmem:[%s5 + $0x10] sm:$0xff]
    %v191 = vld [vmem:[%s5 + $0x18] sm:$0xff]
    %v192 = vld [vmem:[%s5 + $0x20] sm:$0xff]
    %v193 = vld [vmem:[%s5 + $0x28] sm:$0xff]
    %v194 = vld [vmem:[%s5 + $0x30] sm:$0xff]
    %v195 = vld [vmem:[%s5 + $0x38] sm:$0xff]
    %vm196 = vcmask 523264
    %v198 = vsel %vm196, %v186, 0
    %v201 = vsel %vm196, %v187, 0
    %203 = vmatprep.subr.mxu0 0.0
    %204 = vmatpush1.msra.mxu0 0.0
    %205 = vmatprep.subr.mxu0 0.0
    %206 = vmatpush1.msra.mxu0 0.0
    %207 = vmatprep.subr.mxu0 0.0
    %208 = vmatpush1.msra.mxu0 0.0
    %209 = vmatprep.subr.mxu0 0.0
    %210 = vmatpush1.msra.mxu0 0.0
    %211 = vmatprep.subr.mxu0 0.0
    %212 = vmatpush1.msra.mxu0 0.0
    %213 = vmatprep.subr.mxu0 0.0
    %214 = vmatpush1.msra.mxu0 0.0
    %215 = vmatprep.subr.mxu0 0.0
    %216 = vmatpush1.msra.mxu0 0.0
    %217 = vmatprep.subr.mxu0 0.0
    %218 = vmatpush1.msra.mxu0 0.0
    %219 = vmatprep.subr.mxu0 0.0
    %220 = vmatpush1.msra.mxu0 %v195
    %221 = vmatprep.subr.mxu0 0.0
    %222 = vmatpush1.msra.mxu0 %v194
    %223 = vmatprep.subr.mxu0 0.0
    %224 = vmatpush1.msra.mxu0 %v193
    %225 = vmatprep.subr.mxu0 0.0
    %226 = vmatpush1.msra.mxu0 %v192
    %227 = vmatprep.subr.mxu0 0.0
    %228 = vmatpush1.msra.mxu0 %v191
    %229 = vmatprep.subr.mxu0 0.0
    %230 = vmatpush1.msra.mxu0 %v190
    %231 = vmatprep.subr.mxu0 0.0
    %232 = vmatpush1.msra.mxu0 %v189
    %233 = vmatprep.subr.mxu0 0.0
    %234 = vmatpush1.msra.mxu0 %v188
    %235 = vmatprep.subr.mxu0 0.0
    %236 = vmatpush2.msra.mxu0 0.0
    %237 = vmatprep.subr.mxu0 0.0
    %238 = vmatpush2.msra.mxu0 0.0
    %239 = vmatprep.subr.mxu0 0.0
    %240 = vmatpush2.msra.mxu0 0.0
    %241 = vmatprep.subr.mxu0 0.0
    %242 = vmatpush2.msra.mxu0 0.0
    %243 = vmatprep.subr.mxu0 0.0
    %244 = vmatpush2.msra.mxu0 0.0
    %245 = vmatprep.subr.mxu0 0.0
    %246 = vmatpush2.msra.mxu0 0.0
    %247 = vmatprep.subr.mxu0 0.0
    %248 = vmatpush2.msra.mxu0 0.0
    %249 = vmatprep.subr.mxu0 0.0
    %250 = vmatpush2.msra.mxu0 0.0
    %251 = vmatprep.subr.mxu0 0.0
    %252 = vmatpush2.msra.mxu0 0.0
    %253 = vmatprep.subr.mxu0 0.0
    %254 = vmatpush2.msra.mxu0 0.0
    %255 = vmatprep.subr.mxu0 0.0
    %256 = vmatpush2.msra.mxu0 0.0
    %257 = vmatprep.subr.mxu0 0.0
    %258 = vmatpush2.msra.mxu0 0.0
    %259 = vmatprep.subr.mxu0 0.0
    %260 = vmatpush2.msra.mxu0 0.0
    %261 = vmatprep.subr.mxu0 0.0
    %262 = vmatpush2.msra.mxu0 0.0
    %263 = vmatprep.subr.mxu0 0.0
    %264 = vmatpush2.msra.mxu0 0.0
    %265 = vmatprep.subr.mxu0 0.0
    %266 = vmatpush2.msra.mxu0 0.0
    %267 = vmatprep.mubr.f32.mxu0 0.0
    %268 = vmatmul.mubr.f32.gmra.mxu0 %v198
    %v269 = vpop.f32.mrf.mxu0
    %v270 = vadd.f32 0.0, %v269
    %v271 = vpop.f32.mrf.mxu0
    %272 = vmatprep.mubr.f32.mxu0 0.0
    %273 = vmatmul.mubr.f32.gmra.mxu0 %v201
    %v274 = vpop.f32.mrf.mxu0
    %v275 = vadd.f32 0.0, %v274
    %v276 = vpop.f32.mrf.mxu0
    %277 = vdwg.mxu0
    %v278 = vadd.f32 %v33, %v270
    %v279 = vadd.f32 %v34, %v275
    %v280 = vld [vmem:[%s6] sm:$0x1]
    %v282 = vlaneseq
    %v283 = vshrl.u32 %v282, 7
    %v284 = vsub.s32 0, %v283
    %v285 = vrot.slane %v280, %v284
    %v287 = vadd.f32 %v278, %v285
    %v288 = vadd.f32 %v279, %v285
    %v289 = vsel %vm35, %v287, 0.0
    %290 = vadd.xlane.f32.xlu0 %v289
    %v291 = vpop.xlane.xlu0 %290
    %v292 = vsel %vm35, %v288, 0.0
    %293 = vadd.xlane.f32.xlu0 %v292
    %v294 = vpop.xlane.xlu0 %293
    %v295 = vmul.f32 %v287, %v287
    %v296 = vmul.f32 %v288, %v288
    %v297 = vsel %vm35, %v295, 0.0
    %298 = vadd.xlane.f32.xlu0 %v297
    %v299 = vpop.xlane.xlu0 %298
    %v300 = vsel %vm35, %v296, 0.0
    %301 = vadd.xlane.f32.xlu0 %v300
    %v302 = vpop.xlane.xlu0 %301
    %v303 = vmul.f32 %v291, 0.03125
    %v304 = vmul.f32 %v294, 0.03125
    %v305 = vmul.f32 %v299, 0.03125
    %v306 = vmul.f32 %v302, 0.03125
    %v307 = vmul.f32 %v303, %v303
    %v308 = vmul.f32 %v304, %v304
    %v309 = vsub.f32 %v305, %v307
    %v310 = vsub.f32 %v306, %v308
    %v311 = vmax.f32 %v309, 0.0
    %v312 = vmax.f32 %v310, 0.0
    %v313 = vsub.f32 %v287, %v303
    %v314 = vsub.f32 %v288, %v304
    %v315 = vadd.f32 %v311, 1e-12
    %v316 = vadd.f32 %v312, 1e-12
    %v317 = vrsqrt.pop %v315
    %v318 = vrsqrt.pop %v316
    %v319 = vmul.f32 %v313, %v317
    %v320 = vmul.f32 %v314, %v318
    %v321 = vld [vmem:[%s7] sm:$0x1]
    %v323 = vlaneseq
    %v324 = vshrl.u32 %v323, 7
    %v325 = vsub.s32 0, %v324
    %v326 = vrot.slane %v321, %v325
    %v328 = vmul.f32 %v319, %v326
    %v329 = vmul.f32 %v320, %v326
    %v330 = vld [vmem:[%s8] sm:$0x1]
    %v332 = vlaneseq
    %v333 = vshrl.u32 %v332, 7
    %v334 = vsub.s32 0, %v333
    %v335 = vrot.slane %v330, %v334
    %v337 = vadd.f32 %v328, %v335
    %v338 = vadd.f32 %v329, %v335
    %339 = vst.msk [vmem:[#allocation2] sm:$0xff] %vm35, %v337
    %340 = vst.msk [vmem:[#allocation2 + $0x8] sm:$0xff] %vm35, %v338
    // Predicated region
    $region38: #{aoa_refiner_core.11} parent=1 // pred_check
      _
    $region39: #{aoa_refiner_core.11} parent=1 // pred_check_branch
      %342 = sbr.rel (0) target = $region41
    $region40: #{aoa_refiner_core.11} parent=1 // pred_region
      %s344 = ssub.s32 256, 256
      %345 = vsyncadd [#allocation3], %s344
      %s346 = sshll.u32 [#allocation2], 4
      %s347 = int_to_ptr.vmem [resolvable:$true] %s346
      %352 = dma.vmem_to_hbm [thread:$0]  %s347, 256, %s9, [#allocation3], 128, 128, 8
    $region41: #{aoa_refiner_core.11} parent=1 // pred_fallthru
      _
    // Predicated region
    $region42: #{aoa_refiner_core.11} parent=1 // pred_check
      _
    $region43: #{aoa_refiner_core.11} parent=1 // pred_check_branch
      %354 = sbr.rel (0) target = $region45
    $region44: #{aoa_refiner_core.11} parent=1 // pred_region
      %355 = dma.done [#allocation3], 256
    $region45: #{aoa_refiner_core.11} parent=1 // pred_fallthru
      _
    %356 = vsyncpa [#allocation3], 1

</llo_original>
